<compile_context>
chip_gen: v6e
topology: v6e:2x2x1
jax: 0.10.0
libtpu: 0.0.40
codegen_flags: <defaults>
</compile_context>

<pallas_src>
import math
from functools import partial, lru_cache

import numpy as np
import jax
import jax.numpy as jnp
from jax.experimental import pallas as pl
from jax.experimental.pallas import tpu as pltpu

IN_CHANNELS = 32          # d_model
NUM_HEADS = 4             # nhead
GROUP_SIZE = 8
DIM_FEEDFORWARD = 2048    # torch.nn.TransformerEncoderLayer default
LN_EPS = 1e-5             # layer_norm_eps default


def _round_up(x, m):
    return (x + m - 1) // m * m


def _cdiv(a, b):
    return -(-a // b)


@lru_cache(maxsize=1)
def _vmem_limit_bytes():
    """Generation-aware scoped-VMEM limit (v7x has 64 MiB, v5e/v6e 128 MiB)."""
    cap = 64 * 1024 * 1024
    try:
        info = pltpu.get_tpu_info()
        cap = int(getattr(info, 'vmem_capacity_bytes', cap))
    except Exception:
        pass
    if cap >= 128 * 1024 * 1024:
        return 100 * 1024 * 1024          # v5e / v6e: use most of 128 MiB
    return min(52 * 1024 * 1024, int(cap * 0.8))   # v7x: leave I/O headroom


def _layer_norm(x, w, b):
    mean = jnp.mean(x, axis=-1, keepdims=True)
    xc = x - mean
    var = jnp.mean(xc * xc, axis=-1, keepdims=True)
    return xc * jax.lax.rsqrt(var + LN_EPS) * w + b


# ---------------------------------------------------------------------------
# Kernel 1: TransformerEncoderLayer on pooled sequences, tiled over (batch,
#   query-rows).  K/V are recomputed per q-tile from the full sequence block
#   (K=C=32 so this is negligible next to the dff=2048 FFN).
# ---------------------------------------------------------------------------
def _global_transformer_kernel(xq_ref, xk_ref, maskb_ref,
                               wq_ref, bq_ref, wkv_ref, bkv_ref,
                               wo_ref, bo_ref,
                               ln1w_ref, ln1b_ref, ln2w_ref, ln2b_ref,
                               w1_ref, b1_ref, w2_ref, b2_ref,
                               o_ref):
    _, TQ, C = xq_ref.shape
    _, S, _ = xk_ref.shape
    H = NUM_HEADS
    hd = C // H

    xq = xq_ref[...].reshape(TQ, C)                     # f32 query rows
    xk = xk_ref[...].reshape(S, C)                      # f32 full sequence

    # --- projections (bf16 MXU operands, f32 accumulate) ---
    q = jnp.dot(xq.astype(jnp.bfloat16), wq_ref[...],
                preferred_element_type=jnp.float32) + bq_ref[...]       # [TQ, C]
    kv = jnp.dot(xk.astype(jnp.bfloat16), wkv_ref[...],
                 preferred_element_type=jnp.float32) + bkv_ref[...]     # [S, 2C]
    k = kv[:, :C]
    v = kv[:, C:]

    # TODO(synk): the head-split reshapes below are cross-lane relayouts; with
    # C=32 / hd=8 they are tiny, but a host-side head-major weight reorder
    # could remove them entirely.
    qh = q.reshape(TQ, H, hd)
    kh = k.reshape(S, H, hd)
    vh = v.reshape(S, H, hd)

    scale = 1.0 / math.sqrt(hd)
    sc = jnp.einsum('qhd,khd->hqk',
                    qh.astype(jnp.bfloat16), kh.astype(jnp.bfloat16),
                    preferred_element_type=jnp.float32) * scale         # [H, TQ, S]
    sc = sc + maskb_ref[...].reshape(1, 1, S)           # key-padding bias (f32)

    m = jnp.max(sc, axis=-1, keepdims=True)
    e = jnp.exp(sc - m)
    p = e * pl.reciprocal(jnp.sum(e, axis=-1, keepdims=True), approx=True)

    attn = jnp.einsum('hqk,khd->qhd',
                      p.astype(jnp.bfloat16), vh.astype(jnp.bfloat16),
                      preferred_element_type=jnp.float32)               # [TQ, H, hd]
    attn = attn.reshape(TQ, C)
    attn = jnp.dot(attn.astype(jnp.bfloat16), wo_ref[...],
                   preferred_element_type=jnp.float32) + bo_ref[...]

    # --- residual + LN1 (f32) ---
    h1 = _layer_norm(xq + attn, ln1w_ref[...], ln1b_ref[...])

    # --- FFN: Linear(C, dff) -> ReLU -> Linear(dff, C), bounded to [tq, dff] ---
    ff = jnp.dot(h1.astype(jnp.bfloat16), w1_ref[...],
                 preferred_element_type=jnp.float32) + b1_ref[...]
    ff = jnp.maximum(ff, 0.0)
    ff = jnp.dot(ff.astype(jnp.bfloat16), w2_ref[...],
                 preferred_element_type=jnp.float32) + b2_ref[...]

    out = _layer_norm(h1 + ff, ln2w_ref[...], ln2b_ref[...])
    o_ref[...] = out.reshape(1, TQ, C).astype(o_ref.dtype)


def _pick_tq(smax):
    # TODO(synk): stream K/V flash-style inside the kernel if Smax grows far
    # beyond a few thousand; with full-sequence K/V per step the [H, tq, S]
    # scores stay below ~10 MiB with the tiles chosen here.
    if smax <= 256:
        return _round_up(max(smax, 8), 8)
    if smax <= 4096:
        return 256
    return 128


def global_transformer(x_pad, mask_bias, p, *, tq):
    B, S, C = x_pad.shape
    weight_args = (p['wq_t'], p['bq'], p['wkv_t'], p['bkv'],
                   p['wo_t'], p['bo'],
                   p['ln1_w'], p['ln1_b'], p['ln2_w'], p['ln2_b'],
                   p['w1_t'], p['b1'], p['w2_t'], p['b2'])

    def resident(arr):
        return pl.BlockSpec(arr.shape, lambda b, qi: (0, 0))   # VMEM-resident

    in_specs = ([pl.BlockSpec((1, tq, C), lambda b, qi: (b, qi, 0)),   # query rows
                 pl.BlockSpec((1, S, C), lambda b, qi: (b, 0, 0)),     # full K/V src
                 pl.BlockSpec((1, 1, S), lambda b, qi: (b, 0, 0))]     # key-pad bias
                + [resident(a) for a in weight_args])

    return pl.pallas_call(
        _global_transformer_kernel,
        out_shape=jax.ShapeDtypeStruct((B, S, C), jnp.bfloat16),
        grid=(B, S // tq),
        in_specs=in_specs,
        out_specs=pl.BlockSpec((1, tq, C), lambda b, qi: (b, qi, 0)),
        compiler_params=pltpu.CompilerParams(
            dimension_semantics=("parallel", "parallel"),
            vmem_limit_bytes=_vmem_limit_bytes()),
    )(x_pad, x_pad, mask_bias, *weight_args)


# ---------------------------------------------------------------------------
# Kernel 2: fused project(cat([global.repeat(group_size), win], channel)).
#   out[g, :] = win[g, :] @ kron(I_gs, Ww^T) + glob[g, :] @ tile(Wg^T, gs) + b
#   Two bf16 inputs, two accumulating MXU dots, lane-dense [tile_g, gs*C] out.
# ---------------------------------------------------------------------------
def _project_kernel(win_ref, glob_ref, ww_ref, wg_ref, b_ref, o_ref):
    acc = jnp.dot(win_ref[...], ww_ref[...], preferred_element_type=jnp.float32)
    acc = acc + jnp.dot(glob_ref[...], wg_ref[...],
                        preferred_element_type=jnp.float32)
    o_ref[...] = acc + b_ref[...]


def _pick_tile_g(G):
    if G <= 2048:                       # single tile (block == full array)
        return _round_up(max(G, 8), 8)
    n_tiles = _cdiv(G, 2048)            # balanced tiles, 256-row aligned
    return _round_up(_cdiv(G, n_tiles), 256)


def project_fused(feats_win_rows, feats_global, ww_kron, wg_tiled, b_full):
    # feats_win_rows: [G, gs*C] bf16   feats_global: [G, C] bf16
    G, Kw = feats_win_rows.shape
    C = feats_global.shape[1]
    Nout = ww_kron.shape[1]

    tile_g = _pick_tile_g(G)
    G_pad = _round_up(G, tile_g)
    if G_pad != G:
        feats_win_rows = jnp.pad(feats_win_rows, ((0, G_pad - G), (0, 0)))
        feats_global = jnp.pad(feats_global, ((0, G_pad - G), (0, 0)))

    out = pl.pallas_call(
        _project_kernel,
        out_shape=jax.ShapeDtypeStruct((G_pad, Nout), jnp.float32),
        grid=(G_pad // tile_g,),
        in_specs=[pl.BlockSpec((tile_g, Kw), lambda i: (i, 0)),
                  pl.BlockSpec((tile_g, C), lambda i: (i, 0)),
                  pl.BlockSpec(ww_kron.shape, lambda i: (0, 0)),
                  pl.BlockSpec(wg_tiled.shape, lambda i: (0, 0)),
                  pl.BlockSpec(b_full.shape, lambda i: (0, 0))],
        out_specs=pl.BlockSpec((tile_g, Nout), lambda i: (i, 0)),
        compiler_params=pltpu.CompilerParams(
            dimension_semantics=("parallel",),
            vmem_limit_bytes=_vmem_limit_bytes()),
    )(feats_win_rows, feats_global, ww_kron, wg_tiled, b_full)
    return out[:G]                                                      # [G, gs*C]


# ---------------------------------------------------------------------------
# Parameters: torch-layout init + wrapper-side preparation (pre-transpose,
# bf16 cast of MXU operands, 2-D biases, packed projection weights).
# ---------------------------------------------------------------------------
def init_params(key, C=IN_CHANNELS, dff=DIM_FEEDFORWARD):
    ks = jax.random.split(key, 5)
    s = 0.02
    return {
        'in_proj_w': jax.random.normal(ks[0], (3 * C, C), jnp.float32) * s,
        'in_proj_b': jnp.zeros((3 * C,), jnp.float32),
        'out_proj_w': jax.random.normal(ks[1], (C, C), jnp.float32) * s,
        'out_proj_b': jnp.zeros((C,), jnp.float32),
        'ln1_w': jnp.ones((C,), jnp.float32),
        'ln1_b': jnp.zeros((C,), jnp.float32),
        'ln2_w': jnp.ones((C,), jnp.float32),
        'ln2_b': jnp.zeros((C,), jnp.float32),
        'ff1_w': jax.random.normal(ks[2], (dff, C), jnp.float32) * s,
        'ff1_b': jnp.zeros((dff,), jnp.float32),
        'ff2_w': jax.random.normal(ks[3], (C, dff), jnp.float32) * s,
        'ff2_b': jnp.zeros((C,), jnp.float32),
        'proj_w': jax.random.normal(ks[4], (C, 2 * C), jnp.float32) * s,
        'proj_b': jnp.zeros((C,), jnp.float32),
    }


def prepare_params(p, group_size=GROUP_SIZE):
    C = p['in_proj_w'].shape[1]
    gs = group_size
    # torch cat order is [feats_global, feats_win] along channels:
    wg_t = p['proj_w'][:, :C].T            # [C, C]  multiplies global feats
    ww_t = p['proj_w'][:, C:].T            # [C, C]  multiplies window feats

    def r2(v):
        return v[None, :].astype(jnp.float32)

    return {
        'wq_t': p['in_proj_w'][:C].T.astype(jnp.bfloat16),      # [C, C]
        'bq': r2(p['in_proj_b'][:C]),
        'wkv_t': p['in_proj_w'][C:].T.astype(jnp.bfloat16),     # [C, 2C]
        'bkv': r2(p['in_proj_b'][C:]),
        'wo_t': p['out_proj_w'].T.astype(jnp.bfloat16),         # [C, C]
        'bo': r2(p['out_proj_b']),
        'ln1_w': r2(p['ln1_w']), 'ln1_b': r2(p['ln1_b']),
        'ln2_w': r2(p['ln2_w']), 'ln2_b': r2(p['ln2_b']),
        'w1_t': p['ff1_w'].T.astype(jnp.bfloat16),              # [C, dff]
        'b1': r2(p['ff1_b']),
        'w2_t': p['ff2_w'].T.astype(jnp.bfloat16),              # [dff, C]
        'b2': r2(p['ff2_b']),
        'proj_ww_kron': jnp.kron(jnp.eye(gs, dtype=jnp.float32),
                                 ww_t).astype(jnp.bfloat16),    # [gs*C, gs*C]
        'proj_wg_tiled': jnp.tile(wg_t, (1, gs)).astype(jnp.bfloat16),  # [C, gs*C]
        'proj_b_full': jnp.tile(p['proj_b'][None, :], (1, gs)).astype(jnp.float32),
    }


# ---------------------------------------------------------------------------
# Full forward.  All index construction uses jnp ops so the whole thing jits;
# only Smax / tq (shapes) are derived on host from the numpy mappings.
# ---------------------------------------------------------------------------
@partial(jax.jit, static_argnames=("batch_size", "group_size", "smax_pad", "tq"))
def _global_former_impl(feats_flat, indices, flat2win, win2flat, bsi_p, prepared,
                        *, batch_size, group_size, smax_pad, tq):
    L, C = feats_flat.shape
    gs = group_size

    # gather into padded window layout
    sorted_feats = jnp.take(feats_flat, indices, axis=0)                # [L, C]
    feats_win_flat = jnp.take(sorted_feats, flat2win, axis=0)           # [Lpad, C]
    Lpad = feats_win_flat.shape[0]
    G = Lpad // gs
    feats_win = feats_win_flat.reshape(G, gs, C)

    # per-group max-pool in the wrapper (adaptive_max_pool1d(output_size=1))
    pooled = jnp.max(feats_win, axis=1)                                 # [G, C]

    # pad_sequence bookkeeping (jnp, no host loops)
    pool_start = bsi_p // gs                                            # [B+1]
    seq_sizes = pool_start[1:] - pool_start[:-1]                        # [B]
    pos = jnp.arange(smax_pad, dtype=jnp.int32)
    valid = pos[None, :] < seq_sizes[:, None]                           # [B, Smax]
    gather_idx = jnp.where(valid, pool_start[:-1, None] + pos[None, :], 0)

    # padded pooled sequences for the transformer kernel; padded rows produce
    # garbage that is masked out of attention and discarded below.
    x_pad = jnp.take(pooled, gather_idx.reshape(-1), axis=0)
    x_pad = x_pad.reshape(batch_size, smax_pad, C)

    # TODO(synk): the original PyTorch passes `padding_mask` (True on VALID
    # tokens) straight into `src_key_padding_mask`, which masks the valid
    # tokens and NaNs the longest sequence; the intended semantics are used
    # here instead (padding positions are excluded from attention).
    mask_bias = jnp.where(valid, 0.0, -1e9).astype(jnp.float32)[:, None, :]

    feats_tr = global_transformer(x_pad, mask_bias, prepared, tq=tq)    # [B,S,C] bf16

    # unpad ( == out[padding_mask] ) back to group order
    g_ids = jnp.arange(G, dtype=jnp.int32)
    b_idx = jnp.searchsorted(pool_start, g_ids, side='right') - 1
    s_idx = g_ids - pool_start[b_idx]
    feats_global = feats_tr[b_idx, s_idx]                               # [G, C] bf16

    # fused concat + Linear(2C -> C), lane-dense [G, gs*C] output
    feats_fuse = project_fused(
        feats_win_flat.reshape(G, gs * C).astype(jnp.bfloat16),
        feats_global.astype(jnp.bfloat16),
        prepared['proj_ww_kron'], prepared['proj_wg_tiled'],
        prepared['proj_b_full'])
    feats_fuse = feats_fuse.reshape(Lpad, C)

    # feats_flat[indices] = feats_fuse[win2flat]
    updates = jnp.take(feats_fuse, win2flat, axis=0)                    # [L, C]
    return feats_flat.at[indices].set(updates)


def global_former_forward(feats_flat, mappings, batch_size, prepared,
                          group_size=GROUP_SIZE):
    bsi_p = np.asarray(mappings['batch_start_indices_p'])
    pool_start = bsi_p // group_size
    smax = int((pool_start[1:] - pool_start[:-1]).max())
    tq = _pick_tq(smax)
    smax_pad = _round_up(smax, tq)
    return _global_former_impl(
        feats_flat,
        jnp.asarray(mappings['x'], jnp.int32),
        jnp.asarray(mappings['flat2win'], jnp.int32),
        jnp.asarray(mappings['win2flat'], jnp.int32),
        jnp.asarray(bsi_p, jnp.int32),
        prepared,
        batch_size=batch_size, group_size=group_size,
        smax_pad=smax_pad, tq=tq)


# ---------------------------------------------------------------------------
if __name__ == "__main__":
    key = jax.random.PRNGKey(0)
    C = IN_CHANNELS
    batch_size = 2
    counts = [20, 12]                       # voxels per batch sample
    L = sum(counts)                         # 32

    # deterministic mappings (host-side test harness construction)
    rng = np.random.RandomState(0)
    indices = rng.permutation(L).astype(np.int32)                       # mappings['x']
    padded = [int(math.ceil(n / GROUP_SIZE) * GROUP_SIZE) for n in counts]  # [24, 16]
    bsi_p = np.cumsum([0] + padded).astype(np.int32)                    # [0, 24, 40]
    Lpad = int(bsi_p[-1])

    flat2win = np.zeros(Lpad, dtype=np.int32)
    win2flat = np.zeros(L, dtype=np.int32)
    sorted_off = 0
    for b in range(batch_size):
        n, npad, pstart = counts[b], padded[b], int(bsi_p[b])
        flat2win[pstart:pstart + npad] = sorted_off + (np.arange(npad) % n)
        win2flat[sorted_off:sorted_off + n] = pstart + np.arange(n)
        sorted_off += n

    mappings = {
        'x': indices,
        'flat2win': flat2win,
        'win2flat': win2flat,
        'batch_start_indices_p': bsi_p,
    }

    kf, kp = jax.random.split(key)
    feats_flat = jax.random.normal(kf, (L, C), jnp.float32)
    params = prepare_params(init_params(kp))

    out = global_former_forward(feats_flat, mappings, batch_size, params)
    out = jax.block_until_ready(out)
    assert out.shape == (L, C)
    assert bool(jnp.all(jnp.isfinite(out)))
    print("KERNEL_OK")
</pallas_src>

<mosaic_0001>
module attributes {stable_mosaic.version = 11 : i64} {
  func.func @_global_transformer_kernel(%arg0: i32, %arg1: i32, %arg2: memref<1x8x32xf32, #tpu.memory_space<vmem>>, %arg3: memref<1x8x32xf32, #tpu.memory_space<vmem>>, %arg4: memref<1x1x8xf32, #tpu.memory_space<vmem>>, %arg5: memref<32x32xbf16, #tpu.memory_space<vmem>>, %arg6: memref<1x32xf32, #tpu.memory_space<vmem>>, %arg7: memref<32x64xbf16, #tpu.memory_space<vmem>>, %arg8: memref<1x64xf32, #tpu.memory_space<vmem>>, %arg9: memref<32x32xbf16, #tpu.memory_space<vmem>>, %arg10: memref<1x32xf32, #tpu.memory_space<vmem>>, %arg11: memref<1x32xf32, #tpu.memory_space<vmem>>, %arg12: memref<1x32xf32, #tpu.memory_space<vmem>>, %arg13: memref<1x32xf32, #tpu.memory_space<vmem>>, %arg14: memref<1x32xf32, #tpu.memory_space<vmem>>, %arg15: memref<32x2048xbf16, #tpu.memory_space<vmem>>, %arg16: memref<1x2048xf32, #tpu.memory_space<vmem>>, %arg17: memref<2048x32xbf16, #tpu.memory_space<vmem>>, %arg18: memref<1x32xf32, #tpu.memory_space<vmem>>, %arg19: memref<1x8x32xbf16, #tpu.memory_space<vmem>>) attributes {dimension_semantics = [#tpu.dimension_semantics<parallel>, #tpu.dimension_semantics<parallel>], iteration_bounds = array<i64: 2, 1>, scalar_prefetch = 0 : i64, scratch_operands = 0 : i64, tpu.core_type = #tpu.core_type<tc>, window_params = [{transform_indices = @transform_0, window_bounds = array<i64: 1, 8, 32>}, {transform_indices = @transform_1, window_bounds = array<i64: 1, 8, 32>}, {transform_indices = @transform_2, window_bounds = array<i64: 1, 1, 8>}, {pipeline_mode = #tpu.pipeline_mode<synchronous>, transform_indices = @transform_3, window_bounds = array<i64: 32, 32>}, {pipeline_mode = #tpu.pipeline_mode<synchronous>, transform_indices = @transform_4, window_bounds = array<i64: 1, 32>}, {pipeline_mode = #tpu.pipeline_mode<synchronous>, transform_indices = @transform_5, window_bounds = array<i64: 32, 64>}, {pipeline_mode = #tpu.pipeline_mode<synchronous>, transform_indices = @transform_6, window_bounds = array<i64: 1, 64>}, {pipeline_mode = #tpu.pipeline_mode<synchronous>, transform_indices = @transform_7, window_bounds = array<i64: 32, 32>}, {pipeline_mode = #tpu.pipeline_mode<synchronous>, transform_indices = @transform_8, window_bounds = array<i64: 1, 32>}, {pipeline_mode = #tpu.pipeline_mode<synchronous>, transform_indices = @transform_9, window_bounds = array<i64: 1, 32>}, {pipeline_mode = #tpu.pipeline_mode<synchronous>, transform_indices = @transform_10, window_bounds = array<i64: 1, 32>}, {pipeline_mode = #tpu.pipeline_mode<synchronous>, transform_indices = @transform_11, window_bounds = array<i64: 1, 32>}, {pipeline_mode = #tpu.pipeline_mode<synchronous>, transform_indices = @transform_12, window_bounds = array<i64: 1, 32>}, {pipeline_mode = #tpu.pipeline_mode<synchronous>, transform_indices = @transform_13, window_bounds = array<i64: 32, 2048>}, {pipeline_mode = #tpu.pipeline_mode<synchronous>, transform_indices = @transform_14, window_bounds = array<i64: 1, 2048>}, {pipeline_mode = #tpu.pipeline_mode<synchronous>, transform_indices = @transform_15, window_bounds = array<i64: 2048, 32>}, {pipeline_mode = #tpu.pipeline_mode<synchronous>, transform_indices = @transform_16, window_bounds = array<i64: 1, 32>}, {transform_indices = @transform_17, window_bounds = array<i64: 1, 8, 32>}]} {
    %c0 = arith.constant 0 : index
    %c0_0 = arith.constant 0 : index
    %c0_1 = arith.constant 0 : index
    %0 = vector.load %arg2[%c0, %c0_0, %c0_1] : memref<1x8x32xf32, #tpu.memory_space<vmem>>, vector<1x8x32xf32>
    %1 = vector.shape_cast %0 : vector<1x8x32xf32> to vector<8x32xf32>
    %c0_2 = arith.constant 0 : index
    %c0_3 = arith.constant 0 : index
    %c0_4 = arith.constant 0 : index
    %2 = vector.load %arg3[%c0_2, %c0_3, %c0_4] : memref<1x8x32xf32, #tpu.memory_space<vmem>>, vector<1x8x32xf32>
    %3 = vector.shape_cast %2 : vector<1x8x32xf32> to vector<8x32xf32>
    %4 = arith.truncf %1 : vector<8x32xf32> to vector<8x32xbf16>
    %c0_5 = arith.constant 0 : index
    %c0_6 = arith.constant 0 : index
    %5 = vector.load %arg5[%c0_5, %c0_6] : memref<32x32xbf16, #tpu.memory_space<vmem>>, vector<32x32xbf16>
    %cst = arith.constant dense<0.000000e+00> : vector<8x32xf32>
    %6 = tpu.matmul %4, %5, %cst {dimension_numbers = #tpu.dot_dimension_numbers<[1], [0], [0], [1], [0, 0, 1, 1], [], []>} : vector<8x32xbf16>, vector<32x32xbf16>, vector<8x32xf32> -> vector<8x32xf32>
    %c0_7 = arith.constant 0 : index
    %c0_8 = arith.constant 0 : index
    %7 = vector.load %arg6[%c0_7, %c0_8] : memref<1x32xf32, #tpu.memory_space<vmem>>, vector<1x32xf32>
    %8 = vector.broadcast %7 : vector<1x32xf32> to vector<8x32xf32>
    %9 = arith.addf %6, %8 : vector<8x32xf32>
    %10 = arith.truncf %3 : vector<8x32xf32> to vector<8x32xbf16>
    %c0_9 = arith.constant 0 : index
    %c0_10 = arith.constant 0 : index
    %11 = vector.load %arg7[%c0_9, %c0_10] : memref<32x64xbf16, #tpu.memory_space<vmem>>, vector<32x64xbf16>
    %cst_11 = arith.constant dense<0.000000e+00> : vector<8x64xf32>
    %12 = tpu.matmul %10, %11, %cst_11 {dimension_numbers = #tpu.dot_dimension_numbers<[1], [0], [0], [1], [0, 0, 1, 1], [], []>} : vector<8x32xbf16>, vector<32x64xbf16>, vector<8x64xf32> -> vector<8x64xf32>
    %c0_12 = arith.constant 0 : index
    %c0_13 = arith.constant 0 : index
    %13 = vector.load %arg8[%c0_12, %c0_13] : memref<1x64xf32, #tpu.memory_space<vmem>>, vector<1x64xf32>
    %14 = vector.broadcast %13 : vector<1x64xf32> to vector<8x64xf32>
    %15 = arith.addf %12, %14 : vector<8x64xf32>
    %16 = vector.extract_strided_slice %15 {offsets = [0, 0], sizes = [8, 32], strides = [1, 1]} : vector<8x64xf32> to vector<8x32xf32>
    %17 = vector.extract_strided_slice %15 {offsets = [0, 32], sizes = [8, 32], strides = [1, 1]} : vector<8x64xf32> to vector<8x32xf32>
    %18 = vector.shape_cast %9 : vector<8x32xf32> to vector<8x4x8xf32>
    %19 = vector.shape_cast %16 : vector<8x32xf32> to vector<8x4x8xf32>
    %20 = vector.shape_cast %17 : vector<8x32xf32> to vector<8x4x8xf32>
    %21 = arith.truncf %18 : vector<8x4x8xf32> to vector<8x4x8xbf16>
    %22 = arith.truncf %19 : vector<8x4x8xf32> to vector<8x4x8xbf16>
    "tpu.trace_start"() <{level = 10 : i32, message = "qhd,khd->hqk"}> : () -> ()
    %cst_14 = arith.constant dense<0.000000e+00> : vector<4x8x8xf32>
    %23 = tpu.matmul %21, %22, %cst_14 {dimension_numbers = #tpu.dot_dimension_numbers<[2], [2], [0], [0], [0, 1, 0, 0, 1, 0], [1], [1]>} : vector<8x4x8xbf16>, vector<8x4x8xbf16>, vector<4x8x8xf32> -> vector<4x8x8xf32>
    "tpu.trace_stop"() : () -> ()
    %cst_15 = arith.constant 0.353553385 : f32
    %24 = vector.broadcast %cst_15 : f32 to vector<4x8x8xf32>
    %25 = arith.mulf %23, %24 : vector<4x8x8xf32>
    %c0_16 = arith.constant 0 : index
    %c0_17 = arith.constant 0 : index
    %c0_18 = arith.constant 0 : index
    %26 = vector.load %arg4[%c0_16, %c0_17, %c0_18] : memref<1x1x8xf32, #tpu.memory_space<vmem>>, vector<1x1x8xf32>
    %27 = vector.broadcast %26 : vector<1x1x8xf32> to vector<4x8x8xf32>
    %28 = arith.addf %25, %27 : vector<4x8x8xf32>
    %cst_19 = arith.constant dense<0xFF800000> : vector<4x8xf32>
    %29 = vector.multi_reduction <maximumf>, %28, %cst_19 [2] : vector<4x8x8xf32> to vector<4x8xf32>
    %30 = vector.shape_cast %29 : vector<4x8xf32> to vector<4x8x1xf32>
    %31 = vector.broadcast %30 : vector<4x8x1xf32> to vector<4x8x8xf32>
    %32 = arith.subf %28, %31 : vector<4x8x8xf32>
    %33 = math.exp %32 : vector<4x8x8xf32>
    %cst_20 = arith.constant dense<0.000000e+00> : vector<4x8xf32>
    %34 = vector.multi_reduction <add>, %33, %cst_20 [2] : vector<4x8x8xf32> to vector<4x8xf32>
    %35 = vector.shape_cast %34 : vector<4x8xf32> to vector<4x8x1xf32>
    %36 = tpu.reciprocal %35 {approx = true} : vector<4x8x1xf32> -> vector<4x8x1xf32>
    %37 = vector.broadcast %36 : vector<4x8x1xf32> to vector<4x8x8xf32>
    %38 = arith.mulf %33, %37 : vector<4x8x8xf32>
    %39 = arith.truncf %38 : vector<4x8x8xf32> to vector<4x8x8xbf16>
    %40 = arith.truncf %20 : vector<8x4x8xf32> to vector<8x4x8xbf16>
    "tpu.trace_start"() <{level = 10 : i32, message = "hqk,khd->qhd"}> : () -> ()
    %cst_21 = arith.constant dense<0.000000e+00> : vector<4x8x8xf32>
    %41 = tpu.matmul %40, %39, %cst_21 {dimension_numbers = #tpu.dot_dimension_numbers<[0], [2], [2], [1], [0, 1, 0, 2, 1, 1], [1], [0]>} : vector<8x4x8xbf16>, vector<4x8x8xbf16>, vector<4x8x8xf32> -> vector<4x8x8xf32>
    %42 = tpu.transpose %41, [2, 0, 1] : vector<4x8x8xf32> -> vector<8x4x8xf32>
    "tpu.trace_stop"() : () -> ()
    %43 = vector.shape_cast %42 : vector<8x4x8xf32> to vector<8x32xf32>
    %44 = arith.truncf %43 : vector<8x32xf32> to vector<8x32xbf16>
    %c0_22 = arith.constant 0 : index
    %c0_23 = arith.constant 0 : index
    %45 = vector.load %arg9[%c0_22, %c0_23] : memref<32x32xbf16, #tpu.memory_space<vmem>>, vector<32x32xbf16>
    %cst_24 = arith.constant dense<0.000000e+00> : vector<8x32xf32>
    %46 = tpu.matmul %44, %45, %cst_24 {dimension_numbers = #tpu.dot_dimension_numbers<[1], [0], [0], [1], [0, 0, 1, 1], [], []>} : vector<8x32xbf16>, vector<32x32xbf16>, vector<8x32xf32> -> vector<8x32xf32>
    %c0_25 = arith.constant 0 : index
    %c0_26 = arith.constant 0 : index
    %47 = vector.load %arg10[%c0_25, %c0_26] : memref<1x32xf32, #tpu.memory_space<vmem>>, vector<1x32xf32>
    %48 = vector.broadcast %47 : vector<1x32xf32> to vector<8x32xf32>
    %49 = arith.addf %46, %48 : vector<8x32xf32>
    %50 = arith.addf %1, %49 : vector<8x32xf32>
    %c0_27 = arith.constant 0 : index
    %c0_28 = arith.constant 0 : index
    %51 = vector.load %arg11[%c0_27, %c0_28] : memref<1x32xf32, #tpu.memory_space<vmem>>, vector<1x32xf32>
    %c0_29 = arith.constant 0 : index
    %c0_30 = arith.constant 0 : index
    %52 = vector.load %arg12[%c0_29, %c0_30] : memref<1x32xf32, #tpu.memory_space<vmem>>, vector<1x32xf32>
    %cst_31 = arith.constant dense<0.000000e+00> : vector<8xf32>
    %53 = vector.multi_reduction <add>, %50, %cst_31 [1] : vector<8x32xf32> to vector<8xf32>
    %54 = vector.shape_cast %53 : vector<8xf32> to vector<8x1xf32>
    %cst_32 = arith.constant 3.200000e+01 : f32
    %55 = vector.broadcast %cst_32 : f32 to vector<8x1xf32>
    %56 = arith.divf %54, %55 : vector<8x1xf32>
    %57 = vector.broadcast %56 : vector<8x1xf32> to vector<8x32xf32>
    %58 = arith.subf %50, %57 : vector<8x32xf32>
    %59 = arith.mulf %58, %58 : vector<8x32xf32>
    %cst_33 = arith.constant dense<0.000000e+00> : vector<8xf32>
    %60 = vector.multi_reduction <add>, %59, %cst_33 [1] : vector<8x32xf32> to vector<8xf32>
    %61 = vector.shape_cast %60 : vector<8xf32> to vector<8x1xf32>
    %cst_34 = arith.constant 3.200000e+01 : f32
    %62 = vector.broadcast %cst_34 : f32 to vector<8x1xf32>
    %63 = arith.divf %61, %62 : vector<8x1xf32>
    %cst_35 = arith.constant 9.99999974E-6 : f32
    %64 = vector.broadcast %cst_35 : f32 to vector<8x1xf32>
    %65 = arith.addf %63, %64 : vector<8x1xf32>
    %66 = math.rsqrt %65 : vector<8x1xf32>
    %67 = vector.broadcast %66 : vector<8x1xf32> to vector<8x32xf32>
    %68 = arith.mulf %58, %67 : vector<8x32xf32>
    %69 = vector.broadcast %51 : vector<1x32xf32> to vector<8x32xf32>
    %70 = arith.mulf %68, %69 : vector<8x32xf32>
    %71 = vector.broadcast %52 : vector<1x32xf32> to vector<8x32xf32>
    %72 = arith.addf %70, %71 : vector<8x32xf32>
    %73 = arith.truncf %72 : vector<8x32xf32> to vector<8x32xbf16>
    %c0_36 = arith.constant 0 : index
    %c0_37 = arith.constant 0 : index
    %74 = vector.load %arg15[%c0_36, %c0_37] : memref<32x2048xbf16, #tpu.memory_space<vmem>>, vector<32x2048xbf16>
    %cst_38 = arith.constant dense<0.000000e+00> : vector<8x2048xf32>
    %75 = tpu.matmul %73, %74, %cst_38 {dimension_numbers = #tpu.dot_dimension_numbers<[1], [0], [0], [1], [0, 0, 1, 1], [], []>} : vector<8x32xbf16>, vector<32x2048xbf16>, vector<8x2048xf32> -> vector<8x2048xf32>
    %c0_39 = arith.constant 0 : index
    %c0_40 = arith.constant 0 : index
    %76 = vector.load %arg16[%c0_39, %c0_40] : memref<1x2048xf32, #tpu.memory_space<vmem>>, vector<1x2048xf32>
    %77 = vector.broadcast %76 : vector<1x2048xf32> to vector<8x2048xf32>
    %78 = arith.addf %75, %77 : vector<8x2048xf32>
    %cst_41 = arith.constant 0.000000e+00 : f32
    %79 = vector.broadcast %cst_41 : f32 to vector<8x2048xf32>
    %80 = arith.maximumf %78, %79 : vector<8x2048xf32>
    %81 = arith.truncf %80 : vector<8x2048xf32> to vector<8x2048xbf16>
    %c0_42 = arith.constant 0 : index
    %c0_43 = arith.constant 0 : index
    %82 = vector.load %arg17[%c0_42, %c0_43] : memref<2048x32xbf16, #tpu.memory_space<vmem>>, vector<2048x32xbf16>
    %cst_44 = arith.constant dense<0.000000e+00> : vector<8x32xf32>
    %83 = tpu.matmul %81, %82, %cst_44 {dimension_numbers = #tpu.dot_dimension_numbers<[1], [0], [0], [1], [0, 0, 1, 1], [], []>} : vector<8x2048xbf16>, vector<2048x32xbf16>, vector<8x32xf32> -> vector<8x32xf32>
    %c0_45 = arith.constant 0 : index
    %c0_46 = arith.constant 0 : index
    %84 = vector.load %arg18[%c0_45, %c0_46] : memref<1x32xf32, #tpu.memory_space<vmem>>, vector<1x32xf32>
    %85 = vector.broadcast %84 : vector<1x32xf32> to vector<8x32xf32>
    %86 = arith.addf %83, %85 : vector<8x32xf32>
    %87 = arith.addf %72, %86 : vector<8x32xf32>
    %c0_47 = arith.constant 0 : index
    %c0_48 = arith.constant 0 : index
    %88 = vector.load %arg13[%c0_47, %c0_48] : memref<1x32xf32, #tpu.memory_space<vmem>>, vector<1x32xf32>
    %c0_49 = arith.constant 0 : index
    %c0_50 = arith.constant 0 : index
    %89 = vector.load %arg14[%c0_49, %c0_50] : memref<1x32xf32, #tpu.memory_space<vmem>>, vector<1x32xf32>
    %cst_51 = arith.constant dense<0.000000e+00> : vector<8xf32>
    %90 = vector.multi_reduction <add>, %87, %cst_51 [1] : vector<8x32xf32> to vector<8xf32>
    %91 = vector.shape_cast %90 : vector<8xf32> to vector<8x1xf32>
    %cst_52 = arith.constant 3.200000e+01 : f32
    %92 = vector.broadcast %cst_52 : f32 to vector<8x1xf32>
    %93 = arith.divf %91, %92 : vector<8x1xf32>
    %94 = vector.broadcast %93 : vector<8x1xf32> to vector<8x32xf32>
    %95 = arith.subf %87, %94 : vector<8x32xf32>
    %96 = arith.mulf %95, %95 : vector<8x32xf32>
    %cst_53 = arith.constant dense<0.000000e+00> : vector<8xf32>
    %97 = vector.multi_reduction <add>, %96, %cst_53 [1] : vector<8x32xf32> to vector<8xf32>
    %98 = vector.shape_cast %97 : vector<8xf32> to vector<8x1xf32>
    %cst_54 = arith.constant 3.200000e+01 : f32
    %99 = vector.broadcast %cst_54 : f32 to vector<8x1xf32>
    %100 = arith.divf %98, %99 : vector<8x1xf32>
    %cst_55 = arith.constant 9.99999974E-6 : f32
    %101 = vector.broadcast %cst_55 : f32 to vector<8x1xf32>
    %102 = arith.addf %100, %101 : vector<8x1xf32>
    %103 = math.rsqrt %102 : vector<8x1xf32>
    %104 = vector.broadcast %103 : vector<8x1xf32> to vector<8x32xf32>
    %105 = arith.mulf %95, %104 : vector<8x32xf32>
    %106 = vector.broadcast %88 : vector<1x32xf32> to vector<8x32xf32>
    %107 = arith.mulf %105, %106 : vector<8x32xf32>
    %108 = vector.broadcast %89 : vector<1x32xf32> to vector<8x32xf32>
    %109 = arith.addf %107, %108 : vector<8x32xf32>
    %110 = vector.shape_cast %109 : vector<8x32xf32> to vector<1x8x32xf32>
    %111 = arith.truncf %110 : vector<1x8x32xf32> to vector<1x8x32xbf16>
    %c0_56 = arith.constant 0 : index
    %c0_57 = arith.constant 0 : index
    %c0_58 = arith.constant 0 : index
    %112 = vector.load %arg19[%c0_56, %c0_57, %c0_58] : memref<1x8x32xbf16, #tpu.memory_space<vmem>>, vector<1x8x32xbf16>
    tpu.vector_store %arg19[%c0_56, %c0_57, %c0_58], %111 {strides = array<i32>} : memref<1x8x32xbf16, #tpu.memory_space<vmem>>, vector<1x8x32xbf16>,
    return
  }
  func.func @transform_0(%arg0: i32, %arg1: i32) -> (i32, i32, i32) {
    %c0_i32 = arith.constant 0 : i32
    %c0_i32_0 = arith.constant 0 : i32
    return %arg0, %arg1, %c0_i32 : i32, i32, i32
  }
  func.func @transform_1(%arg0: i32, %arg1: i32) -> (i32, i32, i32) {
    %c0_i32 = arith.constant 0 : i32
    %c0_i32_0 = arith.constant 0 : i32
    %c0_i32_1 = arith.constant 0 : i32
    return %arg0, %c0_i32, %c0_i32_0 : i32, i32, i32
  }
  func.func @transform_2(%arg0: i32, %arg1: i32) -> (i32, i32, i32) {
    %c0_i32 = arith.constant 0 : i32
    %c0_i32_0 = arith.constant 0 : i32
    %c0_i32_1 = arith.constant 0 : i32
    return %arg0, %c0_i32, %c0_i32_0 : i32, i32, i32
  }
  func.func @transform_3(%arg0: i32, %arg1: i32) -> (i32, i32) {
    %c0_i32 = arith.constant 0 : i32
    %c0_i32_0 = arith.constant 0 : i32
    %c0_i32_1 = arith.constant 0 : i32
    return %c0_i32, %c0_i32_0 : i32, i32
  }
  func.func @transform_4(%arg0: i32, %arg1: i32) -> (i32, i32) {
    %c0_i32 = arith.constant 0 : i32
    %c0_i32_0 = arith.constant 0 : i32
    %c0_i32_1 = arith.constant 0 : i32
    return %c0_i32, %c0_i32_0 : i32, i32
  }
  func.func @transform_5(%arg0: i32, %arg1: i32) -> (i32, i32) {
    %c0_i32 = arith.constant 0 : i32
    %c0_i32_0 = arith.constant 0 : i32
    %c0_i32_1 = arith.constant 0 : i32
    return %c0_i32, %c0_i32_0 : i32, i32
  }
  func.func @transform_6(%arg0: i32, %arg1: i32) -> (i32, i32) {
    %c0_i32 = arith.constant 0 : i32
    %c0_i32_0 = arith.constant 0 : i32
    %c0_i32_1 = arith.constant 0 : i32
    return %c0_i32, %c0_i32_0 : i32, i32
  }
  func.func @transform_7(%arg0: i32, %arg1: i32) -> (i32, i32) {
    %c0_i32 = arith.constant 0 : i32
    %c0_i32_0 = arith.constant 0 : i32
    %c0_i32_1 = arith.constant 0 : i32
    return %c0_i32, %c0_i32_0 : i32, i32
  }
  func.func @transform_8(%arg0: i32, %arg1: i32) -> (i32, i32) {
    %c0_i32 = arith.constant 0 : i32
    %c0_i32_0 = arith.constant 0 : i32
    %c0_i32_1 = arith.constant 0 : i32
    return %c0_i32, %c0_i32_0 : i32, i32
  }
  func.func @transform_9(%arg0: i32, %arg1: i32) -> (i32, i32) {
    %c0_i32 = arith.constant 0 : i32
    %c0_i32_0 = arith.constant 0 : i32
    %c0_i32_1 = arith.constant 0 : i32
    return %c0_i32, %c0_i32_0 : i32, i32
  }
  func.func @transform_10(%arg0: i32, %arg1: i32) -> (i32, i32) {
    %c0_i32 = arith.constant 0 : i32
    %c0_i32_0 = arith.constant 0 : i32
    %c0_i32_1 = arith.constant 0 : i32
    return %c0_i32, %c0_i32_0 : i32, i32
  }
  func.func @transform_11(%arg0: i32, %arg1: i32) -> (i32, i32) {
    %c0_i32 = arith.constant 0 : i32
    %c0_i32_0 = arith.constant 0 : i32
    %c0_i32_1 = arith.constant 0 : i32
    return %c0_i32, %c0_i32_0 : i32, i32
  }
  func.func @transform_12(%arg0: i32, %arg1: i32) -> (i32, i32) {
    %c0_i32 = arith.constant 0 : i32
    %c0_i32_0 = arith.constant 0 : i32
    %c0_i32_1 = arith.constant 0 : i32
    return %c0_i32, %c0_i32_0 : i32, i32
  }
  func.func @transform_13(%arg0: i32, %arg1: i32) -> (i32, i32) {
    %c0_i32 = arith.constant 0 : i32
    %c0_i32_0 = arith.constant 0 : i32
    %c0_i32_1 = arith.constant 0 : i32
    return %c0_i32, %c0_i32_0 : i32, i32
  }
  func.func @transform_14(%arg0: i32, %arg1: i32) -> (i32, i32) {
    %c0_i32 = arith.constant 0 : i32
    %c0_i32_0 = arith.constant 0 : i32
    %c0_i32_1 = arith.constant 0 : i32
    return %c0_i32, %c0_i32_0 : i32, i32
  }
  func.func @transform_15(%arg0: i32, %arg1: i32) -> (i32, i32) {
    %c0_i32 = arith.constant 0 : i32
    %c0_i32_0 = arith.constant 0 : i32
    %c0_i32_1 = arith.constant 0 : i32
    return %c0_i32, %c0_i32_0 : i32, i32
  }
  func.func @transform_16(%arg0: i32, %arg1: i32) -> (i32, i32) {
    %c0_i32 = arith.constant 0 : i32
    %c0_i32_0 = arith.constant 0 : i32
    %c0_i32_1 = arith.constant 0 : i32
    return %c0_i32, %c0_i32_0 : i32, i32
  }
  func.func @transform_17(%arg0: i32, %arg1: i32) -> (i32, i32, i32) {
    %c0_i32 = arith.constant 0 : i32
    %c0_i32_0 = arith.constant 0 : i32
    return %arg0, %arg1, %c0_i32 : i32, i32, i32
  }
}

module attributes {stable_mosaic.version = 11 : i64} {
  func.func @_project_kernel(%arg0: i32, %arg1: memref<8x256xbf16, #tpu.memory_space<vmem>>, %arg2: memref<8x32xbf16, #tpu.memory_space<vmem>>, %arg3: memref<256x256xbf16, #tpu.memory_space<vmem>>, %arg4: memref<32x256xbf16, #tpu.memory_space<vmem>>, %arg5: memref<1x256xf32, #tpu.memory_space<vmem>>, %arg6: memref<8x256xf32, #tpu.memory_space<vmem>>) attributes {dimension_semantics = [#tpu.dimension_semantics<parallel>], iteration_bounds = array<i64: 1>, scalar_prefetch = 0 : i64, scratch_operands = 0 : i64, tpu.core_type = #tpu.core_type<tc>, window_params = [{transform_indices = @transform_0, window_bounds = array<i64: 8, 256>}, {transform_indices = @transform_1, window_bounds = array<i64: 8, 32>}, {pipeline_mode = #tpu.pipeline_mode<synchronous>, transform_indices = @transform_2, window_bounds = array<i64: 256, 256>}, {pipeline_mode = #tpu.pipeline_mode<synchronous>, transform_indices = @transform_3, window_bounds = array<i64: 32, 256>}, {pipeline_mode = #tpu.pipeline_mode<synchronous>, transform_indices = @transform_4, window_bounds = array<i64: 1, 256>}, {transform_indices = @transform_5, window_bounds = array<i64: 8, 256>}]} {
    %c0 = arith.constant 0 : index
    %c0_0 = arith.constant 0 : index
    %0 = vector.load %arg1[%c0, %c0_0] : memref<8x256xbf16, #tpu.memory_space<vmem>>, vector<8x256xbf16>
    %c0_1 = arith.constant 0 : index
    %c0_2 = arith.constant 0 : index
    %1 = vector.load %arg3[%c0_1, %c0_2] : memref<256x256xbf16, #tpu.memory_space<vmem>>, vector<256x256xbf16>
    %cst = arith.constant dense<0.000000e+00> : vector<8x256xf32>
    %2 = tpu.matmul %0, %1, %cst {dimension_numbers = #tpu.dot_dimension_numbers<[1], [0], [0], [1], [0, 0, 1, 1], [], []>} : vector<8x256xbf16>, vector<256x256xbf16>, vector<8x256xf32> -> vector<8x256xf32>
    %c0_3 = arith.constant 0 : index
    %c0_4 = arith.constant 0 : index
    %3 = vector.load %arg2[%c0_3, %c0_4] : memref<8x32xbf16, #tpu.memory_space<vmem>>, vector<8x32xbf16>
    %c0_5 = arith.constant 0 : index
    %c0_6 = arith.constant 0 : index
    %4 = vector.load %arg4[%c0_5, %c0_6] : memref<32x256xbf16, #tpu.memory_space<vmem>>, vector<32x256xbf16>
    %cst_7 = arith.constant dense<0.000000e+00> : vector<8x256xf32>
    %5 = tpu.matmul %3, %4, %cst_7 {dimension_numbers = #tpu.dot_dimension_numbers<[1], [0], [0], [1], [0, 0, 1, 1], [], []>} : vector<8x32xbf16>, vector<32x256xbf16>, vector<8x256xf32> -> vector<8x256xf32>
    %6 = arith.addf %2, %5 : vector<8x256xf32>
    %c0_8 = arith.constant 0 : index
    %c0_9 = arith.constant 0 : index
    %7 = vector.load %arg5[%c0_8, %c0_9] : memref<1x256xf32, #tpu.memory_space<vmem>>, vector<1x256xf32>
    %8 = vector.broadcast %7 : vector<1x256xf32> to vector<8x256xf32>
    %9 = arith.addf %6, %8 : vector<8x256xf32>
    %c0_10 = arith.constant 0 : index
    %c0_11 = arith.constant 0 : index
    %10 = vector.load %arg6[%c0_10, %c0_11] : memref<8x256xf32, #tpu.memory_space<vmem>>, vector<8x256xf32>
    tpu.vector_store %arg6[%c0_10, %c0_11], %9 {strides = array<i32>} : memref<8x256xf32, #tpu.memory_space<vmem>>, vector<8x256xf32>,
    return
  }
  func.func @transform_0(%arg0: i32) -> (i32, i32) {
    %c0_i32 = arith.constant 0 : i32
    %c0_i32_0 = arith.constant 0 : i32
    return %arg0, %c0_i32 : i32, i32
  }
  func.func @transform_1(%arg0: i32) -> (i32, i32) {
    %c0_i32 = arith.constant 0 : i32
    %c0_i32_0 = arith.constant 0 : i32
    return %arg0, %c0_i32 : i32, i32
  }
  func.func @transform_2(%arg0: i32) -> (i32, i32) {
    %c0_i32 = arith.constant 0 : i32
    %c0_i32_0 = arith.constant 0 : i32
    %c0_i32_1 = arith.constant 0 : i32
    return %c0_i32, %c0_i32_0 : i32, i32
  }
  func.func @transform_3(%arg0: i32) -> (i32, i32) {
    %c0_i32 = arith.constant 0 : i32
    %c0_i32_0 = arith.constant 0 : i32
    %c0_i32_1 = arith.constant 0 : i32
    return %c0_i32, %c0_i32_0 : i32, i32
  }
  func.func @transform_4(%arg0: i32) -> (i32, i32) {
    %c0_i32 = arith.constant 0 : i32
    %c0_i32_0 = arith.constant 0 : i32
    %c0_i32_1 = arith.constant 0 : i32
    return %c0_i32, %c0_i32_0 : i32, i32
  }
  func.func @transform_5(%arg0: i32) -> (i32, i32) {
    %c0_i32 = arith.constant 0 : i32
    %c0_i32_0 = arith.constant 0 : i32
    return %arg0, %c0_i32 : i32, i32
  }
}

</mosaic_0001>

<llo_original>
// kernel: custom-call.2
$region0: #{custom-call.2}
  %s0 = inlined_call_operand.vmem [shape: u32[5], index: 0, kind: output, shape index: {}]

// kernel: _global_former_impl.3
$region0: #{_global_former_impl.3}
  #allocation0 [shape = 'u32[]', space=smem, size = 0x4, offset = 0x4, fixed_abs, tag = 'smem constant byte address 0x4 - core index']
  #allocation1 [shape = 'u32[144,128]{1,0:T(1,128)}', space=vmem, size = 0x12000, scoped, tag = 'internal scratch']
  %s0 = inlined_call_operand.vmem [shape: bf16[8,256], index: 0, kind: input, shape index: {}]
  %s1 = inlined_call_operand.vmem [shape: bf16[8,32], index: 1, kind: input, shape index: {}]
  %s2 = inlined_call_operand.vmem [shape: bf16[256,256], index: 2, kind: input, shape index: {}]
  %s3 = inlined_call_operand.vmem [shape: bf16[32,256], index: 3, kind: input, shape index: {}]
  %s4 = inlined_call_operand.vmem [shape: f32[1,256], index: 4, kind: input, shape index: {}]
  %s5 = inlined_call_operand.vmem [shape: f32[8,256], index: 5, kind: output, shape index: {}]
  %s6 = sld [smem:[#allocation0]]
  $region30: #{_global_former_impl.3} parent=0
    _
  %s8 = ssub.s32 1, %s6
  %s9 = scalar_select 0, %s8, %s6
  // Predicated region
  $region2: #{_global_former_impl.3} parent=0 // pred_check
    _
  $region3: #{_global_former_impl.3} parent=0 // pred_check_branch
    %11 = sbr.rel (0) target = $region5
  $region4: #{_global_former_impl.3} parent=0 // pred_region
    _
  $region5: #{_global_former_impl.3} parent=0 // pred_fallthru
    _
  // Predicated region
  $region6: #{_global_former_impl.3} parent=0 // pred_check
    _
  $region7: #{_global_former_impl.3} parent=0 // pred_check_branch
    %13 = sbr.rel (0) target = $region9
  $region8: #{_global_former_impl.3} parent=0 // pred_region
    _
  $region9: #{_global_former_impl.3} parent=0 // pred_fallthru
    _
  // Predicated region
  $region10: #{_global_former_impl.3} parent=0 // pred_check
    _
  $region11: #{_global_former_impl.3} parent=0 // pred_check_branch
    %15 = sbr.rel (0) target = $region13
  $region12: #{_global_former_impl.3} parent=0 // pred_region
    _
  $region13: #{_global_former_impl.3} parent=0 // pred_fallthru
    _
  // Predicated region
  $region14: #{_global_former_impl.3} parent=0 // pred_check
    _
  $region15: #{_global_former_impl.3} parent=0 // pred_check_branch
    %17 = sbr.rel (0) target = $region17
  $region16: #{_global_former_impl.3} parent=0 // pred_region
    _
  $region17: #{_global_former_impl.3} parent=0 // pred_fallthru
    _
  // Predicated region
  $region18: #{_global_former_impl.3} parent=0 // pred_check
    _
  $region19: #{_global_former_impl.3} parent=0 // pred_check_branch
    %19 = sbr.rel (0) target = $region21
  $region20: #{_global_former_impl.3} parent=0 // pred_region
    _
  $region21: #{_global_former_impl.3} parent=0 // pred_fallthru
    _
  %v21 = vld [vmem:[%s0] sm:$0xff]
  %v22 = vld [vmem:[%s2] sm:$0xff]
  %v23 = vld [vmem:[%s2 + $0x8] sm:$0xff]
  %v24 = vld [vmem:[%s2 + $0x10] sm:$0xff]
  %v25 = vld [vmem:[%s2 + $0x18] sm:$0xff]
  %v26 = vld [vmem:[%s2 + $0x20] sm:$0xff]
  %v27 = vld [vmem:[%s2 + $0x28] sm:$0xff]
  %v28 = vld [vmem:[%s2 + $0x30] sm:$0xff]
  %v29 = vld [vmem:[%s2 + $0x38] sm:$0xff]
  %v30 = vld [vmem:[%s2 + $0x40] sm:$0xff]
  %v31 = vld [vmem:[%s2 + $0x48] sm:$0xff]
  %v32 = vld [vmem:[%s2 + $0x50] sm:$0xff]
  %v33 = vld [vmem:[%s2 + $0x58] sm:$0xff]
  %v34 = vld [vmem:[%s2 + $0x60] sm:$0xff]
  %v35 = vld [vmem:[%s2 + $0x68] sm:$0xff]
  %v36 = vld [vmem:[%s2 + $0x70] sm:$0xff]
  %v37 = vld [vmem:[%s2 + $0x78] sm:$0xff]
  %v38 = vld [vmem:[%s2 + $0x80] sm:$0xff]
  %v39 = vld [vmem:[%s2 + $0x88] sm:$0xff]
  %v40 = vld [vmem:[%s2 + $0x90] sm:$0xff]
  %v41 = vld [vmem:[%s2 + $0x98] sm:$0xff]
  %v42 = vld [vmem:[%s2 + $0xa0] sm:$0xff]
  %v43 = vld [vmem:[%s2 + $0xa8] sm:$0xff]
  %v44 = vld [vmem:[%s2 + $0xb0] sm:$0xff]
  %v45 = vld [vmem:[%s2 + $0xb8] sm:$0xff]
  %v46 = vld [vmem:[%s2 + $0xc0] sm:$0xff]
  %v47 = vld [vmem:[%s2 + $0xc8] sm:$0xff]
  %v48 = vld [vmem:[%s2 + $0xd0] sm:$0xff]
  %v49 = vld [vmem:[%s2 + $0xd8] sm:$0xff]
  %v50 = vld [vmem:[%s2 + $0xe0] sm:$0xff]
  %v51 = vld [vmem:[%s2 + $0xe8] sm:$0xff]
  %v52 = vld [vmem:[%s2 + $0xf0] sm:$0xff]
  %v53 = vld [vmem:[%s2 + $0xf8] sm:$0xff]
  %v54 = vld [vmem:[%s1] sm:$0xf]
  %v55 = vld [vmem:[%s3] sm:$0xff]
  %v56 = vld [vmem:[%s3 + $0x8] sm:$0xff]
  %v57 = vld [vmem:[%s3 + $0x10] sm:$0xff]
  %v58 = vld [vmem:[%s3 + $0x18] sm:$0xff]
  %v63 = vunpack.c.l.b16 %v55
  %v64 = vunpack.c.h.b16 %v55
  %v65 = vunpack.c.l.b16 %v56
  %v66 = vunpack.c.h.b16 %v56
  %v67 = vunpack.c.l.b16 %v57
  %v68 = vunpack.c.h.b16 %v57
  %v69 = vunpack.c.l.b16 %v58
  %v70 = vunpack.c.h.b16 %v58
  %v71 = vpack.c.b16 %v65, %v63
  %v72 = vpack.c.b16 %v66, %v64
  %v73 = vpack.c.b16 %v69, %v67
  %v74 = vpack.c.b16 %v70, %v68
  %vm79 = vcmask 261120
  %v81 = vsel %vm79, %v54, 0
  %83 = vmatprep.subr.bf16.mxu0 0
  %84 = vmatpush1.bf16.msra.mxu0 0
  %85 = vmatprep.subr.bf16.mxu0 0
  %86 = vmatpush1.bf16.msra.mxu0 0
  %87 = vmatprep.subr.bf16.mxu0 0
  %88 = vmatpush1.bf16.msra.mxu0 0
  %89 = vmatprep.subr.bf16.mxu0 0
  %90 = vmatpush1.bf16.msra.mxu0 0
  %91 = vmatprep.subr.bf16.mxu0 0
  %92 = vmatpush1.bf16.msra.mxu0 0
  %93 = vmatprep.subr.bf16.mxu0 0
  %94 = vmatpush1.bf16.msra.mxu0 0
  %95 = vmatprep.subr.bf16.mxu0 %v74
  %96 = vmatpush1.bf16.msra.mxu0 %v73
  %97 = vmatprep.subr.bf16.mxu0 %v72
  %98 = vmatpush1.bf16.msra.mxu0 %v71
  %99 = vmatprep.subr.bf16.mxu0 0
  %100 = vmatpush2.bf16.msra.mxu0 0
  %101 = vmatprep.subr.bf16.mxu0 0
  %102 = vmatpush2.bf16.msra.mxu0 0
  %103 = vmatprep.subr.bf16.mxu0 0
  %104 = vmatpush2.bf16.msra.mxu0 0
  %105 = vmatprep.subr.bf16.mxu0 0
  %106 = vmatpush2.bf16.msra.mxu0 0
  %107 = vmatprep.subr.bf16.mxu0 0
  %108 = vmatpush2.bf16.msra.mxu0 0
  %109 = vmatprep.subr.bf16.mxu0 0
  %110 = vmatpush2.bf16.msra.mxu0 0
  %111 = vmatprep.subr.bf16.mxu0 0
  %112 = vmatpush2.bf16.msra.mxu0 0
  %113 = vmatprep.subr.bf16.mxu0 0
  %114 = vmatpush2.bf16.msra.mxu0 0
  %115 = vmatprep.mubr.bf16.mxu0 0
  %116 = vmatmul.mubr.bf16.gmra.mxu0 %v81
  %v117 = vpop.f32.mrf.mxu0
  %v118 = vadd.f32 0.0, %v117
  %v119 = vpop.f32.mrf.mxu0
  %v120 = vadd.f32 0.0, %v119
  %v121 = vpop.f32.mrf.mxu0
  %v122 = vpop.f32.mrf.mxu0
  %123 = vdwg.mxu0
  %v125 = vunpack.c.l.b16 %v21
  %v126 = vunpack.c.h.b16 %v21
  %v127 = vpack.c.b16 %v125, %v125
  %v128 = vpack.c.b16 %v126, %v126
  %v163 = vunpack.c.l.b16 %v22
  %v164 = vunpack.c.h.b16 %v22
  %v165 = vunpack.c.l.b16 %v23
  %v166 = vunpack.c.h.b16 %v23
  %v167 = vunpack.c.l.b16 %v24
  %v168 = vunpack.c.h.b16 %v24
  %v169 = vunpack.c.l.b16 %v25
  %v170 = vunpack.c.h.b16 %v25
  %v171 = vunpack.c.l.b16 %v26
  %v172 = vunpack.c.h.b16 %v26
  %v173 = vunpack.c.l.b16 %v27
  %v174 = vunpack.c.h.b16 %v27
  %v175 = vunpack.c.l.b16 %v28
  %v176 = vunpack.c.h.b16 %v28
  %v177 = vunpack.c.l.b16 %v29
  %v178 = vunpack.c.h.b16 %v29
  %v179 = vunpack.c.l.b16 %v30
  %v180 = vunpack.c.h.b16 %v30
  %v181 = vunpack.c.l.b16 %v31
  %v182 = vunpack.c.h.b16 %v31
  %v183 = vunpack.c.l.b16 %v32
  %v184 = vunpack.c.h.b16 %v32
  %v185 = vunpack.c.l.b16 %v33
  %v186 = vunpack.c.h.b16 %v33
  %v187 = vunpack.c.l.b16 %v34
  %v188 = vunpack.c.h.b16 %v34
  %v189 = vunpack.c.l.b16 %v35
  %v190 = vunpack.c.h.b16 %v35
  %v191 = vunpack.c.l.b16 %v36
  %v192 = vunpack.c.h.b16 %v36
  %v193 = vunpack.c.l.b16 %v37
  %v194 = vunpack.c.h.b16 %v37
  %v195 = vunpack.c.l.b16 %v38
  %v196 = vunpack.c.h.b16 %v38
  %v197 = vunpack.c.l.b16 %v39
  %v198 = vunpack.c.h.b16 %v39
  %v199 = vunpack.c.l.b16 %v40
  %v200 = vunpack.c.h.b16 %v40
  %v201 = vunpack.c.l.b16 %v41
  %v202 = vunpack.c.h.b16 %v41
  %v203 = vunpack.c.l.b16 %v42
  %v204 = vunpack.c.h.b16 %v42
  %v205 = vunpack.c.l.b16 %v43
  %v206 = vunpack.c.h.b16 %v43
  %v207 = vunpack.c.l.b16 %v44
  %v208 = vunpack.c.h.b16 %v44
  %v209 = vunpack.c.l.b16 %v45
  %v210 = vunpack.c.h.b16 %v45
  %v211 = vunpack.c.l.b16 %v46
  %v212 = vunpack.c.h.b16 %v46
  %v213 = vunpack.c.l.b16 %v47
  %v214 = vunpack.c.h.b16 %v47
  %v215 = vunpack.c.l.b16 %v48
  %v216 = vunpack.c.h.b16 %v48
  %v217 = vunpack.c.l.b16 %v49
  %v218 = vunpack.c.h.b16 %v49
  %v219 = vunpack.c.l.b16 %v50
  %v220 = vunpack.c.h.b16 %v50
  %v221 = vunpack.c.l.b16 %v51
  %v222 = vunpack.c.h.b16 %v51
  %v223 = vunpack.c.l.b16 %v52
  %v224 = vunpack.c.h.b16 %v52
  %v225 = vunpack.c.l.b16 %v53
  %v226 = vunpack.c.h.b16 %v53
  %v227 = vpack.c.b16 %v165, %v163
  %v228 = vpack.c.b16 %v166, %v164
  %v229 = vpack.c.b16 %v169, %v167
  %v230 = vpack.c.b16 %v170, %v168
  %v231 = vpack.c.b16 %v173, %v171
  %v232 = vpack.c.b16 %v174, %v172
  %v233 = vpack.c.b16 %v177, %v175
  %v234 = vpack.c.b16 %v178, %v176
  %v235 = vpack.c.b16 %v181, %v179
  %v236 = vpack.c.b16 %v182, %v180
  %v237 = vpack.c.b16 %v185, %v183
  %v238 = vpack.c.b16 %v186, %v184
  %v239 = vpack.c.b16 %v189, %v187
  %v240 = vpack.c.b16 %v190, %v188
  %v241 = vpack.c.b16 %v193, %v191
  %v242 = vpack.c.b16 %v194, %v192
  %v243 = vpack.c.b16 %v197, %v195
  %v244 = vpack.c.b16 %v198, %v196
  %v245 = vpack.c.b16 %v201, %v199
  %v246 = vpack.c.b16 %v202, %v200
  %v247 = vpack.c.b16 %v205, %v203
  %v248 = vpack.c.b16 %v206, %v204
  %v249 = vpack.c.b16 %v209, %v207
  %v250 = vpack.c.b16 %v210, %v208
  %v251 = vpack.c.b16 %v213, %v211
  %v252 = vpack.c.b16 %v214, %v212
  %v253 = vpack.c.b16 %v217, %v215
  %v254 = vpack.c.b16 %v218, %v216
  %v255 = vpack.c.b16 %v221, %v219
  %v256 = vpack.c.b16 %v222, %v220
  %v257 = vpack.c.b16 %v225, %v223
  %v258 = vpack.c.b16 %v226, %v224
  %291 = vmatprep.subr.bf16.mxu0 %v242
  %292 = vmatpush1.bf16.msra.mxu0 %v241
  %293 = vmatprep.subr.bf16.mxu0 %v240
  %294 = vmatpush1.bf16.msra.mxu0 %v239
  %295 = vmatprep.subr.bf16.mxu0 %v238
  %296 = vmatpush1.bf16.msra.mxu0 %v237
  %297 = vmatprep.subr.bf16.mxu0 %v236
  %298 = vmatpush1.bf16.msra.mxu0 %v235
  %299 = vmatprep.subr.bf16.mxu0 %v234
  %300 = vmatpush1.bf16.msra.mxu0 %v233
  %301 = vmatprep.subr.bf16.mxu0 %v232
  %302 = vmatpush1.bf16.msra.mxu0 %v231
  %303 = vmatprep.subr.bf16.mxu0 %v230
  %304 = vmatpush1.bf16.msra.mxu0 %v229
  %305 = vmatprep.subr.bf16.mxu0 %v228
  %306 = vmatpush1.bf16.msra.mxu0 %v227
  %307 = vmatprep.subr.bf16.mxu0 %v258
  %308 = vmatpush2.bf16.msra.mxu0 %v257
  %309 = vmatprep.subr.bf16.mxu0 %v256
  %310 = vmatpush2.bf16.msra.mxu0 %v255
  %311 = vmatprep.subr.bf16.mxu0 %v254
  %312 = vmatpush2.bf16.msra.mxu0 %v253
  %313 = vmatprep.subr.bf16.mxu0 %v252
  %314 = vmatpush2.bf16.msra.mxu0 %v251
  %315 = vmatprep.subr.bf16.mxu0 %v250
  %316 = vmatpush2.bf16.msra.mxu0 %v249
  %317 = vmatprep.subr.bf16.mxu0 %v248
  %318 = vmatpush2.bf16.msra.mxu0 %v247
  %319 = vmatprep.subr.bf16.mxu0 %v246
  %320 = vmatpush2.bf16.msra.mxu0 %v245
  %321 = vmatprep.subr.bf16.mxu0 %v244
  %322 = vmatpush2.bf16.msra.mxu0 %v243
  %323 = vmatprep.mubr.bf16.mxu0 %v128
  %324 = vmatmul.mubr.bf16.gmra.mxu0 %v127
  %v325 = vpop.f32.mrf.mxu0
  %v326 = vadd.f32 %v118, %v325
  %v327 = vpop.f32.mrf.mxu0
  %v328 = vadd.f32 %v120, %v327
  %v329 = vpop.f32.mrf.mxu0
  %v330 = vpop.f32.mrf.mxu0
  %331 = vdwg.mxu0
  %v332 = vld [vmem:[%s4] sm:$0x3]
  %v334 = vlaneseq
  %v335 = vshrl.u32 %v334, 7
  %v336 = vsub.s32 0, %v335
  %v337 = vrot.slane %v332, %v336
  %v338 = vlaneseq
  %v339 = vshrl.u32 %v338, 7
  %v340 = vsub.s32 1, %v339
  %v341 = vrot.slane %v332, %v340
  %v344 = vadd.f32 %v326, %v337
  %v345 = vadd.f32 %v328, %v341
  %346 = vst [vmem:[%s5] sm:$0xff] %v344
  %347 = vst [vmem:[%s5 + $0x8] sm:$0xff] %v345
  // Predicated region
  $region22: #{_global_former_impl.3} parent=0 // pred_check
    _
  $region23: #{_global_former_impl.3} parent=0 // pred_check_branch
    %349 = sbr.rel (0) target = $region25
  $region24: #{_global_former_impl.3} parent=0 // pred_region
    _
  $region25: #{_global_former_impl.3} parent=0 // pred_fallthru
    _
  // Predicated region
  $region26: #{_global_former_impl.3} parent=0 // pred_check
    _
  $region27: #{_global_former_impl.3} parent=0 // pred_check_branch
    %351 = sbr.rel (0) target = $region29
  $region28: #{_global_former_impl.3} parent=0 // pred_region
    _
  $region29: #{_global_former_impl.3} parent=0 // pred_fallthru
    _

// kernel: _global_former_impl.2
$region0: #{_global_former_impl.2}
  #allocation0 [shape = 'u32[]', space=smem, size = 0x4, offset = 0x4, fixed_abs, tag = 'smem constant byte address 0x4 - core index']
  #allocation1 [shape = 'u32[144,128]{1,0:T(1,128)}', space=vmem, size = 0x12000, scoped, tag = 'internal scratch']
  %s0 = inlined_call_operand.vmem [shape: f32[2,8,32], index: 0, kind: input, shape index: {}, may-alias: {0,1}]
  %s1 = inlined_call_operand.vmem [shape: f32[2,8,32], index: 1, kind: input, shape index: {}, may-alias: {0,1}]
  %s2 = inlined_call_operand.vmem [shape: f32[2,1,8], index: 2, kind: input, shape index: {}]
  %s3 = inlined_call_operand.vmem [shape: bf16[32,32], index: 3, kind: input, shape index: {}]
  %s4 = inlined_call_operand.vmem [shape: f32[1,32], index: 4, kind: input, shape index: {}]
  %s5 = inlined_call_operand.vmem [shape: bf16[32,64], index: 5, kind: input, shape index: {}]
  %s6 = inlined_call_operand.vmem [shape: f32[1,64], index: 6, kind: input, shape index: {}]
  %s7 = inlined_call_operand.vmem [shape: bf16[32,32], index: 7, kind: input, shape index: {}]
  %s8 = inlined_call_operand.vmem [shape: f32[1,32], index: 8, kind: input, shape index: {}]
  %s9 = inlined_call_operand.vmem [shape: f32[1,32], index: 9, kind: input, shape index: {}]
  %s10 = inlined_call_operand.vmem [shape: f32[1,32], index: 10, kind: input, shape index: {}]
  %s11 = inlined_call_operand.vmem [shape: f32[1,32], index: 11, kind: input, shape index: {}]
  %s12 = inlined_call_operand.vmem [shape: f32[1,32], index: 12, kind: input, shape index: {}]
  %s13 = inlined_call_operand.vmem [shape: bf16[32,2048], index: 13, kind: input, shape index: {}]
  %s14 = inlined_call_operand.vmem [shape: f32[1,2048], index: 14, kind: input, shape index: {}]
  %s15 = inlined_call_operand.vmem [shape: bf16[2048,32], index: 15, kind: input, shape index: {}]
  %s16 = inlined_call_operand.vmem [shape: f32[1,32], index: 16, kind: input, shape index: {}]
  %s17 = inlined_call_operand.vmem [shape: bf16[2,8,32], index: 17, kind: output, shape index: {}]
  %s18 = sld [smem:[#allocation0]]
  $region101: #{_global_former_impl.2} parent=0
    _
  %s20 = ssub.s32 1, %s18
  %s21 = scalar_select 0, %s20, %s18
  loop: start=0, step=1, limit=4
  $region2: #{_global_former_impl.2} parent=0 // loop_pre_header
    _
  $region3: #{_global_former_impl.2} parent=0 // loop_header
    %s23 = sphi 0, %s27
    %p24 = scmp.ge.s32.totalorder %s23, 4
    %s30 = sphi 0, %s42
    %s31 = sphi 0, %s38
    %s32 = sphi 0, %s30
    %s33 = sphi 0, %s31
    %s34 = sphi 0, %s32
    %s35 = sphi 0, %s33
    %s47 = sphi 0, %s49
    %s50 = sphi 0, %s47
    %s51 = sphi 0, %s50
    %s67 = sphi 0, %s51
    %s73 = sphi 0, %s75
    %s76 = sphi 0, %s73
    %s77 = sphi 0, %s76
    %s93 = sphi 0, %s77
    %s99 = sphi 0, %s101
    %s102 = sphi 0, %s99
    %s103 = sphi 0, %s102
    %s119 = sphi 0, %s103
    %s123 = sphi 0, %s123
    %s125 = sphi 0, %s123
    %s126 = sphi 0, %s125
    %s140 = sphi 0, %s126
    %s144 = sphi 0, %s144
    %s146 = sphi 0, %s144
    %s147 = sphi 0, %s146
    %s161 = sphi 0, %s147
    %s165 = sphi 0, %s165
    %s167 = sphi 0, %s165
    %s168 = sphi 0, %s167
    %s182 = sphi 0, %s168
    %s186 = sphi 0, %s186
    %s188 = sphi 0, %s186
    %s189 = sphi 0, %s188
    %s203 = sphi 0, %s189
    %s207 = sphi 0, %s207
    %s209 = sphi 0, %s207
    %s210 = sphi 0, %s209
    %s224 = sphi 0, %s210
    %s228 = sphi 0, %s228
    %s230 = sphi 0, %s228
    %s231 = sphi 0, %s230
    %s245 = sphi 0, %s231
    %s249 = sphi 0, %s249
    %s251 = sphi 0, %s249
    %s252 = sphi 0, %s251
    %s266 = sphi 0, %s252
    %s270 = sphi 0, %s270
    %s272 = sphi 0, %s270
    %s273 = sphi 0, %s272
    %s287 = sphi 0, %s273
    %s291 = sphi 0, %s291
    %s293 = sphi 0, %s291
    %s294 = sphi 0, %s293
    %s308 = sphi 0, %s294
    %s312 = sphi 0, %s312
    %s314 = sphi 0, %s312
    %s315 = sphi 0, %s314
    %s329 = sphi 0, %s315
    %s333 = sphi 0, %s333
    %s335 = sphi 0, %s333
    %s336 = sphi 0, %s335
    %s350 = sphi 0, %s336
    %s354 = sphi 0, %s354
    %s356 = sphi 0, %s354
    %s357 = sphi 0, %s356
    %s371 = sphi 0, %s357
    %s375 = sphi 0, %s375
    %s377 = sphi 0, %s375
    %s378 = sphi 0, %s377
    %s392 = sphi 0, %s378
    %s396 = sphi 0, %s396
    %s398 = sphi 0, %s396
    %s399 = sphi 0, %s398
    %s413 = sphi 0, %s399
    %s421 = sphi 0, %s423
    %s424 = sphi 0, %s421
    %s425 = sphi 0, %s424
    %s441 = sphi 0, %s425
  $region4: #{_global_former_impl.2} parent=0 // loop_header_branch
    %26 = sbr.rel (%p24) target = $region8
  $region5: #{_global_former_impl.2} parent=0 // loop_body
    %s28 = ssub.s32 %s23, 1
    %s29 = ssub.s32 %s23, 2
    %s36 = sadd.s32 1, %s31
    %p37 = scmp.ge.s32.totalorder %s36, 1
    %s38 = scalar_select %p37, 0, %s36
    %s39 = sadd.s32 1, %s30
    %s40 = scalar_select %p37, %s39, %s30
    %p41 = scmp.ge.s32.totalorder %s40, 2
    %s42 = scalar_select %p41, 0, %s40
    %s43 = ssub.s32 %s30, %s42
    %s44 = ssub.s32 %s31, %s38
    %s45 = sor.u32 %s43, %s44
    %p46 = scmp.eq.s32.totalorder %s45, 0
    %s48 = sadd.s32 %s47, 1
    %s49 = scalar_select %p46, %s47, %s48
    %p52 = pneg %p46
    %p53 = scmp.eq.s32.totalorder %s23, 1
    %p54 = por %p52, %p53
    %p55 = scmp.ne.s32.totalorder %s47, %s50
    %p56 = scmp.eq.s32.totalorder %s23, 0
    %p57 = por %p55, %p56
    %p58 = scmp.ne.s32.totalorder %s47, %s50
    %p59 = scmp.eq.s32.totalorder %s28, 1
    %p60 = por %p58, %p59
    %p61 = scmp.ne.s32.totalorder %s50, %s51
    %p62 = scmp.eq.s32.totalorder %s28, 0
    %p63 = por %p61, %p62
    %p64 = scmp.ne.s32.totalorder %s50, %s51
    %p65 = scmp.eq.s32.totalorder %s29, 1
    %p66 = por %p64, %p65
    %p68 = scmp.ne.s32.totalorder %s51, %s67
    %p69 = scmp.eq.s32.totalorder %s29, 0
    %p70 = por %p68, %p69
    %s71 = ssub.s32 %s30, %s42
    %p72 = scmp.eq.s32.totalorder %s71, 0
    %s74 = sadd.s32 %s73, 1
    %s75 = scalar_select %p72, %s73, %s74
    %p78 = pneg %p72
    %p79 = scmp.eq.s32.totalorder %s23, 1
    %p80 = por %p78, %p79
    %p81 = scmp.ne.s32.totalorder %s73, %s76
    %p82 = scmp.eq.s32.totalorder %s23, 0
    %p83 = por %p81, %p82
    %p84 = scmp.ne.s32.totalorder %s73, %s76
    %p85 = scmp.eq.s32.totalorder %s28, 1
    %p86 = por %p84, %p85
    %p87 = scmp.ne.s32.totalorder %s76, %s77
    %p88 = scmp.eq.s32.totalorder %s28, 0
    %p89 = por %p87, %p88
    %p90 = scmp.ne.s32.totalorder %s76, %s77
    %p91 = scmp.eq.s32.totalorder %s29, 1
    %p92 = por %p90, %p91
    %p94 = scmp.ne.s32.totalorder %s77, %s93
    %p95 = scmp.eq.s32.totalorder %s29, 0
    %p96 = por %p94, %p95
    %s97 = ssub.s32 %s30, %s42
    %p98 = scmp.eq.s32.totalorder %s97, 0
    %s100 = sadd.s32 %s99, 1
    %s101 = scalar_select %p98, %s99, %s100
    %p104 = pneg %p98
    %p105 = scmp.eq.s32.totalorder %s23, 1
    %p106 = por %p104, %p105
    %p107 = scmp.ne.s32.totalorder %s99, %s102
    %p108 = scmp.eq.s32.totalorder %s23, 0
    %p109 = por %p107, %p108
    %p110 = scmp.ne.s32.totalorder %s99, %s102
    %p111 = scmp.eq.s32.totalorder %s28, 1
    %p112 = por %p110, %p111
    %p113 = scmp.ne.s32.totalorder %s102, %s103
    %p114 = scmp.eq.s32.totalorder %s28, 0
    %p115 = por %p113, %p114
    %p116 = scmp.ne.s32.totalorder %s102, %s103
    %p117 = scmp.eq.s32.totalorder %s29, 1
    %p118 = por %p116, %p117
    %p120 = scmp.ne.s32.totalorder %s103, %s119
    %p121 = scmp.eq.s32.totalorder %s29, 0
    %p122 = por %p120, %p121
    %s124 = sadd.s32 %s123, 1
    %p127 = scmp.eq.s32.totalorder %s23, 1
    %p128 = scmp.ne.s32.totalorder %s123, %s125
    %p129 = scmp.eq.s32.totalorder %s23, 0
    %p130 = por %p128, %p129
    %p131 = scmp.ne.s32.totalorder %s123, %s125
    %p132 = scmp.eq.s32.totalorder %s28, 1
    %p133 = por %p131, %p132
    %p134 = scmp.ne.s32.totalorder %s125, %s126
    %p135 = scmp.eq.s32.totalorder %s28, 0
    %p136 = por %p134, %p135
    %p137 = scmp.ne.s32.totalorder %s125, %s126
    %p138 = scmp.eq.s32.totalorder %s29, 1
    %p139 = por %p137, %p138
    %p141 = scmp.ne.s32.totalorder %s126, %s140
    %p142 = scmp.eq.s32.totalorder %s29, 0
    %p143 = por %p141, %p142
    %s145 = sadd.s32 %s144, 1
    %p148 = scmp.eq.s32.totalorder %s23, 1
    %p149 = scmp.ne.s32.totalorder %s144, %s146
    %p150 = scmp.eq.s32.totalorder %s23, 0
    %p151 = por %p149, %p150
    %p152 = scmp.ne.s32.totalorder %s144, %s146
    %p153 = scmp.eq.s32.totalorder %s28, 1
    %p154 = por %p152, %p153
    %p155 = scmp.ne.s32.totalorder %s146, %s147
    %p156 = scmp.eq.s32.totalorder %s28, 0
    %p157 = por %p155, %p156
    %p158 = scmp.ne.s32.totalorder %s146, %s147
    %p159 = scmp.eq.s32.totalorder %s29, 1
    %p160 = por %p158, %p159
    %p162 = scmp.ne.s32.totalorder %s147, %s161
    %p163 = scmp.eq.s32.totalorder %s29, 0
    %p164 = por %p162, %p163
    %s166 = sadd.s32 %s165, 1
    %p169 = scmp.eq.s32.totalorder %s23, 1
    %p170 = scmp.ne.s32.totalorder %s165, %s167
    %p171 = scmp.eq.s32.totalorder %s23, 0
    %p172 = por %p170, %p171
    %p173 = scmp.ne.s32.totalorder %s165, %s167
    %p174 = scmp.eq.s32.totalorder %s28, 1
    %p175 = por %p173, %p174
    %p176 = scmp.ne.s32.totalorder %s167, %s168
    %p177 = scmp.eq.s32.totalorder %s28, 0
    %p178 = por %p176, %p177
    %p179 = scmp.ne.s32.totalorder %s167, %s168
    %p180 = scmp.eq.s32.totalorder %s29, 1
    %p181 = por %p179, %p180
    %p183 = scmp.ne.s32.totalorder %s168, %s182
    %p184 = scmp.eq.s32.totalorder %s29, 0
    %p185 = por %p183, %p184
    %s187 = sadd.s32 %s186, 1
    %p190 = scmp.eq.s32.totalorder %s23, 1
    %p191 = scmp.ne.s32.totalorder %s186, %s188
    %p192 = scmp.eq.s32.totalorder %s23, 0
    %p193 = por %p191, %p192
    %p194 = scmp.ne.s32.totalorder %s186, %s188
    %p195 = scmp.eq.s32.totalorder %s28, 1
    %p196 = por %p194, %p195
    %p197 = scmp.ne.s32.totalorder %s188, %s189
    %p198 = scmp.eq.s32.totalorder %s28, 0
    %p199 = por %p197, %p198
    %p200 = scmp.ne.s32.totalorder %s188, %s189
    %p201 = scmp.eq.s32.totalorder %s29, 1
    %p202 = por %p200, %p201
    %p204 = scmp.ne.s32.totalorder %s189, %s203
    %p205 = scmp.eq.s32.totalorder %s29, 0
    %p206 = por %p204, %p205
    %s208 = sadd.s32 %s207, 1
    %p211 = scmp.eq.s32.totalorder %s23, 1
    %p212 = scmp.ne.s32.totalorder %s207, %s209
    %p213 = scmp.eq.s32.totalorder %s23, 0
    %p214 = por %p212, %p213
    %p215 = scmp.ne.s32.totalorder %s207, %s209
    %p216 = scmp.eq.s32.totalorder %s28, 1
    %p217 = por %p215, %p216
    %p218 = scmp.ne.s32.totalorder %s209, %s210
    %p219 = scmp.eq.s32.totalorder %s28, 0
    %p220 = por %p218, %p219
    %p221 = scmp.ne.s32.totalorder %s209, %s210
    %p222 = scmp.eq.s32.totalorder %s29, 1
    %p223 = por %p221, %p222
    %p225 = scmp.ne.s32.totalorder %s210, %s224
    %p226 = scmp.eq.s32.totalorder %s29, 0
    %p227 = por %p225, %p226
    %s229 = sadd.s32 %s228, 1
    %p232 = scmp.eq.s32.totalorder %s23, 1
    %p233 = scmp.ne.s32.totalorder %s228, %s230
    %p234 = scmp.eq.s32.totalorder %s23, 0
    %p235 = por %p233, %p234
    %p236 = scmp.ne.s32.totalorder %s228, %s230
    %p237 = scmp.eq.s32.totalorder %s28, 1
    %p238 = por %p236, %p237
    %p239 = scmp.ne.s32.totalorder %s230, %s231
    %p240 = scmp.eq.s32.totalorder %s28, 0
    %p241 = por %p239, %p240
    %p242 = scmp.ne.s32.totalorder %s230, %s231
    %p243 = scmp.eq.s32.totalorder %s29, 1
    %p244 = por %p242, %p243
    %p246 = scmp.ne.s32.totalorder %s231, %s245
    %p247 = scmp.eq.s32.totalorder %s29, 0
    %p248 = por %p246, %p247
    %s250 = sadd.s32 %s249, 1
    %p253 = scmp.eq.s32.totalorder %s23, 1
    %p254 = scmp.ne.s32.totalorder %s249, %s251
    %p255 = scmp.eq.s32.totalorder %s23, 0
    %p256 = por %p254, %p255
    %p257 = scmp.ne.s32.totalorder %s249, %s251
    %p258 = scmp.eq.s32.totalorder %s28, 1
    %p259 = por %p257, %p258
    %p260 = scmp.ne.s32.totalorder %s251, %s252
    %p261 = scmp.eq.s32.totalorder %s28, 0
    %p262 = por %p260, %p261
    %p263 = scmp.ne.s32.totalorder %s251, %s252
    %p264 = scmp.eq.s32.totalorder %s29, 1
    %p265 = por %p263, %p264
    %p267 = scmp.ne.s32.totalorder %s252, %s266
    %p268 = scmp.eq.s32.totalorder %s29, 0
    %p269 = por %p267, %p268
    %s271 = sadd.s32 %s270, 1
    %p274 = scmp.eq.s32.totalorder %s23, 1
    %p275 = scmp.ne.s32.totalorder %s270, %s272
    %p276 = scmp.eq.s32.totalorder %s23, 0
    %p277 = por %p275, %p276
    %p278 = scmp.ne.s32.totalorder %s270, %s272
    %p279 = scmp.eq.s32.totalorder %s28, 1
    %p280 = por %p278, %p279
    %p281 = scmp.ne.s32.totalorder %s272, %s273
    %p282 = scmp.eq.s32.totalorder %s28, 0
    %p283 = por %p281, %p282
    %p284 = scmp.ne.s32.totalorder %s272, %s273
    %p285 = scmp.eq.s32.totalorder %s29, 1
    %p286 = por %p284, %p285
    %p288 = scmp.ne.s32.totalorder %s273, %s287
    %p289 = scmp.eq.s32.totalorder %s29, 0
    %p290 = por %p288, %p289
    %s292 = sadd.s32 %s291, 1
    %p295 = scmp.eq.s32.totalorder %s23, 1
    %p296 = scmp.ne.s32.totalorder %s291, %s293
    %p297 = scmp.eq.s32.totalorder %s23, 0
    %p298 = por %p296, %p297
    %p299 = scmp.ne.s32.totalorder %s291, %s293
    %p300 = scmp.eq.s32.totalorder %s28, 1
    %p301 = por %p299, %p300
    %p302 = scmp.ne.s32.totalorder %s293, %s294
    %p303 = scmp.eq.s32.totalorder %s28, 0
    %p304 = por %p302, %p303
    %p305 = scmp.ne.s32.totalorder %s293, %s294
    %p306 = scmp.eq.s32.totalorder %s29, 1
    %p307 = por %p305, %p306
    %p309 = scmp.ne.s32.totalorder %s294, %s308
    %p310 = scmp.eq.s32.totalorder %s29, 0
    %p311 = por %p309, %p310
    %s313 = sadd.s32 %s312, 1
    %p316 = scmp.eq.s32.totalorder %s23, 1
    %p317 = scmp.ne.s32.totalorder %s312, %s314
    %p318 = scmp.eq.s32.totalorder %s23, 0
    %p319 = por %p317, %p318
    %p320 = scmp.ne.s32.totalorder %s312, %s314
    %p321 = scmp.eq.s32.totalorder %s28, 1
    %p322 = por %p320, %p321
    %p323 = scmp.ne.s32.totalorder %s314, %s315
    %p324 = scmp.eq.s32.totalorder %s28, 0
    %p325 = por %p323, %p324
    %p326 = scmp.ne.s32.totalorder %s314, %s315
    %p327 = scmp.eq.s32.totalorder %s29, 1
    %p328 = por %p326, %p327
    %p330 = scmp.ne.s32.totalorder %s315, %s329
    %p331 = scmp.eq.s32.totalorder %s29, 0
    %p332 = por %p330, %p331
    %s334 = sadd.s32 %s333, 1
    %p337 = scmp.eq.s32.totalorder %s23, 1
    %p338 = scmp.ne.s32.totalorder %s333, %s335
    %p339 = scmp.eq.s32.totalorder %s23, 0
    %p340 = por %p338, %p339
    %p341 = scmp.ne.s32.totalorder %s333, %s335
    %p342 = scmp.eq.s32.totalorder %s28, 1
    %p343 = por %p341, %p342
    %p344 = scmp.ne.s32.totalorder %s335, %s336
    %p345 = scmp.eq.s32.totalorder %s28, 0
    %p346 = por %p344, %p345
    %p347 = scmp.ne.s32.totalorder %s335, %s336
    %p348 = scmp.eq.s32.totalorder %s29, 1
    %p349 = por %p347, %p348
    %p351 = scmp.ne.s32.totalorder %s336, %s350
    %p352 = scmp.eq.s32.totalorder %s29, 0
    %p353 = por %p351, %p352
    %s355 = sadd.s32 %s354, 1
    %p358 = scmp.eq.s32.totalorder %s23, 1
    %p359 = scmp.ne.s32.totalorder %s354, %s356
    %p360 = scmp.eq.s32.totalorder %s23, 0
    %p361 = por %p359, %p360
    %p362 = scmp.ne.s32.totalorder %s354, %s356
    %p363 = scmp.eq.s32.totalorder %s28, 1
    %p364 = por %p362, %p363
    %p365 = scmp.ne.s32.totalorder %s356, %s357
    %p366 = scmp.eq.s32.totalorder %s28, 0
    %p367 = por %p365, %p366
    %p368 = scmp.ne.s32.totalorder %s356, %s357
    %p369 = scmp.eq.s32.totalorder %s29, 1
    %p370 = por %p368, %p369
    %p372 = scmp.ne.s32.totalorder %s357, %s371
    %p373 = scmp.eq.s32.totalorder %s29, 0
    %p374 = por %p372, %p373
    %s376 = sadd.s32 %s375, 1
    %p379 = scmp.eq.s32.totalorder %s23, 1
    %p380 = scmp.ne.s32.totalorder %s375, %s377
    %p381 = scmp.eq.s32.totalorder %s23, 0
    %p382 = por %p380, %p381
    %p383 = scmp.ne.s32.totalorder %s375, %s377
    %p384 = scmp.eq.s32.totalorder %s28, 1
    %p385 = por %p383, %p384
    %p386 = scmp.ne.s32.totalorder %s377, %s378
    %p387 = scmp.eq.s32.totalorder %s28, 0
    %p388 = por %p386, %p387
    %p389 = scmp.ne.s32.totalorder %s377, %s378
    %p390 = scmp.eq.s32.totalorder %s29, 1
    %p391 = por %p389, %p390
    %p393 = scmp.ne.s32.totalorder %s378, %s392
    %p394 = scmp.eq.s32.totalorder %s29, 0
    %p395 = por %p393, %p394
    %s397 = sadd.s32 %s396, 1
    %p400 = scmp.eq.s32.totalorder %s23, 1
    %p401 = scmp.ne.s32.totalorder %s396, %s398
    %p402 = scmp.eq.s32.totalorder %s23, 0
    %p403 = por %p401, %p402
    %p404 = scmp.ne.s32.totalorder %s396, %s398
    %p405 = scmp.eq.s32.totalorder %s28, 1
    %p406 = por %p404, %p405
    %p407 = scmp.ne.s32.totalorder %s398, %s399
    %p408 = scmp.eq.s32.totalorder %s28, 0
    %p409 = por %p407, %p408
    %p410 = scmp.ne.s32.totalorder %s398, %s399
    %p411 = scmp.eq.s32.totalorder %s29, 1
    %p412 = por %p410, %p411
    %p414 = scmp.ne.s32.totalorder %s399, %s413
    %p415 = scmp.eq.s32.totalorder %s29, 0
    %p416 = por %p414, %p415
    %s417 = ssub.s32 %s30, %s42
    %s418 = ssub.s32 %s31, %s38
    %s419 = sor.u32 %s417, %s418
    %p420 = scmp.eq.s32.totalorder %s419, 0
    %s422 = sadd.s32 %s421, 1
    %s423 = scalar_select %p420, %s421, %s422
    %p426 = pneg %p420
    %p427 = scmp.eq.s32.totalorder %s23, 1
    %p428 = por %p426, %p427
    %p429 = scmp.ne.s32.totalorder %s421, %s424
    %p430 = scmp.eq.s32.totalorder %s23, 0
    %p431 = por %p429, %p430
    %p432 = scmp.ne.s32.totalorder %s421, %s424
    %p433 = scmp.eq.s32.totalorder %s28, 1
    %p434 = por %p432, %p433
    %p435 = scmp.ne.s32.totalorder %s424, %s425
    %p436 = scmp.eq.s32.totalorder %s28, 0
    %p437 = por %p435, %p436
    %p438 = scmp.ne.s32.totalorder %s424, %s425
    %p439 = scmp.eq.s32.totalorder %s29, 1
    %p440 = por %p438, %p439
    %p442 = scmp.ne.s32.totalorder %s425, %s441
    %p443 = scmp.eq.s32.totalorder %s29, 0
    %p444 = por %p442, %p443
    %p445 = scmp.le.s32.totalorder 1, %s23
    %p446 = scmp.lt.s32.totalorder %s23, 3
    %p447 = pnand %p445, %p446
    %p448 = pneg %p447
    // Predicated region
    $region9: #{_global_former_impl.2} parent=5 // pred_check
      _
    $region10: #{_global_former_impl.2} parent=5 // pred_check_branch
      %450 = sbr.rel (%p447) target = $region12
    $region11: #{_global_former_impl.2} parent=5 // pred_region
      %s451 = ssub.s32 %s23, 1
      // Predicated region
      $region13: #{_global_former_impl.2} parent=11 // pred_check
        %p452 = pneg %p136
      $region14: #{_global_former_impl.2} parent=11 // pred_check_branch
        %454 = sbr.rel (%p452) target = $region16
      $region15: #{_global_former_impl.2} parent=11 // pred_region
        _
      $region16: #{_global_former_impl.2} parent=11 // pred_fallthru
        _
      // Predicated region
      $region17: #{_global_former_impl.2} parent=11 // pred_check
        %p455 = pneg %p157
      $region18: #{_global_former_impl.2} parent=11 // pred_check_branch
        %457 = sbr.rel (%p455) target = $region20
      $region19: #{_global_former_impl.2} parent=11 // pred_region
        _
      $region20: #{_global_former_impl.2} parent=11 // pred_fallthru
        _
      // Predicated region
      $region21: #{_global_former_impl.2} parent=11 // pred_check
        %p458 = pneg %p178
      $region22: #{_global_former_impl.2} parent=11 // pred_check_branch
        %460 = sbr.rel (%p458) target = $region24
      $region23: #{_global_former_impl.2} parent=11 // pred_region
        _
      $region24: #{_global_former_impl.2} parent=11 // pred_fallthru
        _
      // Predicated region
      $region25: #{_global_former_impl.2} parent=11 // pred_check
        %p461 = pneg %p199
      $region26: #{_global_former_impl.2} parent=11 // pred_check_branch
        %463 = sbr.rel (%p461) target = $region28
      $region27: #{_global_former_impl.2} parent=11 // pred_region
        _
      $region28: #{_global_former_impl.2} parent=11 // pred_fallthru
        _
      // Predicated region
      $region29: #{_global_former_impl.2} parent=11 // pred_check
        %p464 = pneg %p220
      $region30: #{_global_former_impl.2} parent=11 // pred_check_branch
        %466 = sbr.rel (%p464) target = $region32
      $region31: #{_global_former_impl.2} parent=11 // pred_region
        _
      $region32: #{_global_former_impl.2} parent=11 // pred_fallthru
        _
      // Predicated region
      $region33: #{_global_former_impl.2} parent=11 // pred_check
        %p467 = pneg %p241
      $region34: #{_global_former_impl.2} parent=11 // pred_check_branch
        %469 = sbr.rel (%p467) target = $region36
      $region35: #{_global_former_impl.2} parent=11 // pred_region
        _
      $region36: #{_global_former_impl.2} parent=11 // pred_fallthru
        _
      // Predicated region
      $region37: #{_global_former_impl.2} parent=11 // pred_check
        %p470 = pneg %p262
      $region38: #{_global_former_impl.2} parent=11 // pred_check_branch
        %472 = sbr.rel (%p470) target = $region40
      $region39: #{_global_former_impl.2} parent=11 // pred_region
        _
      $region40: #{_global_former_impl.2} parent=11 // pred_fallthru
        _
      // Predicated region
      $region41: #{_global_former_impl.2} parent=11 // pred_check
        %p473 = pneg %p283
      $region42: #{_global_former_impl.2} parent=11 // pred_check_branch
        %475 = sbr.rel (%p473) target = $region44
      $region43: #{_global_former_impl.2} parent=11 // pred_region
        _
      $region44: #{_global_former_impl.2} parent=11 // pred_fallthru
        _
      // Predicated region
      $region45: #{_global_former_impl.2} parent=11 // pred_check
        %p476 = pneg %p304
      $region46: #{_global_former_impl.2} parent=11 // pred_check_branch
        %478 = sbr.rel (%p476) target = $region48
      $region47: #{_global_former_impl.2} parent=11 // pred_region
        _
      $region48: #{_global_former_impl.2} parent=11 // pred_fallthru
        _
      // Predicated region
      $region49: #{_global_former_impl.2} parent=11 // pred_check
        %p479 = pneg %p325
      $region50: #{_global_former_impl.2} parent=11 // pred_check_branch
        %481 = sbr.rel (%p479) target = $region52
      $region51: #{_global_former_impl.2} parent=11 // pred_region
        _
      $region52: #{_global_former_impl.2} parent=11 // pred_fallthru
        _
      // Predicated region
      $region53: #{_global_former_impl.2} parent=11 // pred_check
        %p482 = pneg %p346
      $region54: #{_global_former_impl.2} parent=11 // pred_check_branch
        %484 = sbr.rel (%p482) target = $region56
      $region55: #{_global_former_impl.2} parent=11 // pred_region
        _
      $region56: #{_global_former_impl.2} parent=11 // pred_fallthru
        _
      // Predicated region
      $region57: #{_global_former_impl.2} parent=11 // pred_check
        %p485 = pneg %p367
      $region58: #{_global_former_impl.2} parent=11 // pred_check_branch
        %487 = sbr.rel (%p485) target = $region60
      $region59: #{_global_former_impl.2} parent=11 // pred_region
        _
      $region60: #{_global_former_impl.2} parent=11 // pred_fallthru
        _
      // Predicated region
      $region61: #{_global_former_impl.2} parent=11 // pred_check
        %p488 = pneg %p388
      $region62: #{_global_former_impl.2} parent=11 // pred_check_branch
        %490 = sbr.rel (%p488) target = $region64
      $region63: #{_global_former_impl.2} parent=11 // pred_region
        _
      $region64: #{_global_former_impl.2} parent=11 // pred_fallthru
        _
      // Predicated region
      $region65: #{_global_former_impl.2} parent=11 // pred_check
        %p491 = pneg %p409
      $region66: #{_global_former_impl.2} parent=11 // pred_check_branch
        %493 = sbr.rel (%p491) target = $region68
      $region67: #{_global_former_impl.2} parent=11 // pred_region
        _
      $region68: #{_global_former_impl.2} parent=11 // pred_fallthru
        _
    $region12: #{_global_former_impl.2} parent=5 // pred_fallthru
      _
    %p494 = scmp.lt.s32.totalorder %s23, 2
    // Predicated region
    $region69: #{_global_former_impl.2} parent=5 // pred_check
      %p495 = pneg %p494
    $region70: #{_global_former_impl.2} parent=5 // pred_check_branch
      %497 = sbr.rel (%p495) target = $region72
    $region71: #{_global_former_impl.2} parent=5 // pred_region
      // Predicated region
      $region73: #{_global_former_impl.2} parent=71 // pred_check
        %p498 = pneg %p57
      $region74: #{_global_former_impl.2} parent=71 // pred_check_branch
        %500 = sbr.rel (%p498) target = $region76
      $region75: #{_global_former_impl.2} parent=71 // pred_region
        %p501 = scmp.lt.s32.totalorder %s30, 1
        %s502 = scalar_select %p501, %s30, 1
        %p503 = scmp.lt.s32.totalorder %s31, 0
        %s504 = scalar_select %p503, %s31, 0
        %s505 = sadd.s32 %s504, %s502
        %s506 = smul.addr %s505, 8
        %s507 = scalar_lea.vmem %s0, %s506
      $region76: #{_global_former_impl.2} parent=71 // pred_fallthru
        _
      // Predicated region
      $region77: #{_global_former_impl.2} parent=71 // pred_check
        %p508 = pneg %p83
      $region78: #{_global_former_impl.2} parent=71 // pred_check_branch
        %510 = sbr.rel (%p508) target = $region80
      $region79: #{_global_former_impl.2} parent=71 // pred_region
        %p511 = scmp.lt.s32.totalorder %s30, 1
        %s512 = scalar_select %p511, %s30, 1
        %s513 = smul.addr %s512, 8
        %s514 = scalar_lea.vmem %s1, %s513
      $region80: #{_global_former_impl.2} parent=71 // pred_fallthru
        _
      // Predicated region
      $region81: #{_global_former_impl.2} parent=71 // pred_check
        %p515 = pneg %p109
      $region82: #{_global_former_impl.2} parent=71 // pred_check_branch
        %517 = sbr.rel (%p515) target = $region84
      $region83: #{_global_former_impl.2} parent=71 // pred_region
        %p518 = scmp.lt.s32.totalorder %s30, 1
        %s519 = scalar_select %p518, %s30, 1
        %s520 = scalar_lea.vmem %s2, %s519
      $region84: #{_global_former_impl.2} parent=71 // pred_fallthru
        _
    $region72: #{_global_former_impl.2} parent=5 // pred_fallthru
      _
    %p521 = scmp.le.s32.totalorder 1, %s23
    %p522 = scmp.lt.s32.totalorder %s23, 3
    %p523 = pnand %p521, %p522
    %p524 = pneg %p523
    // Predicated region
    $region85: #{_global_former_impl.2} parent=5 // pred_check
      _
    $region86: #{_global_former_impl.2} parent=5 // pred_check_branch
      %526 = sbr.rel (%p523) target = $region88
    $region87: #{_global_former_impl.2} parent=5 // pred_region
      %s527 = ssub.s32 %s23, 1
      %p528 = scmp.lt.s32.totalorder %s32, 1
      %s529 = scalar_select %p528, %s32, 1
      %p530 = scmp.lt.s32.totalorder %s33, 0
      %s531 = scalar_select %p530, %s33, 0
      %s532 = sadd.s32 %s531, %s529
      %s533 = smul.addr %s532, 8
      %s534 = scalar_lea.vmem %s0, %s533
      %p535 = pneg %p63
      %p536 = pneg %p60
      %p537 = scmp.lt.s32.totalorder %s32, 1
      %s538 = scalar_select %p537, %s32, 1
      %s539 = smul.addr %s538, 8
      %s540 = scalar_lea.vmem %s1, %s539
      %p541 = pneg %p89
      %p542 = pneg %p86
      %p543 = scmp.lt.s32.totalorder %s32, 1
      %s544 = scalar_select %p543, %s32, 1
      %s545 = scalar_lea.vmem %s2, %s544
      %p546 = pneg %p115
      %p547 = pneg %p112
      %p548 = pneg %p136
      %p549 = pneg %p133
      %p550 = pneg %p157
      %p551 = pneg %p154
      %p552 = pneg %p178
      %p553 = pneg %p175
      %p554 = pneg %p199
      %p555 = pneg %p196
      %p556 = pneg %p220
      %p557 = pneg %p217
      %p558 = pneg %p241
      %p559 = pneg %p238
      %p560 = pneg %p262
      %p561 = pneg %p259
      %p562 = pneg %p283
      %p563 = pneg %p280
      %p564 = pneg %p304
      %p565 = pneg %p301
      %p566 = pneg %p325
      %p567 = pneg %p322
      %p568 = pneg %p346
      %p569 = pneg %p343
      %p570 = pneg %p367
      %p571 = pneg %p364
      %p572 = pneg %p388
      %p573 = pneg %p385
      %p574 = pneg %p409
      %p575 = pneg %p406
      %p576 = pneg %p437
      %p577 = pneg %p434
      %p578 = scmp.lt.s32.totalorder %s32, 1
      %s579 = scalar_select %p578, %s32, 1
      %p580 = scmp.lt.s32.totalorder %s33, 0
      %s581 = scalar_select %p580, %s33, 0
      %s582 = sadd.s32 %s581, %s579
      %s583 = smul.addr %s582, 4
      %s584 = scalar_lea.vmem %s17, %s583
      %p585 = scmp.lt.s32.totalorder %s32, 1
      %s586 = scalar_select %p585, %s32, 1
      %p587 = scmp.lt.s32.totalorder %s33, 0
      %s588 = scalar_select %p587, %s33, 0
      %s589 = sadd.s32 %s588, %s586
      %s590 = smul.addr %s589, 8
      %s591 = scalar_lea.vmem %s0, %s590
      %p592 = scmp.lt.s32.totalorder %s32, 1
      %s593 = scalar_select %p592, %s32, 1
      %s594 = smul.addr %s593, 8
      %s595 = scalar_lea.vmem %s1, %s594
      %p596 = scmp.lt.s32.totalorder %s32, 1
      %s597 = scalar_select %p596, %s32, 1
      %s598 = scalar_lea.vmem %s2, %s597
      %p599 = scmp.lt.s32.totalorder %s32, 1
      %s600 = scalar_select %p599, %s32, 1
      %p601 = scmp.lt.s32.totalorder %s33, 0
      %s602 = scalar_select %p601, %s33, 0
      %s603 = sadd.s32 %s602, %s600
      %s604 = smul.addr %s603, 4
      %s605 = scalar_lea.vmem %s17, %s604
      %v607 = vld [vmem:[%s591] sm:$0xff]
      %v608 = vld [vmem:[%s595] sm:$0xff]
      %v609 = vpack.c.bf16 %v607, %v607
      %v610 = vld [vmem:[%s3] sm:$0xf]
      %v611 = vld [vmem:[%s3 + $0x4] sm:$0xf]
      %v612 = vld [vmem:[%s3 + $0x8] sm:$0xf]
      %v613 = vld [vmem:[%s3 + $0xc] sm:$0xf]
      %v614 = vld [vmem:[%s4] sm:$0x1]
      %v616 = vlaneseq
      %v617 = vshrl.u32 %v616, 7
      %v618 = vsub.s32 0, %v617
      %v619 = vrot.slane %v614, %v618
      %v625 = vunpack.c.l.b16 %v610
      %v626 = vunpack.c.l.b16 %v611
      %v627 = vunpack.c.l.b16 %v612
      %v628 = vunpack.c.l.b16 %v613
      %v629 = vpack.c.b16 %v626, %v625
      %v630 = vpack.c.b16 %v628, %v627
      %vm633 = vcmask 261120
      %v635 = vsel %vm633, %v609, 0
      %637 = vmatprep.subr.bf16.mxu0 0
      %638 = vmatpush1.bf16.msra.mxu0 0
      %639 = vmatprep.subr.bf16.mxu0 0
      %640 = vmatpush1.bf16.msra.mxu0 0
      %641 = vmatprep.subr.bf16.mxu0 0
      %642 = vmatpush1.bf16.msra.mxu0 0
      %643 = vmatprep.subr.bf16.mxu0 0
      %644 = vmatpush1.bf16.msra.mxu0 0
      %645 = vmatprep.subr.bf16.mxu0 0
      %646 = vmatpush1.bf16.msra.mxu0 0
      %647 = vmatprep.subr.bf16.mxu0 0
      %648 = vmatpush1.bf16.msra.mxu0 0
      %649 = vmatprep.subr.bf16.mxu0 0
      %650 = vmatpush1.bf16.msra.mxu0 %v630
      %651 = vmatprep.subr.bf16.mxu0 0
      %652 = vmatpush1.bf16.msra.mxu0 %v629
      %653 = vmatprep.subr.bf16.mxu0 0
      %654 = vmatpush2.bf16.msra.mxu0 0
      %655 = vmatprep.subr.bf16.mxu0 0
      %656 = vmatpush2.bf16.msra.mxu0 0
      %657 = vmatprep.subr.bf16.mxu0 0
      %658 = vmatpush2.bf16.msra.mxu0 0
      %659 = vmatprep.subr.bf16.mxu0 0
      %660 = vmatpush2.bf16.msra.mxu0 0
      %661 = vmatprep.subr.bf16.mxu0 0
      %662 = vmatpush2.bf16.msra.mxu0 0
      %663 = vmatprep.subr.bf16.mxu0 0
      %664 = vmatpush2.bf16.msra.mxu0 0
      %665 = vmatprep.subr.bf16.mxu0 0
      %666 = vmatpush2.bf16.msra.mxu0 0
      %667 = vmatprep.subr.bf16.mxu0 0
      %668 = vmatpush2.bf16.msra.mxu0 0
      %669 = vmatprep.mubr.bf16.mxu0 0
      %670 = vmatmul.mubr.bf16.gmra.mxu0 %v635
      %v671 = vpop.f32.mrf.mxu0
      %v672 = vadd.f32 %v619, %v671
      %v673 = vpop.f32.mrf.mxu0
      %v674 = vpop.f32.mrf.mxu0
      %v675 = vpop.f32.mrf.mxu0
      %676 = vdwg.mxu0
      %v677 = vpack.c.bf16 %v608, %v608
      %v678 = vld [vmem:[%s5] sm:$0xf]
      %v679 = vld [vmem:[%s5 + $0x4] sm:$0xf]
      %v680 = vld [vmem:[%s5 + $0x8] sm:$0xf]
      %v681 = vld [vmem:[%s5 + $0xc] sm:$0xf]
      %v682 = vld [vmem:[%s6] sm:$0x1]
      %v684 = vlaneseq
      %v685 = vshrl.u32 %v684, 7
      %v686 = vsub.s32 0, %v685
      %v687 = vrot.slane %v682, %v686
      %v693 = vunpack.c.l.b16 %v678
      %v694 = vunpack.c.l.b16 %v679
      %v695 = vunpack.c.l.b16 %v680
      %v696 = vunpack.c.l.b16 %v681
      %v697 = vpack.c.b16 %v694, %v693
      %v698 = vpack.c.b16 %v696, %v695
      %v702 = vsel %vm633, %v677, 0
      %704 = vmatprep.subr.bf16.mxu0 0
      %705 = vmatpush1.bf16.msra.mxu0 0
      %706 = vmatprep.subr.bf16.mxu0 0
      %707 = vmatpush1.bf16.msra.mxu0 0
      %708 = vmatprep.subr.bf16.mxu0 0
      %709 = vmatpush1.bf16.msra.mxu0 0
      %710 = vmatprep.subr.bf16.mxu0 0
      %711 = vmatpush1.bf16.msra.mxu0 0
      %712 = vmatprep.subr.bf16.mxu0 0
      %713 = vmatpush1.bf16.msra.mxu0 0
      %714 = vmatprep.subr.bf16.mxu0 0
      %715 = vmatpush1.bf16.msra.mxu0 0
      %716 = vmatprep.subr.bf16.mxu0 0
      %717 = vmatpush1.bf16.msra.mxu0 %v698
      %718 = vmatprep.subr.bf16.mxu0 0
      %719 = vmatpush1.bf16.msra.mxu0 %v697
      %720 = vmatprep.subr.bf16.mxu0 0
      %721 = vmatpush2.bf16.msra.mxu0 0
      %722 = vmatprep.subr.bf16.mxu0 0
      %723 = vmatpush2.bf16.msra.mxu0 0
      %724 = vmatprep.subr.bf16.mxu0 0
      %725 = vmatpush2.bf16.msra.mxu0 0
      %726 = vmatprep.subr.bf16.mxu0 0
      %727 = vmatpush2.bf16.msra.mxu0 0
      %728 = vmatprep.subr.bf16.mxu0 0
      %729 = vmatpush2.bf16.msra.mxu0 0
      %730 = vmatprep.subr.bf16.mxu0 0
      %731 = vmatpush2.bf16.msra.mxu0 0
      %732 = vmatprep.subr.bf16.mxu0 0
      %733 = vmatpush2.bf16.msra.mxu0 0
      %734 = vmatprep.subr.bf16.mxu0 0
      %735 = vmatpush2.bf16.msra.mxu0 0
      %736 = vmatprep.mubr.bf16.mxu0 0
      %737 = vmatmul.mubr.bf16.gmra.mxu0 %v702
      %v738 = vpop.f32.mrf.mxu0
      %v739 = vadd.f32 %v687, %v738
      %v740 = vpop.f32.mrf.mxu0
      %v741 = vpop.f32.mrf.mxu0
      %v742 = vpop.f32.mrf.mxu0
      %743 = vdwg.mxu0
      %745 = vrot.lane.b32.xlu0 %v672, 120
      %v746 = vpop.permute.xlu0 %745
      %748 = vrot.lane.b32.xlu0 %v672, 112
      %v749 = vpop.permute.xlu0 %748
      %751 = vrot.lane.b32.xlu0 %v672, 104
      %v752 = vpop.permute.xlu0 %751
      %v754 = vcombine.low %v672, %v749
      %v755 = vcombine.high %v672, %v749
      %v757 = vunpack.c.l.s4 1983009808
      %v758 = vunpack.c.0.s8 %v757
      %v759 = vlaneseq
      %v760 = vshrl.u32 %v759, 7
      %v761 = vsub.s32 %v758, %v760
      %v762 = vrot.slane %v754, %v761
      %v764 = vunpack.c.l.s4 1983009808
      %v765 = vunpack.c.0.s8 %v764
      %v766 = vlaneseq
      %v767 = vshrl.u32 %v766, 7
      %v768 = vsub.s32 %v765, %v767
      %v769 = vrot.slane %v755, %v768
      %v770 = vcombine.low %v746, %v752
      %v771 = vcombine.high %v746, %v752
      %v773 = vunpack.c.l.s4 1983009808
      %v774 = vunpack.c.0.s8 %v773
      %v775 = vlaneseq
      %v776 = vshrl.u32 %v775, 7
      %v777 = vsub.s32 %v774, %v776
      %v778 = vrot.slane %v770, %v777
      %v780 = vunpack.c.l.s4 1983009808
      %v781 = vunpack.c.0.s8 %v780
      %v782 = vlaneseq
      %v783 = vshrl.u32 %v782, 7
      %v784 = vsub.s32 %v781, %v783
      %v785 = vrot.slane %v771, %v784
      %v786 = vcombine.low %v762, %v778
      %v787 = vcombine.high %v762, %v778
      %v789 = vunpack.c.l.s4 1934713408
      %v790 = vunpack.c.0.s8 %v789
      %v791 = vlaneseq
      %v792 = vshrl.u32 %v791, 7
      %v793 = vsub.s32 %v790, %v792
      %v794 = vrot.slane %v786, %v793
      %v796 = vunpack.c.l.s4 1934713408
      %v797 = vunpack.c.0.s8 %v796
      %v798 = vlaneseq
      %v799 = vshrl.u32 %v798, 7
      %v800 = vsub.s32 %v797, %v799
      %v801 = vrot.slane %v787, %v800
      %v802 = vcombine.low %v769, %v785
      %v803 = vcombine.high %v769, %v785
      %v805 = vunpack.c.l.s4 1934713408
      %v806 = vunpack.c.0.s8 %v805
      %v807 = vlaneseq
      %v808 = vshrl.u32 %v807, 7
      %v809 = vsub.s32 %v806, %v808
      %v810 = vrot.slane %v802, %v809
      %v812 = vunpack.c.l.s4 1934713408
      %v813 = vunpack.c.0.s8 %v812
      %v814 = vlaneseq
      %v815 = vshrl.u32 %v814, 7
      %v816 = vsub.s32 %v813, %v815
      %v817 = vrot.slane %v803, %v816
      %v818 = vcombine.high %v794, 0.0
      %v819 = vcombine.high %v801, 0.0
      %v820 = vcombine.high %v810, 0.0
      %v821 = vcombine.high %v817, 0.0
      %823 = vrot.lane.b32.xlu0 %v739, 120
      %v824 = vpop.permute.xlu0 %823
      %826 = vrot.lane.b32.xlu0 %v739, 112
      %v827 = vpop.permute.xlu0 %826
      %829 = vrot.lane.b32.xlu0 %v739, 104
      %v830 = vpop.permute.xlu0 %829
      %v832 = vcombine.low %v739, %v827
      %v833 = vcombine.high %v739, %v827
      %v835 = vunpack.c.l.s4 1983009808
      %v836 = vunpack.c.0.s8 %v835
      %v837 = vlaneseq
      %v838 = vshrl.u32 %v837, 7
      %v839 = vsub.s32 %v836, %v838
      %v840 = vrot.slane %v832, %v839
      %v842 = vunpack.c.l.s4 1983009808
      %v843 = vunpack.c.0.s8 %v842
      %v844 = vlaneseq
      %v845 = vshrl.u32 %v844, 7
      %v846 = vsub.s32 %v843, %v845
      %v847 = vrot.slane %v833, %v846
      %v848 = vcombine.low %v824, %v830
      %v849 = vcombine.high %v824, %v830
      %v851 = vunpack.c.l.s4 1983009808
      %v852 = vunpack.c.0.s8 %v851
      %v853 = vlaneseq
      %v854 = vshrl.u32 %v853, 7
      %v855 = vsub.s32 %v852, %v854
      %v856 = vrot.slane %v848, %v855
      %v858 = vunpack.c.l.s4 1983009808
      %v859 = vunpack.c.0.s8 %v858
      %v860 = vlaneseq
      %v861 = vshrl.u32 %v860, 7
      %v862 = vsub.s32 %v859, %v861
      %v863 = vrot.slane %v849, %v862
      %v864 = vcombine.low %v840, %v856
      %v865 = vcombine.high %v840, %v856
      %v867 = vunpack.c.l.s4 1934713408
      %v868 = vunpack.c.0.s8 %v867
      %v869 = vlaneseq
      %v870 = vshrl.u32 %v869, 7
      %v871 = vsub.s32 %v868, %v870
      %v872 = vrot.slane %v864, %v871
      %v874 = vunpack.c.l.s4 1934713408
      %v875 = vunpack.c.0.s8 %v874
      %v876 = vlaneseq
      %v877 = vshrl.u32 %v876, 7
      %v878 = vsub.s32 %v875, %v877
      %v879 = vrot.slane %v865, %v878
      %v880 = vcombine.low %v847, %v863
      %v881 = vcombine.high %v847, %v863
      %v883 = vunpack.c.l.s4 1934713408
      %v884 = vunpack.c.0.s8 %v883
      %v885 = vlaneseq
      %v886 = vshrl.u32 %v885, 7
      %v887 = vsub.s32 %v884, %v886
      %v888 = vrot.slane %v880, %v887
      %v890 = vunpack.c.l.s4 1934713408
      %v891 = vunpack.c.0.s8 %v890
      %v892 = vlaneseq
      %v893 = vshrl.u32 %v892, 7
      %v894 = vsub.s32 %v891, %v893
      %v895 = vrot.slane %v881, %v894
      %v896 = vcombine.high %v872, 0.0
      %v897 = vcombine.high %v879, 0.0
      %v898 = vcombine.high %v888, 0.0
      %v899 = vcombine.high %v895, 0.0
      %900 = vrot.lane.b32.xlu0 %v739, 96
      %v901 = vpop.permute.xlu0 %900
      %902 = vrot.lane.b32.xlu0 %v824, 96
      %v903 = vpop.permute.xlu0 %902
      %904 = vrot.lane.b32.xlu0 %v827, 96
      %v905 = vpop.permute.xlu0 %904
      %906 = vrot.lane.b32.xlu0 %v830, 96
      %v907 = vpop.permute.xlu0 %906
      %v912 = vcombine.low %v901, %v905
      %v913 = vcombine.high %v901, %v905
      %v915 = vunpack.c.l.s4 1983009808
      %v916 = vunpack.c.0.s8 %v915
      %v917 = vlaneseq
      %v918 = vshrl.u32 %v917, 7
      %v919 = vsub.s32 %v916, %v918
      %v920 = vrot.slane %v912, %v919
      %v922 = vunpack.c.l.s4 1983009808
      %v923 = vunpack.c.0.s8 %v922
      %v924 = vlaneseq
      %v925 = vshrl.u32 %v924, 7
      %v926 = vsub.s32 %v923, %v925
      %v927 = vrot.slane %v913, %v926
      %v928 = vcombine.low %v903, %v907
      %v929 = vcombine.high %v903, %v907
      %v931 = vunpack.c.l.s4 1983009808
      %v932 = vunpack.c.0.s8 %v931
      %v933 = vlaneseq
      %v934 = vshrl.u32 %v933, 7
      %v935 = vsub.s32 %v932, %v934
      %v936 = vrot.slane %v928, %v935
      %v938 = vunpack.c.l.s4 1983009808
      %v939 = vunpack.c.0.s8 %v938
      %v940 = vlaneseq
      %v941 = vshrl.u32 %v940, 7
      %v942 = vsub.s32 %v939, %v941
      %v943 = vrot.slane %v929, %v942
      %v944 = vcombine.low %v920, %v936
      %v945 = vcombine.high %v920, %v936
      %v947 = vunpack.c.l.s4 1934713408
      %v948 = vunpack.c.0.s8 %v947
      %v949 = vlaneseq
      %v950 = vshrl.u32 %v949, 7
      %v951 = vsub.s32 %v948, %v950
      %v952 = vrot.slane %v944, %v951
      %v954 = vunpack.c.l.s4 1934713408
      %v955 = vunpack.c.0.s8 %v954
      %v956 = vlaneseq
      %v957 = vshrl.u32 %v956, 7
      %v958 = vsub.s32 %v955, %v957
      %v959 = vrot.slane %v945, %v958
      %v960 = vcombine.low %v927, %v943
      %v961 = vcombine.high %v927, %v943
      %v963 = vunpack.c.l.s4 1934713408
      %v964 = vunpack.c.0.s8 %v963
      %v965 = vlaneseq
      %v966 = vshrl.u32 %v965, 7
      %v967 = vsub.s32 %v964, %v966
      %v968 = vrot.slane %v960, %v967
      %v970 = vunpack.c.l.s4 1934713408
      %v971 = vunpack.c.0.s8 %v970
      %v972 = vlaneseq
      %v973 = vshrl.u32 %v972, 7
      %v974 = vsub.s32 %v971, %v973
      %v975 = vrot.slane %v961, %v974
      %v976 = vcombine.high %v952, 0.0
      %v977 = vcombine.high %v959, 0.0
      %v978 = vcombine.high %v968, 0.0
      %v979 = vcombine.high %v975, 0.0
      %v980 = vpack.c.bf16 %v794, %v794
      %v981 = vpack.c.bf16 %v818, %v818
      %v982 = vpack.c.bf16 %v801, %v801
      %v983 = vpack.c.bf16 %v819, %v819
      %v984 = vpack.c.bf16 %v810, %v810
      %v985 = vpack.c.bf16 %v820, %v820
      %v986 = vpack.c.bf16 %v817, %v817
      %v987 = vpack.c.bf16 %v821, %v821
      %v988 = vpack.c.bf16 %v872, %v872
      %v989 = vpack.c.bf16 %v896, %v896
      %v990 = vpack.c.bf16 %v879, %v879
      %v991 = vpack.c.bf16 %v897, %v897
      %v992 = vpack.c.bf16 %v888, %v888
      %v993 = vpack.c.bf16 %v898, %v898
      %v994 = vpack.c.bf16 %v895, %v895
      %v995 = vpack.c.bf16 %v899, %v899
      %v996 = vcombine.low %v980, %v984
      %v998 = vunpack.c.l.s4 1983009808
      %v999 = vunpack.c.0.s8 %v998
      %v1000 = vlaneseq
      %v1001 = vshrl.u32 %v1000, 7
      %v1002 = vsub.s32 %v999, %v1001
      %v1003 = vrot.slane %v996, %v1002
      %v1004 = vcombine.low %v982, %v986
      %v1006 = vunpack.c.l.s4 1983009808
      %v1007 = vunpack.c.0.s8 %v1006
      %v1008 = vlaneseq
      %v1009 = vshrl.u32 %v1008, 7
      %v1010 = vsub.s32 %v1007, %v1009
      %v1011 = vrot.slane %v1004, %v1010
      %v1012 = vcombine.low %v1003, %v1011
      %v1014 = vunpack.c.l.s4 1934713408
      %v1015 = vunpack.c.0.s8 %v1014
      %v1016 = vlaneseq
      %v1017 = vshrl.u32 %v1016, 7
      %v1018 = vsub.s32 %v1015, %v1017
      %v1019 = vrot.slane %v1012, %v1018
      %v1020 = vcombine.high %v1019, 0
      %v1021 = vcombine.low %v981, %v985
      %v1023 = vunpack.c.l.s4 1983009808
      %v1024 = vunpack.c.0.s8 %v1023
      %v1025 = vlaneseq
      %v1026 = vshrl.u32 %v1025, 7
      %v1027 = vsub.s32 %v1024, %v1026
      %v1028 = vrot.slane %v1021, %v1027
      %v1029 = vcombine.low %v983, %v987
      %v1031 = vunpack.c.l.s4 1983009808
      %v1032 = vunpack.c.0.s8 %v1031
      %v1033 = vlaneseq
      %v1034 = vshrl.u32 %v1033, 7
      %v1035 = vsub.s32 %v1032, %v1034
      %v1036 = vrot.slane %v1029, %v1035
      %v1037 = vcombine.low %v1028, %v1036
      %v1039 = vunpack.c.l.s4 1934713408
      %v1040 = vunpack.c.0.s8 %v1039
      %v1041 = vlaneseq
      %v1042 = vshrl.u32 %v1041, 7
      %v1043 = vsub.s32 %v1040, %v1042
      %v1044 = vrot.slane %v1037, %v1043
      %v1045 = vcombine.high %v1044, 0
      %v1048 = vpack.i.b16 %v1044, %v1019
      %v1049 = vshrl.u32 %v1019, 16
      %v1050 = vshrl.u32 %v1044, 16
      %v1051 = vpack.i.b16 %v1050, %v1049
      %v1054 = vpack.i.b16 %v1045, %v1020
      %v1055 = vshrl.u32 %v1020, 16
      %v1056 = vshrl.u32 %v1045, 16
      %v1057 = vpack.i.b16 %v1056, %v1055
      %1058 = vxpose.xlu0.c.b16.start [1/8] %v988, 128
      %1059 = vxpose.xlu0.c.b16.cont [2/8] 0, 128
      %1060 = vxpose.xlu0.c.b16.cont [3/8] 0, 128
      %1061 = vxpose.xlu0.c.b16.cont [4/8] 0, 128
      %1062 = vxpose.xlu0.c.b16.cont [5/8] 0, 128
      %1063 = vxpose.xlu0.c.b16.cont [6/8] 0, 128
      %1064 = vxpose.xlu0.c.b16.cont [7/8] 0, 128
      %1065 = vxpose.xlu0.c.b16.end [8/8] 0, 128
      %v1066 = vpop.trf.xlu0
      %v1067 = vpop.trf.xlu0
      %v1068 = vpop.trf.xlu0
      %v1069 = vpop.trf.xlu0
      %v1070 = vpop.trf.xlu0
      %v1071 = vpop.trf.xlu0
      %v1072 = vpop.trf.xlu0
      %v1073 = vpop.trf.xlu0
      %1074 = vxpose.xlu0.c.b16.start [1/8] %v989, 128
      %1075 = vxpose.xlu0.c.b16.cont [2/8] 0, 128
      %1076 = vxpose.xlu0.c.b16.cont [3/8] 0, 128
      %1077 = vxpose.xlu0.c.b16.cont [4/8] 0, 128
      %1078 = vxpose.xlu0.c.b16.cont [5/8] 0, 128
      %1079 = vxpose.xlu0.c.b16.cont [6/8] 0, 128
      %1080 = vxpose.xlu0.c.b16.cont [7/8] 0, 128
      %1081 = vxpose.xlu0.c.b16.end [8/8] 0, 128
      %v1082 = vpop.trf.xlu0
      %v1083 = vpop.trf.xlu0
      %v1084 = vpop.trf.xlu0
      %v1085 = vpop.trf.xlu0
      %v1086 = vpop.trf.xlu0
      %v1087 = vpop.trf.xlu0
      %v1088 = vpop.trf.xlu0
      %v1089 = vpop.trf.xlu0
      %1090 = vxpose.xlu0.c.b16.start [1/8] %v990, 128
      %1091 = vxpose.xlu0.c.b16.cont [2/8] 0, 128
      %1092 = vxpose.xlu0.c.b16.cont [3/8] 0, 128
      %1093 = vxpose.xlu0.c.b16.cont [4/8] 0, 128
      %1094 = vxpose.xlu0.c.b16.cont [5/8] 0, 128
      %1095 = vxpose.xlu0.c.b16.cont [6/8] 0, 128
      %1096 = vxpose.xlu0.c.b16.cont [7/8] 0, 128
      %1097 = vxpose.xlu0.c.b16.end [8/8] 0, 128
      %v1098 = vpop.trf.xlu0
      %v1099 = vpop.trf.xlu0
      %v1100 = vpop.trf.xlu0
      %v1101 = vpop.trf.xlu0
      %v1102 = vpop.trf.xlu0
      %v1103 = vpop.trf.xlu0
      %v1104 = vpop.trf.xlu0
      %v1105 = vpop.trf.xlu0
      %1106 = vxpose.xlu0.c.b16.start [1/8] %v991, 128
      %1107 = vxpose.xlu0.c.b16.cont [2/8] 0, 128
      %1108 = vxpose.xlu0.c.b16.cont [3/8] 0, 128
      %1109 = vxpose.xlu0.c.b16.cont [4/8] 0, 128
      %1110 = vxpose.xlu0.c.b16.cont [5/8] 0, 128
      %1111 = vxpose.xlu0.c.b16.cont [6/8] 0, 128
      %1112 = vxpose.xlu0.c.b16.cont [7/8] 0, 128
      %1113 = vxpose.xlu0.c.b16.end [8/8] 0, 128
      %v1114 = vpop.trf.xlu0
      %v1115 = vpop.trf.xlu0
      %v1116 = vpop.trf.xlu0
      %v1117 = vpop.trf.xlu0
      %v1118 = vpop.trf.xlu0
      %v1119 = vpop.trf.xlu0
      %v1120 = vpop.trf.xlu0
      %v1121 = vpop.trf.xlu0
      %1122 = vxpose.xlu0.c.b16.start [1/8] %v992, 128
      %1123 = vxpose.xlu0.c.b16.cont [2/8] 0, 128
      %1124 = vxpose.xlu0.c.b16.cont [3/8] 0, 128
      %1125 = vxpose.xlu0.c.b16.cont [4/8] 0, 128
      %1126 = vxpose.xlu0.c.b16.cont [5/8] 0, 128
      %1127 = vxpose.xlu0.c.b16.cont [6/8] 0, 128
      %1128 = vxpose.xlu0.c.b16.cont [7/8] 0, 128
      %1129 = vxpose.xlu0.c.b16.end [8/8] 0, 128
      %v1130 = vpop.trf.xlu0
      %v1131 = vpop.trf.xlu0
      %v1132 = vpop.trf.xlu0
      %v1133 = vpop.trf.xlu0
      %v1134 = vpop.trf.xlu0
      %v1135 = vpop.trf.xlu0
      %v1136 = vpop.trf.xlu0
      %v1137 = vpop.trf.xlu0
      %1138 = vxpose.xlu0.c.b16.start [1/8] %v993, 128
      %1139 = vxpose.xlu0.c.b16.cont [2/8] 0, 128
      %1140 = vxpose.xlu0.c.b16.cont [3/8] 0, 128
      %1141 = vxpose.xlu0.c.b16.cont [4/8] 0, 128
      %1142 = vxpose.xlu0.c.b16.cont [5/8] 0, 128
      %1143 = vxpose.xlu0.c.b16.cont [6/8] 0, 128
      %1144 = vxpose.xlu0.c.b16.cont [7/8] 0, 128
      %1145 = vxpose.xlu0.c.b16.end [8/8] 0, 128
      %v1146 = vpop.trf.xlu0
      %v1147 = vpop.trf.xlu0
      %v1148 = vpop.trf.xlu0
      %v1149 = vpop.trf.xlu0
      %v1150 = vpop.trf.xlu0
      %v1151 = vpop.trf.xlu0
      %v1152 = vpop.trf.xlu0
      %v1153 = vpop.trf.xlu0
      %1154 = vxpose.xlu0.c.b16.start [1/8] %v994, 128
      %1155 = vxpose.xlu0.c.b16.cont [2/8] 0, 128
      %1156 = vxpose.xlu0.c.b16.cont [3/8] 0, 128
      %1157 = vxpose.xlu0.c.b16.cont [4/8] 0, 128
      %1158 = vxpose.xlu0.c.b16.cont [5/8] 0, 128
      %1159 = vxpose.xlu0.c.b16.cont [6/8] 0, 128
      %1160 = vxpose.xlu0.c.b16.cont [7/8] 0, 128
      %1161 = vxpose.xlu0.c.b16.end [8/8] 0, 128
      %v1162 = vpop.trf.xlu0
      %v1163 = vpop.trf.xlu0
      %v1164 = vpop.trf.xlu0
      %v1165 = vpop.trf.xlu0
      %v1166 = vpop.trf.xlu0
      %v1167 = vpop.trf.xlu0
      %v1168 = vpop.trf.xlu0
      %v1169 = vpop.trf.xlu0
      %1170 = vxpose.xlu0.c.b16.start [1/8] %v995, 128
      %1171 = vxpose.xlu0.c.b16.cont [2/8] 0, 128
      %1172 = vxpose.xlu0.c.b16.cont [3/8] 0, 128
      %1173 = vxpose.xlu0.c.b16.cont [4/8] 0, 128
      %1174 = vxpose.xlu0.c.b16.cont [5/8] 0, 128
      %1175 = vxpose.xlu0.c.b16.cont [6/8] 0, 128
      %1176 = vxpose.xlu0.c.b16.cont [7/8] 0, 128
      %1177 = vxpose.xlu0.c.b16.end [8/8] 0, 128
      %v1178 = vpop.trf.xlu0
      %v1179 = vpop.trf.xlu0
      %v1180 = vpop.trf.xlu0
      %v1181 = vpop.trf.xlu0
      %v1182 = vpop.trf.xlu0
      %v1183 = vpop.trf.xlu0
      %v1184 = vpop.trf.xlu0
      %v1185 = vpop.trf.xlu0
      %v1186 = vcombine.low %v1066, %v1130
      %v1188 = vunpack.c.l.s4 1983009808
      %v1189 = vunpack.c.0.s8 %v1188
      %v1190 = vlaneseq
      %v1191 = vshrl.u32 %v1190, 7
      %v1192 = vsub.s32 %v1189, %v1191
      %v1193 = vrot.slane %v1186, %v1192
      %v1194 = vcombine.low %v1098, %v1162
      %v1196 = vunpack.c.l.s4 1983009808
      %v1197 = vunpack.c.0.s8 %v1196
      %v1198 = vlaneseq
      %v1199 = vshrl.u32 %v1198, 7
      %v1200 = vsub.s32 %v1197, %v1199
      %v1201 = vrot.slane %v1194, %v1200
      %v1202 = vcombine.low %v1193, %v1201
      %v1203 = vcombine.high %v1193, %v1201
      %v1205 = vunpack.c.l.s4 1934713408
      %v1206 = vunpack.c.0.s8 %v1205
      %v1207 = vlaneseq
      %v1208 = vshrl.u32 %v1207, 7
      %v1209 = vsub.s32 %v1206, %v1208
      %v1210 = vrot.slane %v1202, %v1209
      %v1212 = vunpack.c.l.s4 1934713408
      %v1213 = vunpack.c.0.s8 %v1212
      %v1214 = vlaneseq
      %v1215 = vshrl.u32 %v1214, 7
      %v1216 = vsub.s32 %v1213, %v1215
      %v1217 = vrot.slane %v1203, %v1216
      %v1218 = vcombine.high %v1210, 0
      %v1219 = vcombine.high %v1217, 0
      %v1220 = vcombine.low %v1082, %v1146
      %v1222 = vunpack.c.l.s4 1983009808
      %v1223 = vunpack.c.0.s8 %v1222
      %v1224 = vlaneseq
      %v1225 = vshrl.u32 %v1224, 7
      %v1226 = vsub.s32 %v1223, %v1225
      %v1227 = vrot.slane %v1220, %v1226
      %v1228 = vcombine.low %v1114, %v1178
      %v1230 = vunpack.c.l.s4 1983009808
      %v1231 = vunpack.c.0.s8 %v1230
      %v1232 = vlaneseq
      %v1233 = vshrl.u32 %v1232, 7
      %v1234 = vsub.s32 %v1231, %v1233
      %v1235 = vrot.slane %v1228, %v1234
      %v1236 = vcombine.low %v1227, %v1235
      %v1237 = vcombine.high %v1227, %v1235
      %v1239 = vunpack.c.l.s4 1934713408
      %v1240 = vunpack.c.0.s8 %v1239
      %v1241 = vlaneseq
      %v1242 = vshrl.u32 %v1241, 7
      %v1243 = vsub.s32 %v1240, %v1242
      %v1244 = vrot.slane %v1236, %v1243
      %v1246 = vunpack.c.l.s4 1934713408
      %v1247 = vunpack.c.0.s8 %v1246
      %v1248 = vlaneseq
      %v1249 = vshrl.u32 %v1248, 7
      %v1250 = vsub.s32 %v1247, %v1249
      %v1251 = vrot.slane %v1237, %v1250
      %v1252 = vcombine.high %v1244, 0
      %v1253 = vcombine.high %v1251, 0
      %v1256 = vpack.i.b16 %v1244, %v1210
      %v1258 = vshrl.u32 %v1210, 16
      %v1259 = vshrl.u32 %v1244, 16
      %v1260 = vpack.i.b16 %v1259, %v1258
      %v1264 = vpack.i.b16 %v1252, %v1218
      %v1266 = vshrl.u32 %v1218, 16
      %v1267 = vshrl.u32 %v1252, 16
      %v1268 = vpack.i.b16 %v1267, %v1266
      %v1272 = vpack.i.b16 %v1251, %v1217
      %v1274 = vshrl.u32 %v1217, 16
      %v1275 = vshrl.u32 %v1251, 16
      %v1276 = vpack.i.b16 %v1275, %v1274
      %v1280 = vpack.i.b16 %v1253, %v1219
      %v1282 = vshrl.u32 %v1219, 16
      %v1283 = vshrl.u32 %v1253, 16
      %v1284 = vpack.i.b16 %v1283, %v1282
      %1286 = vxpose.xlu0.c.b16.start [1/8] %v1256, 128
      %1287 = vxpose.xlu0.c.b16.cont [2/8] 0, 128
      %1288 = vxpose.xlu0.c.b16.cont [3/8] 0, 128
      %1289 = vxpose.xlu0.c.b16.cont [4/8] 0, 128
      %1290 = vxpose.xlu0.c.b16.cont [5/8] 0, 128
      %1291 = vxpose.xlu0.c.b16.cont [6/8] 0, 128
      %1292 = vxpose.xlu0.c.b16.cont [7/8] 0, 128
      %1293 = vxpose.xlu0.c.b16.end [8/8] 0, 128
      %v1294 = vpop.trf.xlu0
      %v1295 = vpop.trf.xlu0
      %v1296 = vpop.trf.xlu0
      %v1297 = vpop.trf.xlu0
      %v1298 = vpop.trf.xlu0
      %v1299 = vpop.trf.xlu0
      %v1300 = vpop.trf.xlu0
      %v1301 = vpop.trf.xlu0
      %1302 = vxpose.xlu0.c.b16.start [1/8] %v1260, 128
      %1303 = vxpose.xlu0.c.b16.cont [2/8] 0, 128
      %1304 = vxpose.xlu0.c.b16.cont [3/8] 0, 128
      %1305 = vxpose.xlu0.c.b16.cont [4/8] 0, 128
      %1306 = vxpose.xlu0.c.b16.cont [5/8] 0, 128
      %1307 = vxpose.xlu0.c.b16.cont [6/8] 0, 128
      %1308 = vxpose.xlu0.c.b16.cont [7/8] 0, 128
      %1309 = vxpose.xlu0.c.b16.end [8/8] 0, 128
      %v1310 = vpop.trf.xlu0
      %v1311 = vpop.trf.xlu0
      %v1312 = vpop.trf.xlu0
      %v1313 = vpop.trf.xlu0
      %v1314 = vpop.trf.xlu0
      %v1315 = vpop.trf.xlu0
      %v1316 = vpop.trf.xlu0
      %v1317 = vpop.trf.xlu0
      %1318 = vxpose.xlu0.c.b16.start [1/8] %v1264, 128
      %1319 = vxpose.xlu0.c.b16.cont [2/8] 0, 128
      %1320 = vxpose.xlu0.c.b16.cont [3/8] 0, 128
      %1321 = vxpose.xlu0.c.b16.cont [4/8] 0, 128
      %1322 = vxpose.xlu0.c.b16.cont [5/8] 0, 128
      %1323 = vxpose.xlu0.c.b16.cont [6/8] 0, 128
      %1324 = vxpose.xlu0.c.b16.cont [7/8] 0, 128
      %1325 = vxpose.xlu0.c.b16.end [8/8] 0, 128
      %v1326 = vpop.trf.xlu0
      %v1327 = vpop.trf.xlu0
      %v1328 = vpop.trf.xlu0
      %v1329 = vpop.trf.xlu0
      %v1330 = vpop.trf.xlu0
      %v1331 = vpop.trf.xlu0
      %v1332 = vpop.trf.xlu0
      %v1333 = vpop.trf.xlu0
      %1334 = vxpose.xlu0.c.b16.start [1/8] %v1268, 128
      %1335 = vxpose.xlu0.c.b16.cont [2/8] 0, 128
      %1336 = vxpose.xlu0.c.b16.cont [3/8] 0, 128
      %1337 = vxpose.xlu0.c.b16.cont [4/8] 0, 128
      %1338 = vxpose.xlu0.c.b16.cont [5/8] 0, 128
      %1339 = vxpose.xlu0.c.b16.cont [6/8] 0, 128
      %1340 = vxpose.xlu0.c.b16.cont [7/8] 0, 128
      %1341 = vxpose.xlu0.c.b16.end [8/8] 0, 128
      %v1342 = vpop.trf.xlu0
      %v1343 = vpop.trf.xlu0
      %v1344 = vpop.trf.xlu0
      %v1345 = vpop.trf.xlu0
      %v1346 = vpop.trf.xlu0
      %v1347 = vpop.trf.xlu0
      %v1348 = vpop.trf.xlu0
      %v1349 = vpop.trf.xlu0
      %1350 = vxpose.xlu0.c.b16.start [1/8] %v1272, 128
      %1351 = vxpose.xlu0.c.b16.cont [2/8] 0, 128
      %1352 = vxpose.xlu0.c.b16.cont [3/8] 0, 128
      %1353 = vxpose.xlu0.c.b16.cont [4/8] 0, 128
      %1354 = vxpose.xlu0.c.b16.cont [5/8] 0, 128
      %1355 = vxpose.xlu0.c.b16.cont [6/8] 0, 128
      %1356 = vxpose.xlu0.c.b16.cont [7/8] 0, 128
      %1357 = vxpose.xlu0.c.b16.end [8/8] 0, 128
      %v1358 = vpop.trf.xlu0
      %v1359 = vpop.trf.xlu0
      %v1360 = vpop.trf.xlu0
      %v1361 = vpop.trf.xlu0
      %v1362 = vpop.trf.xlu0
      %v1363 = vpop.trf.xlu0
      %v1364 = vpop.trf.xlu0
      %v1365 = vpop.trf.xlu0
      %1366 = vxpose.xlu0.c.b16.start [1/8] %v1276, 128
      %1367 = vxpose.xlu0.c.b16.cont [2/8] 0, 128
      %1368 = vxpose.xlu0.c.b16.cont [3/8] 0, 128
      %1369 = vxpose.xlu0.c.b16.cont [4/8] 0, 128
      %1370 = vxpose.xlu0.c.b16.cont [5/8] 0, 128
      %1371 = vxpose.xlu0.c.b16.cont [6/8] 0, 128
      %1372 = vxpose.xlu0.c.b16.cont [7/8] 0, 128
      %1373 = vxpose.xlu0.c.b16.end [8/8] 0, 128
      %v1374 = vpop.trf.xlu0
      %v1375 = vpop.trf.xlu0
      %v1376 = vpop.trf.xlu0
      %v1377 = vpop.trf.xlu0
      %v1378 = vpop.trf.xlu0
      %v1379 = vpop.trf.xlu0
      %v1380 = vpop.trf.xlu0
      %v1381 = vpop.trf.xlu0
      %1382 = vxpose.xlu0.c.b16.start [1/8] %v1280, 128
      %1383 = vxpose.xlu0.c.b16.cont [2/8] 0, 128
      %1384 = vxpose.xlu0.c.b16.cont [3/8] 0, 128
      %1385 = vxpose.xlu0.c.b16.cont [4/8] 0, 128
      %1386 = vxpose.xlu0.c.b16.cont [5/8] 0, 128
      %1387 = vxpose.xlu0.c.b16.cont [6/8] 0, 128
      %1388 = vxpose.xlu0.c.b16.cont [7/8] 0, 128
      %1389 = vxpose.xlu0.c.b16.end [8/8] 0, 128
      %v1390 = vpop.trf.xlu0
      %v1391 = vpop.trf.xlu0
      %v1392 = vpop.trf.xlu0
      %v1393 = vpop.trf.xlu0
      %v1394 = vpop.trf.xlu0
      %v1395 = vpop.trf.xlu0
      %v1396 = vpop.trf.xlu0
      %v1397 = vpop.trf.xlu0
      %1398 = vxpose.xlu0.c.b16.start [1/8] %v1284, 128
      %1399 = vxpose.xlu0.c.b16.cont [2/8] 0, 128
      %1400 = vxpose.xlu0.c.b16.cont [3/8] 0, 128
      %1401 = vxpose.xlu0.c.b16.cont [4/8] 0, 128
      %1402 = vxpose.xlu0.c.b16.cont [5/8] 0, 128
      %1403 = vxpose.xlu0.c.b16.cont [6/8] 0, 128
      %1404 = vxpose.xlu0.c.b16.cont [7/8] 0, 128
      %1405 = vxpose.xlu0.c.b16.end [8/8] 0, 128
      %v1406 = vpop.trf.xlu0
      %v1407 = vpop.trf.xlu0
      %v1408 = vpop.trf.xlu0
      %v1409 = vpop.trf.xlu0
      %v1410 = vpop.trf.xlu0
      %v1411 = vpop.trf.xlu0
      %v1412 = vpop.trf.xlu0
      %v1413 = vpop.trf.xlu0
      %v1414 = vcombine.low %v1294, %v1358
      %v1416 = vunpack.c.l.s4 1983009808
      %v1417 = vunpack.c.0.s8 %v1416
      %v1418 = vlaneseq
      %v1419 = vshrl.u32 %v1418, 7
      %v1420 = vsub.s32 %v1417, %v1419
      %v1421 = vrot.slane %v1414, %v1420
      %v1422 = vcombine.low %v1326, %v1390
      %v1424 = vunpack.c.l.s4 1983009808
      %v1425 = vunpack.c.0.s8 %v1424
      %v1426 = vlaneseq
      %v1427 = vshrl.u32 %v1426, 7
      %v1428 = vsub.s32 %v1425, %v1427
      %v1429 = vrot.slane %v1422, %v1428
      %v1430 = vcombine.low %v1421, %v1429
      %v1432 = vunpack.c.l.s4 1934713408
      %v1433 = vunpack.c.0.s8 %v1432
      %v1434 = vlaneseq
      %v1435 = vshrl.u32 %v1434, 7
      %v1436 = vsub.s32 %v1433, %v1435
      %v1437 = vrot.slane %v1430, %v1436
      %v1438 = vcombine.high %v1437, 0
      %v1439 = vcombine.low %v1310, %v1374
      %v1441 = vunpack.c.l.s4 1983009808
      %v1442 = vunpack.c.0.s8 %v1441
      %v1443 = vlaneseq
      %v1444 = vshrl.u32 %v1443, 7
      %v1445 = vsub.s32 %v1442, %v1444
      %v1446 = vrot.slane %v1439, %v1445
      %v1447 = vcombine.low %v1342, %v1406
      %v1449 = vunpack.c.l.s4 1983009808
      %v1450 = vunpack.c.0.s8 %v1449
      %v1451 = vlaneseq
      %v1452 = vshrl.u32 %v1451, 7
      %v1453 = vsub.s32 %v1450, %v1452
      %v1454 = vrot.slane %v1447, %v1453
      %v1455 = vcombine.low %v1446, %v1454
      %v1457 = vunpack.c.l.s4 1934713408
      %v1458 = vunpack.c.0.s8 %v1457
      %v1459 = vlaneseq
      %v1460 = vshrl.u32 %v1459, 7
      %v1461 = vsub.s32 %v1458, %v1460
      %v1462 = vrot.slane %v1455, %v1461
      %v1463 = vcombine.high %v1462, 0
      %v1466 = vpack.i.b16 %v1462, %v1437
      %v1467 = vshrl.u32 %v1437, 16
      %v1468 = vshrl.u32 %v1462, 16
      %v1469 = vpack.i.b16 %v1468, %v1467
      %v1472 = vpack.i.b16 %v1463, %v1438
      %v1473 = vshrl.u32 %v1438, 16
      %v1474 = vshrl.u32 %v1463, 16
      %v1475 = vpack.i.b16 %v1474, %v1473
      %vm1476 = vcmask 64512
      %v1478 = vsel %vm1476, %v1048, 0
      %vm1480 = vcmask 1043456
      %v1482 = vsel %vm1480, %v1466, 0
      %1484 = vmatprep.subr.bf16.mxu0 0
      %1485 = vmatpush1.bf16.msra.mxu0 0
      %1486 = vmatprep.subr.bf16.mxu0 0
      %1487 = vmatpush1.bf16.msra.mxu0 0
      %1488 = vmatprep.subr.bf16.mxu0 0
      %1489 = vmatpush1.bf16.msra.mxu0 0
      %1490 = vmatprep.subr.bf16.mxu0 0
      %1491 = vmatpush1.bf16.msra.mxu0 0
      %1492 = vmatprep.subr.bf16.mxu0 0
      %1493 = vmatpush1.bf16.msra.mxu0 0
      %1494 = vmatprep.subr.bf16.mxu0 0
      %1495 = vmatpush1.bf16.msra.mxu0 0
      %1496 = vmatprep.subr.bf16.mxu0 0
      %1497 = vmatpush1.bf16.msra.mxu0 0
      %1498 = vmatprep.subr.bf16.mxu0 0
      %1499 = vmatpush1.bf16.msra.mxu0 %v1482
      %1500 = vmatprep.subr.bf16.mxu0 0
      %1501 = vmatpush2.bf16.msra.mxu0 0
      %1502 = vmatprep.subr.bf16.mxu0 0
      %1503 = vmatpush2.bf16.msra.mxu0 0
      %1504 = vmatprep.subr.bf16.mxu0 0
      %1505 = vmatpush2.bf16.msra.mxu0 0
      %1506 = vmatprep.subr.bf16.mxu0 0
      %1507 = vmatpush2.bf16.msra.mxu0 0
      %1508 = vmatprep.subr.bf16.mxu0 0
      %1509 = vmatpush2.bf16.msra.mxu0 0
      %1510 = vmatprep.subr.bf16.mxu0 0
      %1511 = vmatpush2.bf16.msra.mxu0 0
      %1512 = vmatprep.subr.bf16.mxu0 0
      %1513 = vmatpush2.bf16.msra.mxu0 0
      %1514 = vmatprep.subr.bf16.mxu0 0
      %1515 = vmatpush2.bf16.msra.mxu0 0
      %1516 = vmatprep.mubr.bf16.mxu0 0
      %1517 = vmatmul.mubr.bf16.gmra.mxu0 %v1478
      %v1518 = vpop.f32.mrf.mxu0
      %v1519 = vadd.f32 0.0, %v1518
      %v1520 = vpop.f32.mrf.mxu0
      %v1521 = vpop.f32.mrf.mxu0
      %v1522 = vpop.f32.mrf.mxu0
      %1523 = vdwg.mxu0
      %v1525 = vsel %vm1476, %v1051, 0
      %v1528 = vsel %vm1480, %v1469, 0
      %1530 = vmatprep.subr.bf16.mxu0 0
      %1531 = vmatpush1.bf16.msra.mxu0 0
      %1532 = vmatprep.subr.bf16.mxu0 0
      %1533 = vmatpush1.bf16.msra.mxu0 0
      %1534 = vmatprep.subr.bf16.mxu0 0
      %1535 = vmatpush1.bf16.msra.mxu0 0
      %1536 = vmatprep.subr.bf16.mxu0 0
      %1537 = vmatpush1.bf16.msra.mxu0 0
      %1538 = vmatprep.subr.bf16.mxu0 0
      %1539 = vmatpush1.bf16.msra.mxu0 0
      %1540 = vmatprep.subr.bf16.mxu0 0
      %1541 = vmatpush1.bf16.msra.mxu0 0
      %1542 = vmatprep.subr.bf16.mxu0 0
      %1543 = vmatpush1.bf16.msra.mxu0 0
      %1544 = vmatprep.subr.bf16.mxu0 0
      %1545 = vmatpush1.bf16.msra.mxu0 %v1528
      %1546 = vmatprep.subr.bf16.mxu0 0
      %1547 = vmatpush2.bf16.msra.mxu0 0
      %1548 = vmatprep.subr.bf16.mxu0 0
      %1549 = vmatpush2.bf16.msra.mxu0 0
      %1550 = vmatprep.subr.bf16.mxu0 0
      %1551 = vmatpush2.bf16.msra.mxu0 0
      %1552 = vmatprep.subr.bf16.mxu0 0
      %1553 = vmatpush2.bf16.msra.mxu0 0
      %1554 = vmatprep.subr.bf16.mxu0 0
      %1555 = vmatpush2.bf16.msra.mxu0 0
      %1556 = vmatprep.subr.bf16.mxu0 0
      %1557 = vmatpush2.bf16.msra.mxu0 0
      %1558 = vmatprep.subr.bf16.mxu0 0
      %1559 = vmatpush2.bf16.msra.mxu0 0
      %1560 = vmatprep.subr.bf16.mxu0 0
      %1561 = vmatpush2.bf16.msra.mxu0 0
      %1562 = vmatprep.mubr.bf16.mxu0 0
      %1563 = vmatmul.mubr.bf16.gmra.mxu0 %v1525
      %v1564 = vpop.f32.mrf.mxu0
      %v1565 = vadd.f32 0.0, %v1564
      %v1566 = vpop.f32.mrf.mxu0
      %v1567 = vpop.f32.mrf.mxu0
      %v1568 = vpop.f32.mrf.mxu0
      %1569 = vdwg.mxu0
      %v1571 = vsel %vm1476, %v1054, 0
      %v1574 = vsel %vm1480, %v1472, 0
      %1576 = vmatprep.subr.bf16.mxu0 0
      %1577 = vmatpush1.bf16.msra.mxu0 0
      %1578 = vmatprep.subr.bf16.mxu0 0
      %1579 = vmatpush1.bf16.msra.mxu0 0
      %1580 = vmatprep.subr.bf16.mxu0 0
      %1581 = vmatpush1.bf16.msra.mxu0 0
      %1582 = vmatprep.subr.bf16.mxu0 0
      %1583 = vmatpush1.bf16.msra.mxu0 0
      %1584 = vmatprep.subr.bf16.mxu0 0
      %1585 = vmatpush1.bf16.msra.mxu0 0
      %1586 = vmatprep.subr.bf16.mxu0 0
      %1587 = vmatpush1.bf16.msra.mxu0 0
      %1588 = vmatprep.subr.bf16.mxu0 0
      %1589 = vmatpush1.bf16.msra.mxu0 0
      %1590 = vmatprep.subr.bf16.mxu0 0
      %1591 = vmatpush1.bf16.msra.mxu0 %v1574
      %1592 = vmatprep.subr.bf16.mxu0 0
      %1593 = vmatpush2.bf16.msra.mxu0 0
      %1594 = vmatprep.subr.bf16.mxu0 0
      %1595 = vmatpush2.bf16.msra.mxu0 0
      %1596 = vmatprep.subr.bf16.mxu0 0
      %1597 = vmatpush2.bf16.msra.mxu0 0
      %1598 = vmatprep.subr.bf16.mxu0 0
      %1599 = vmatpush2.bf16.msra.mxu0 0
      %1600 = vmatprep.subr.bf16.mxu0 0
      %1601 = vmatpush2.bf16.msra.mxu0 0
      %1602 = vmatprep.subr.bf16.mxu0 0
      %1603 = vmatpush2.bf16.msra.mxu0 0
      %1604 = vmatprep.subr.bf16.mxu0 0
      %1605 = vmatpush2.bf16.msra.mxu0 0
      %1606 = vmatprep.subr.bf16.mxu0 0
      %1607 = vmatpush2.bf16.msra.mxu0 0
      %1608 = vmatprep.mubr.bf16.mxu0 0
      %1609 = vmatmul.mubr.bf16.gmra.mxu0 %v1571
      %v1610 = vpop.f32.mrf.mxu0
      %v1611 = vadd.f32 0.0, %v1610
      %v1612 = vpop.f32.mrf.mxu0
      %v1613 = vpop.f32.mrf.mxu0
      %v1614 = vpop.f32.mrf.mxu0
      %1615 = vdwg.mxu0
      %v1617 = vsel %vm1476, %v1057, 0
      %v1620 = vsel %vm1480, %v1475, 0
      %1622 = vmatprep.subr.bf16.mxu0 0
      %1623 = vmatpush1.bf16.msra.mxu0 0
      %1624 = vmatprep.subr.bf16.mxu0 0
      %1625 = vmatpush1.bf16.msra.mxu0 0
      %1626 = vmatprep.subr.bf16.mxu0 0
      %1627 = vmatpush1.bf16.msra.mxu0 0
      %1628 = vmatprep.subr.bf16.mxu0 0
      %1629 = vmatpush1.bf16.msra.mxu0 0
      %1630 = vmatprep.subr.bf16.mxu0 0
      %1631 = vmatpush1.bf16.msra.mxu0 0
      %1632 = vmatprep.subr.bf16.mxu0 0
      %1633 = vmatpush1.bf16.msra.mxu0 0
      %1634 = vmatprep.subr.bf16.mxu0 0
      %1635 = vmatpush1.bf16.msra.mxu0 0
      %1636 = vmatprep.subr.bf16.mxu0 0
      %1637 = vmatpush1.bf16.msra.mxu0 %v1620
      %1638 = vmatprep.subr.bf16.mxu0 0
      %1639 = vmatpush2.bf16.msra.mxu0 0
      %1640 = vmatprep.subr.bf16.mxu0 0
      %1641 = vmatpush2.bf16.msra.mxu0 0
      %1642 = vmatprep.subr.bf16.mxu0 0
      %1643 = vmatpush2.bf16.msra.mxu0 0
      %1644 = vmatprep.subr.bf16.mxu0 0
      %1645 = vmatpush2.bf16.msra.mxu0 0
      %1646 = vmatprep.subr.bf16.mxu0 0
      %1647 = vmatpush2.bf16.msra.mxu0 0
      %1648 = vmatprep.subr.bf16.mxu0 0
      %1649 = vmatpush2.bf16.msra.mxu0 0
      %1650 = vmatprep.subr.bf16.mxu0 0
      %1651 = vmatpush2.bf16.msra.mxu0 0
      %1652 = vmatprep.subr.bf16.mxu0 0
      %1653 = vmatpush2.bf16.msra.mxu0 0
      %1654 = vmatprep.mubr.bf16.mxu0 0
      %1655 = vmatmul.mubr.bf16.gmra.mxu0 %v1617
      %v1656 = vpop.f32.mrf.mxu0
      %v1657 = vadd.f32 0.0, %v1656
      %v1658 = vpop.f32.mrf.mxu0
      %v1659 = vpop.f32.mrf.mxu0
      %v1660 = vpop.f32.mrf.mxu0
      %1661 = vdwg.mxu0
      %v1662 = vmul.f32 %v1519, 0.35355338
      %v1663 = vmul.f32 %v1565, 0.35355338
      %v1664 = vmul.f32 %v1611, 0.35355338
      %v1665 = vmul.f32 %v1657, 0.35355338
      %v1666 = vld [vmem:[%s598] sm:$0x1]
      %v1668 = vlaneseq
      %v1669 = vshrl.u32 %v1668, 7
      %v1670 = vsub.s32 0, %v1669
      %v1671 = vrot.slane %v1666, %v1670
      %v1673 = vadd.f32 %v1662, %v1671
      %v1674 = vadd.f32 %v1663, %v1671
      %v1675 = vadd.f32 %v1664, %v1671
      %v1676 = vadd.f32 %v1665, %v1671
      %v1677 = vsel %vm1476, %v1673, -inf
      %1678 = vmax.xlane.f32.xlu0 %v1677
      %v1679 = vpop.xlane.xlu0 %1678
      %v1680 = vsel %vm1476, %v1674, -inf
      %1681 = vmax.xlane.f32.xlu0 %v1680
      %v1682 = vpop.xlane.xlu0 %1681
      %v1683 = vsel %vm1476, %v1675, -inf
      %1684 = vmax.xlane.f32.xlu0 %v1683
      %v1685 = vpop.xlane.xlu0 %1684
      %v1686 = vsel %vm1476, %v1676, -inf
      %1687 = vmax.xlane.f32.xlu0 %v1686
      %v1688 = vpop.xlane.xlu0 %1687
      %v1689 = vsub.f32 %v1673, %v1679
      %v1690 = vsub.f32 %v1674, %v1682
      %v1691 = vsub.f32 %v1675, %v1685
      %v1692 = vsub.f32 %v1676, %v1688
      %v1693 = vmul.f32 %v1689, 1.442695
      %v1694 = vpow.pop %v1693
      %v1695 = vmul.f32 %v1690, 1.442695
      %v1696 = vpow.pop %v1695
      %v1697 = vmul.f32 %v1691, 1.442695
      %v1698 = vpow.pop %v1697
      %v1699 = vmul.f32 %v1692, 1.442695
      %v1700 = vpow.pop %v1699
      %v1701 = vsel %vm1476, %v1694, 0.0
      %1702 = vadd.xlane.f32.xlu0 %v1701
      %v1703 = vpop.xlane.xlu0 %1702
      %v1704 = vsel %vm1476, %v1696, 0.0
      %1705 = vadd.xlane.f32.xlu0 %v1704
      %v1706 = vpop.xlane.xlu0 %1705
      %v1707 = vsel %vm1476, %v1698, 0.0
      %1708 = vadd.xlane.f32.xlu0 %v1707
      %v1709 = vpop.xlane.xlu0 %1708
      %v1710 = vsel %vm1476, %v1700, 0.0
      %1711 = vadd.xlane.f32.xlu0 %v1710
      %v1712 = vpop.xlane.xlu0 %1711
      %v1713 = vrcp.pop %v1703
      %v1714 = vrcp.pop %v1706
      %v1715 = vrcp.pop %v1709
      %v1716 = vrcp.pop %v1712
      %v1717 = vmul.f32 %v1694, %v1713
      %v1718 = vmul.f32 %v1696, %v1714
      %v1719 = vmul.f32 %v1698, %v1715
      %v1720 = vmul.f32 %v1700, %v1716
      %v1721 = vpack.c.bf16 %v1717, %v1717
      %v1722 = vpack.c.bf16 %v1718, %v1718
      %v1723 = vpack.c.bf16 %v1719, %v1719
      %v1724 = vpack.c.bf16 %v1720, %v1720
      %v1725 = vpack.c.bf16 %v952, %v952
      %v1726 = vpack.c.bf16 %v976, %v976
      %v1727 = vpack.c.bf16 %v959, %v959
      %v1728 = vpack.c.bf16 %v977, %v977
      %v1729 = vpack.c.bf16 %v968, %v968
      %v1730 = vpack.c.bf16 %v978, %v978
      %v1731 = vpack.c.bf16 %v975, %v975
      %v1732 = vpack.c.bf16 %v979, %v979
      %1733 = vxpose.xlu0.c.b16.start [1/8] %v1725, 128
      %1734 = vxpose.xlu0.c.b16.cont [2/8] 0, 128
      %1735 = vxpose.xlu0.c.b16.cont [3/8] 0, 128
      %1736 = vxpose.xlu0.c.b16.cont [4/8] 0, 128
      %1737 = vxpose.xlu0.c.b16.cont [5/8] 0, 128
      %1738 = vxpose.xlu0.c.b16.cont [6/8] 0, 128
      %1739 = vxpose.xlu0.c.b16.cont [7/8] 0, 128
      %1740 = vxpose.xlu0.c.b16.end [8/8] 0, 128
      %v1741 = vpop.trf.xlu0
      %v1742 = vpop.trf.xlu0
      %v1743 = vpop.trf.xlu0
      %v1744 = vpop.trf.xlu0
      %v1745 = vpop.trf.xlu0
      %v1746 = vpop.trf.xlu0
      %v1747 = vpop.trf.xlu0
      %v1748 = vpop.trf.xlu0
      %1749 = vxpose.xlu0.c.b16.start [1/8] %v1726, 128
      %1750 = vxpose.xlu0.c.b16.cont [2/8] 0, 128
      %1751 = vxpose.xlu0.c.b16.cont [3/8] 0, 128
      %1752 = vxpose.xlu0.c.b16.cont [4/8] 0, 128
      %1753 = vxpose.xlu0.c.b16.cont [5/8] 0, 128
      %1754 = vxpose.xlu0.c.b16.cont [6/8] 0, 128
      %1755 = vxpose.xlu0.c.b16.cont [7/8] 0, 128
      %1756 = vxpose.xlu0.c.b16.end [8/8] 0, 128
      %v1757 = vpop.trf.xlu0
      %v1758 = vpop.trf.xlu0
      %v1759 = vpop.trf.xlu0
      %v1760 = vpop.trf.xlu0
      %v1761 = vpop.trf.xlu0
      %v1762 = vpop.trf.xlu0
      %v1763 = vpop.trf.xlu0
      %v1764 = vpop.trf.xlu0
      %1765 = vxpose.xlu0.c.b16.start [1/8] %v1727, 128
      %1766 = vxpose.xlu0.c.b16.cont [2/8] 0, 128
      %1767 = vxpose.xlu0.c.b16.cont [3/8] 0, 128
      %1768 = vxpose.xlu0.c.b16.cont [4/8] 0, 128
      %1769 = vxpose.xlu0.c.b16.cont [5/8] 0, 128
      %1770 = vxpose.xlu0.c.b16.cont [6/8] 0, 128
      %1771 = vxpose.xlu0.c.b16.cont [7/8] 0, 128
      %1772 = vxpose.xlu0.c.b16.end [8/8] 0, 128
      %v1773 = vpop.trf.xlu0
      %v1774 = vpop.trf.xlu0
      %v1775 = vpop.trf.xlu0
      %v1776 = vpop.trf.xlu0
      %v1777 = vpop.trf.xlu0
      %v1778 = vpop.trf.xlu0
      %v1779 = vpop.trf.xlu0
      %v1780 = vpop.trf.xlu0
      %1781 = vxpose.xlu0.c.b16.start [1/8] %v1728, 128
      %1782 = vxpose.xlu0.c.b16.cont [2/8] 0, 128
      %1783 = vxpose.xlu0.c.b16.cont [3/8] 0, 128
      %1784 = vxpose.xlu0.c.b16.cont [4/8] 0, 128
      %1785 = vxpose.xlu0.c.b16.cont [5/8] 0, 128
      %1786 = vxpose.xlu0.c.b16.cont [6/8] 0, 128
      %1787 = vxpose.xlu0.c.b16.cont [7/8] 0, 128
      %1788 = vxpose.xlu0.c.b16.end [8/8] 0, 128
      %v1789 = vpop.trf.xlu0
      %v1790 = vpop.trf.xlu0
      %v1791 = vpop.trf.xlu0
      %v1792 = vpop.trf.xlu0
      %v1793 = vpop.trf.xlu0
      %v1794 = vpop.trf.xlu0
      %v1795 = vpop.trf.xlu0
      %v1796 = vpop.trf.xlu0
      %1797 = vxpose.xlu0.c.b16.start [1/8] %v1729, 128
      %1798 = vxpose.xlu0.c.b16.cont [2/8] 0, 128
      %1799 = vxpose.xlu0.c.b16.cont [3/8] 0, 128
      %1800 = vxpose.xlu0.c.b16.cont [4/8] 0, 128
      %1801 = vxpose.xlu0.c.b16.cont [5/8] 0, 128
      %1802 = vxpose.xlu0.c.b16.cont [6/8] 0, 128
      %1803 = vxpose.xlu0.c.b16.cont [7/8] 0, 128
      %1804 = vxpose.xlu0.c.b16.end [8/8] 0, 128
      %v1805 = vpop.trf.xlu0
      %v1806 = vpop.trf.xlu0
      %v1807 = vpop.trf.xlu0
      %v1808 = vpop.trf.xlu0
      %v1809 = vpop.trf.xlu0
      %v1810 = vpop.trf.xlu0
      %v1811 = vpop.trf.xlu0
      %v1812 = vpop.trf.xlu0
      %1813 = vxpose.xlu0.c.b16.start [1/8] %v1730, 128
      %1814 = vxpose.xlu0.c.b16.cont [2/8] 0, 128
      %1815 = vxpose.xlu0.c.b16.cont [3/8] 0, 128
      %1816 = vxpose.xlu0.c.b16.cont [4/8] 0, 128
      %1817 = vxpose.xlu0.c.b16.cont [5/8] 0, 128
      %1818 = vxpose.xlu0.c.b16.cont [6/8] 0, 128
      %1819 = vxpose.xlu0.c.b16.cont [7/8] 0, 128
      %1820 = vxpose.xlu0.c.b16.end [8/8] 0, 128
      %v1821 = vpop.trf.xlu0
      %v1822 = vpop.trf.xlu0
      %v1823 = vpop.trf.xlu0
      %v1824 = vpop.trf.xlu0
      %v1825 = vpop.trf.xlu0
      %v1826 = vpop.trf.xlu0
      %v1827 = vpop.trf.xlu0
      %v1828 = vpop.trf.xlu0
      %1829 = vxpose.xlu0.c.b16.start [1/8] %v1731, 128
      %1830 = vxpose.xlu0.c.b16.cont [2/8] 0, 128
      %1831 = vxpose.xlu0.c.b16.cont [3/8] 0, 128
      %1832 = vxpose.xlu0.c.b16.cont [4/8] 0, 128
      %1833 = vxpose.xlu0.c.b16.cont [5/8] 0, 128
      %1834 = vxpose.xlu0.c.b16.cont [6/8] 0, 128
      %1835 = vxpose.xlu0.c.b16.cont [7/8] 0, 128
      %1836 = vxpose.xlu0.c.b16.end [8/8] 0, 128
      %v1837 = vpop.trf.xlu0
      %v1838 = vpop.trf.xlu0
      %v1839 = vpop.trf.xlu0
      %v1840 = vpop.trf.xlu0
      %v1841 = vpop.trf.xlu0
      %v1842 = vpop.trf.xlu0
      %v1843 = vpop.trf.xlu0
      %v1844 = vpop.trf.xlu0
      %1845 = vxpose.xlu0.c.b16.start [1/8] %v1732, 128
      %1846 = vxpose.xlu0.c.b16.cont [2/8] 0, 128
      %1847 = vxpose.xlu0.c.b16.cont [3/8] 0, 128
      %1848 = vxpose.xlu0.c.b16.cont [4/8] 0, 128
      %1849 = vxpose.xlu0.c.b16.cont [5/8] 0, 128
      %1850 = vxpose.xlu0.c.b16.cont [6/8] 0, 128
      %1851 = vxpose.xlu0.c.b16.cont [7/8] 0, 128
      %1852 = vxpose.xlu0.c.b16.end [8/8] 0, 128
      %v1853 = vpop.trf.xlu0
      %v1854 = vpop.trf.xlu0
      %v1855 = vpop.trf.xlu0
      %v1856 = vpop.trf.xlu0
      %v1857 = vpop.trf.xlu0
      %v1858 = vpop.trf.xlu0
      %v1859 = vpop.trf.xlu0
      %v1860 = vpop.trf.xlu0
      %v1861 = vcombine.low %v1741, %v1805
      %v1863 = vunpack.c.l.s4 1983009808
      %v1864 = vunpack.c.0.s8 %v1863
      %v1865 = vlaneseq
      %v1866 = vshrl.u32 %v1865, 7
      %v1867 = vsub.s32 %v1864, %v1866
      %v1868 = vrot.slane %v1861, %v1867
      %v1869 = vcombine.low %v1773, %v1837
      %v1871 = vunpack.c.l.s4 1983009808
      %v1872 = vunpack.c.0.s8 %v1871
      %v1873 = vlaneseq
      %v1874 = vshrl.u32 %v1873, 7
      %v1875 = vsub.s32 %v1872, %v1874
      %v1876 = vrot.slane %v1869, %v1875
      %v1877 = vcombine.low %v1868, %v1876
      %v1878 = vcombine.high %v1868, %v1876
      %v1880 = vunpack.c.l.s4 1934713408
      %v1881 = vunpack.c.0.s8 %v1880
      %v1882 = vlaneseq
      %v1883 = vshrl.u32 %v1882, 7
      %v1884 = vsub.s32 %v1881, %v1883
      %v1885 = vrot.slane %v1877, %v1884
      %v1887 = vunpack.c.l.s4 1934713408
      %v1888 = vunpack.c.0.s8 %v1887
      %v1889 = vlaneseq
      %v1890 = vshrl.u32 %v1889, 7
      %v1891 = vsub.s32 %v1888, %v1890
      %v1892 = vrot.slane %v1878, %v1891
      %v1893 = vcombine.high %v1885, 0
      %v1894 = vcombine.high %v1892, 0
      %v1895 = vcombine.low %v1757, %v1821
      %v1897 = vunpack.c.l.s4 1983009808
      %v1898 = vunpack.c.0.s8 %v1897
      %v1899 = vlaneseq
      %v1900 = vshrl.u32 %v1899, 7
      %v1901 = vsub.s32 %v1898, %v1900
      %v1902 = vrot.slane %v1895, %v1901
      %v1903 = vcombine.low %v1789, %v1853
      %v1905 = vunpack.c.l.s4 1983009808
      %v1906 = vunpack.c.0.s8 %v1905
      %v1907 = vlaneseq
      %v1908 = vshrl.u32 %v1907, 7
      %v1909 = vsub.s32 %v1906, %v1908
      %v1910 = vrot.slane %v1903, %v1909
      %v1911 = vcombine.low %v1902, %v1910
      %v1912 = vcombine.high %v1902, %v1910
      %v1914 = vunpack.c.l.s4 1934713408
      %v1915 = vunpack.c.0.s8 %v1914
      %v1916 = vlaneseq
      %v1917 = vshrl.u32 %v1916, 7
      %v1918 = vsub.s32 %v1915, %v1917
      %v1919 = vrot.slane %v1911, %v1918
      %v1921 = vunpack.c.l.s4 1934713408
      %v1922 = vunpack.c.0.s8 %v1921
      %v1923 = vlaneseq
      %v1924 = vshrl.u32 %v1923, 7
      %v1925 = vsub.s32 %v1922, %v1924
      %v1926 = vrot.slane %v1912, %v1925
      %v1927 = vcombine.high %v1919, 0
      %v1928 = vcombine.high %v1926, 0
      %v1931 = vpack.i.b16 %v1919, %v1885
      %v1933 = vshrl.u32 %v1885, 16
      %v1934 = vshrl.u32 %v1919, 16
      %v1935 = vpack.i.b16 %v1934, %v1933
      %v1939 = vpack.i.b16 %v1927, %v1893
      %v1941 = vshrl.u32 %v1893, 16
      %v1942 = vshrl.u32 %v1927, 16
      %v1943 = vpack.i.b16 %v1942, %v1941
      %v1947 = vpack.i.b16 %v1926, %v1892
      %v1949 = vshrl.u32 %v1892, 16
      %v1950 = vshrl.u32 %v1926, 16
      %v1951 = vpack.i.b16 %v1950, %v1949
      %v1955 = vpack.i.b16 %v1928, %v1894
      %v1957 = vshrl.u32 %v1894, 16
      %v1958 = vshrl.u32 %v1928, 16
      %v1959 = vpack.i.b16 %v1958, %v1957
      %1961 = vxpose.xlu0.c.b16.start [1/8] %v1931, 128
      %1962 = vxpose.xlu0.c.b16.cont [2/8] 0, 128
      %1963 = vxpose.xlu0.c.b16.cont [3/8] 0, 128
      %1964 = vxpose.xlu0.c.b16.cont [4/8] 0, 128
      %1965 = vxpose.xlu0.c.b16.cont [5/8] 0, 128
      %1966 = vxpose.xlu0.c.b16.cont [6/8] 0, 128
      %1967 = vxpose.xlu0.c.b16.cont [7/8] 0, 128
      %1968 = vxpose.xlu0.c.b16.end [8/8] 0, 128
      %v1969 = vpop.trf.xlu0
      %v1970 = vpop.trf.xlu0
      %v1971 = vpop.trf.xlu0
      %v1972 = vpop.trf.xlu0
      %v1973 = vpop.trf.xlu0
      %v1974 = vpop.trf.xlu0
      %v1975 = vpop.trf.xlu0
      %v1976 = vpop.trf.xlu0
      %1977 = vxpose.xlu0.c.b16.start [1/8] %v1935, 128
      %1978 = vxpose.xlu0.c.b16.cont [2/8] 0, 128
      %1979 = vxpose.xlu0.c.b16.cont [3/8] 0, 128
      %1980 = vxpose.xlu0.c.b16.cont [4/8] 0, 128
      %1981 = vxpose.xlu0.c.b16.cont [5/8] 0, 128
      %1982 = vxpose.xlu0.c.b16.cont [6/8] 0, 128
      %1983 = vxpose.xlu0.c.b16.cont [7/8] 0, 128
      %1984 = vxpose.xlu0.c.b16.end [8/8] 0, 128
      %v1985 = vpop.trf.xlu0
      %v1986 = vpop.trf.xlu0
      %v1987 = vpop.trf.xlu0
      %v1988 = vpop.trf.xlu0
      %v1989 = vpop.trf.xlu0
      %v1990 = vpop.trf.xlu0
      %v1991 = vpop.trf.xlu0
      %v1992 = vpop.trf.xlu0
      %1993 = vxpose.xlu0.c.b16.start [1/8] %v1939, 128
      %1994 = vxpose.xlu0.c.b16.cont [2/8] 0, 128
      %1995 = vxpose.xlu0.c.b16.cont [3/8] 0, 128
      %1996 = vxpose.xlu0.c.b16.cont [4/8] 0, 128
      %1997 = vxpose.xlu0.c.b16.cont [5/8] 0, 128
      %1998 = vxpose.xlu0.c.b16.cont [6/8] 0, 128
      %1999 = vxpose.xlu0.c.b16.cont [7/8] 0, 128
      %2000 = vxpose.xlu0.c.b16.end [8/8] 0, 128
      %v2001 = vpop.trf.xlu0
      %v2002 = vpop.trf.xlu0
      %v2003 = vpop.trf.xlu0
      %v2004 = vpop.trf.xlu0
      %v2005 = vpop.trf.xlu0
      %v2006 = vpop.trf.xlu0
      %v2007 = vpop.trf.xlu0
      %v2008 = vpop.trf.xlu0
      %2009 = vxpose.xlu0.c.b16.start [1/8] %v1943, 128
      %2010 = vxpose.xlu0.c.b16.cont [2/8] 0, 128
      %2011 = vxpose.xlu0.c.b16.cont [3/8] 0, 128
      %2012 = vxpose.xlu0.c.b16.cont [4/8] 0, 128
      %2013 = vxpose.xlu0.c.b16.cont [5/8] 0, 128
      %2014 = vxpose.xlu0.c.b16.cont [6/8] 0, 128
      %2015 = vxpose.xlu0.c.b16.cont [7/8] 0, 128
      %2016 = vxpose.xlu0.c.b16.end [8/8] 0, 128
      %v2017 = vpop.trf.xlu0
      %v2018 = vpop.trf.xlu0
      %v2019 = vpop.trf.xlu0
      %v2020 = vpop.trf.xlu0
      %v2021 = vpop.trf.xlu0
      %v2022 = vpop.trf.xlu0
      %v2023 = vpop.trf.xlu0
      %v2024 = vpop.trf.xlu0
      %2025 = vxpose.xlu0.c.b16.start [1/8] %v1947, 128
      %2026 = vxpose.xlu0.c.b16.cont [2/8] 0, 128
      %2027 = vxpose.xlu0.c.b16.cont [3/8] 0, 128
      %2028 = vxpose.xlu0.c.b16.cont [4/8] 0, 128
      %2029 = vxpose.xlu0.c.b16.cont [5/8] 0, 128
      %2030 = vxpose.xlu0.c.b16.cont [6/8] 0, 128
      %2031 = vxpose.xlu0.c.b16.cont [7/8] 0, 128
      %2032 = vxpose.xlu0.c.b16.end [8/8] 0, 128
      %v2033 = vpop.trf.xlu0
      %v2034 = vpop.trf.xlu0
      %v2035 = vpop.trf.xlu0
      %v2036 = vpop.trf.xlu0
      %v2037 = vpop.trf.xlu0
      %v2038 = vpop.trf.xlu0
      %v2039 = vpop.trf.xlu0
      %v2040 = vpop.trf.xlu0
      %2041 = vxpose.xlu0.c.b16.start [1/8] %v1951, 128
      %2042 = vxpose.xlu0.c.b16.cont [2/8] 0, 128
      %2043 = vxpose.xlu0.c.b16.cont [3/8] 0, 128
      %2044 = vxpose.xlu0.c.b16.cont [4/8] 0, 128
      %2045 = vxpose.xlu0.c.b16.cont [5/8] 0, 128
      %2046 = vxpose.xlu0.c.b16.cont [6/8] 0, 128
      %2047 = vxpose.xlu0.c.b16.cont [7/8] 0, 128
      %2048 = vxpose.xlu0.c.b16.end [8/8] 0, 128
      %v2049 = vpop.trf.xlu0
      %v2050 = vpop.trf.xlu0
      %v2051 = vpop.trf.xlu0
      %v2052 = vpop.trf.xlu0
      %v2053 = vpop.trf.xlu0
      %v2054 = vpop.trf.xlu0
      %v2055 = vpop.trf.xlu0
      %v2056 = vpop.trf.xlu0
      %2057 = vxpose.xlu0.c.b16.start [1/8] %v1955, 128
      %2058 = vxpose.xlu0.c.b16.cont [2/8] 0, 128
      %2059 = vxpose.xlu0.c.b16.cont [3/8] 0, 128
      %2060 = vxpose.xlu0.c.b16.cont [4/8] 0, 128
      %2061 = vxpose.xlu0.c.b16.cont [5/8] 0, 128
      %2062 = vxpose.xlu0.c.b16.cont [6/8] 0, 128
      %2063 = vxpose.xlu0.c.b16.cont [7/8] 0, 128
      %2064 = vxpose.xlu0.c.b16.end [8/8] 0, 128
      %v2065 = vpop.trf.xlu0
      %v2066 = vpop.trf.xlu0
      %v2067 = vpop.trf.xlu0
      %v2068 = vpop.trf.xlu0
      %v2069 = vpop.trf.xlu0
      %v2070 = vpop.trf.xlu0
      %v2071 = vpop.trf.xlu0
      %v2072 = vpop.trf.xlu0
      %2073 = vxpose.xlu0.c.b16.start [1/8] %v1959, 128
      %2074 = vxpose.xlu0.c.b16.cont [2/8] 0, 128
      %2075 = vxpose.xlu0.c.b16.cont [3/8] 0, 128
      %2076 = vxpose.xlu0.c.b16.cont [4/8] 0, 128
      %2077 = vxpose.xlu0.c.b16.cont [5/8] 0, 128
      %2078 = vxpose.xlu0.c.b16.cont [6/8] 0, 128
      %2079 = vxpose.xlu0.c.b16.cont [7/8] 0, 128
      %2080 = vxpose.xlu0.c.b16.end [8/8] 0, 128
      %v2081 = vpop.trf.xlu0
      %v2082 = vpop.trf.xlu0
      %v2083 = vpop.trf.xlu0
      %v2084 = vpop.trf.xlu0
      %v2085 = vpop.trf.xlu0
      %v2086 = vpop.trf.xlu0
      %v2087 = vpop.trf.xlu0
      %v2088 = vpop.trf.xlu0
      %v2089 = vcombine.low %v1969, %v2033
      %v2091 = vunpack.c.l.s4 1983009808
      %v2092 = vunpack.c.0.s8 %v2091
      %v2093 = vlaneseq
      %v2094 = vshrl.u32 %v2093, 7
      %v2095 = vsub.s32 %v2092, %v2094
      %v2096 = vrot.slane %v2089, %v2095
      %v2097 = vcombine.low %v2001, %v2065
      %v2099 = vunpack.c.l.s4 1983009808
      %v2100 = vunpack.c.0.s8 %v2099
      %v2101 = vlaneseq
      %v2102 = vshrl.u32 %v2101, 7
      %v2103 = vsub.s32 %v2100, %v2102
      %v2104 = vrot.slane %v2097, %v2103
      %v2105 = vcombine.low %v2096, %v2104
      %v2107 = vunpack.c.l.s4 1934713408
      %v2108 = vunpack.c.0.s8 %v2107
      %v2109 = vlaneseq
      %v2110 = vshrl.u32 %v2109, 7
      %v2111 = vsub.s32 %v2108, %v2110
      %v2112 = vrot.slane %v2105, %v2111
      %v2113 = vcombine.high %v2112, 0
      %v2114 = vcombine.low %v1985, %v2049
      %v2116 = vunpack.c.l.s4 1983009808
      %v2117 = vunpack.c.0.s8 %v2116
      %v2118 = vlaneseq
      %v2119 = vshrl.u32 %v2118, 7
      %v2120 = vsub.s32 %v2117, %v2119
      %v2121 = vrot.slane %v2114, %v2120
      %v2122 = vcombine.low %v2017, %v2081
      %v2124 = vunpack.c.l.s4 1983009808
      %v2125 = vunpack.c.0.s8 %v2124
      %v2126 = vlaneseq
      %v2127 = vshrl.u32 %v2126, 7
      %v2128 = vsub.s32 %v2125, %v2127
      %v2129 = vrot.slane %v2122, %v2128
      %v2130 = vcombine.low %v2121, %v2129
      %v2132 = vunpack.c.l.s4 1934713408
      %v2133 = vunpack.c.0.s8 %v2132
      %v2134 = vlaneseq
      %v2135 = vshrl.u32 %v2134, 7
      %v2136 = vsub.s32 %v2133, %v2135
      %v2137 = vrot.slane %v2130, %v2136
      %v2138 = vcombine.high %v2137, 0
      %v2141 = vpack.i.b16 %v2137, %v2112
      %v2142 = vshrl.u32 %v2112, 16
      %v2143 = vshrl.u32 %v2137, 16
      %v2144 = vpack.i.b16 %v2143, %v2142
      %v2147 = vpack.i.b16 %v2138, %v2113
      %v2148 = vshrl.u32 %v2113, 16
      %v2149 = vshrl.u32 %v2138, 16
      %v2150 = vpack.i.b16 %v2149, %v2148
      %v2152 = vsel %vm1476, %v2141, 0
      %v2155 = vsel %vm1476, %v1721, 0
      %2157 = vmatprep.subr.bf16.mxu0 0
      %2158 = vmatpush1.bf16.xpose.msra.mxu0 0
      %2159 = vmatprep.subr.bf16.mxu0 0
      %2160 = vmatpush1.bf16.xpose.msra.mxu0 0
      %2161 = vmatprep.subr.bf16.mxu0 0
      %2162 = vmatpush1.bf16.xpose.msra.mxu0 0
      %2163 = vmatprep.subr.bf16.mxu0 0
      %2164 = vmatpush1.bf16.xpose.msra.mxu0 0
      %2165 = vmatprep.subr.bf16.mxu0 0
      %2166 = vmatpush1.bf16.xpose.msra.mxu0 0
      %2167 = vmatprep.subr.bf16.mxu0 0
      %2168 = vmatpush1.bf16.xpose.msra.mxu0 0
      %2169 = vmatprep.subr.bf16.mxu0 0
      %2170 = vmatpush1.bf16.xpose.msra.mxu0 0
      %2171 = vmatprep.subr.bf16.mxu0 0
      %2172 = vmatpush1.bf16.xpose.msra.mxu0 %v2155
      %2173 = vmatprep.subr.bf16.mxu0 0
      %2174 = vmatpush2.bf16.xpose.msra.mxu0 0
      %2175 = vmatprep.subr.bf16.mxu0 0
      %2176 = vmatpush2.bf16.xpose.msra.mxu0 0
      %2177 = vmatprep.subr.bf16.mxu0 0
      %2178 = vmatpush2.bf16.xpose.msra.mxu0 0
      %2179 = vmatprep.subr.bf16.mxu0 0
      %2180 = vmatpush2.bf16.xpose.msra.mxu0 0
      %2181 = vmatprep.subr.bf16.mxu0 0
      %2182 = vmatpush2.bf16.xpose.msra.mxu0 0
      %2183 = vmatprep.subr.bf16.mxu0 0
      %2184 = vmatpush2.bf16.xpose.msra.mxu0 0
      %2185 = vmatprep.subr.bf16.mxu0 0
      %2186 = vmatpush2.bf16.xpose.msra.mxu0 0
      %2187 = vmatprep.subr.bf16.mxu0 0
      %2188 = vmatpush2.bf16.xpose.msra.mxu0 0
      %2189 = vmatprep.mubr.bf16.mxu0 0
      %2190 = vmatmul.mubr.bf16.gmra.mxu0 %v2152
      %v2191 = vpop.f32.mrf.mxu0
      %v2192 = vadd.f32 0.0, %v2191
      %v2193 = vpop.f32.mrf.mxu0
      %v2194 = vpop.f32.mrf.mxu0
      %v2195 = vpop.f32.mrf.mxu0
      %2196 = vdwg.mxu0
      %v2198 = vsel %vm1476, %v2144, 0
      %v2201 = vsel %vm1476, %v1722, 0
      %2203 = vmatprep.subr.bf16.mxu0 0
      %2204 = vmatpush1.bf16.xpose.msra.mxu0 0
      %2205 = vmatprep.subr.bf16.mxu0 0
      %2206 = vmatpush1.bf16.xpose.msra.mxu0 0
      %2207 = vmatprep.subr.bf16.mxu0 0
      %2208 = vmatpush1.bf16.xpose.msra.mxu0 0
      %2209 = vmatprep.subr.bf16.mxu0 0
      %2210 = vmatpush1.bf16.xpose.msra.mxu0 0
      %2211 = vmatprep.subr.bf16.mxu0 0
      %2212 = vmatpush1.bf16.xpose.msra.mxu0 0
      %2213 = vmatprep.subr.bf16.mxu0 0
      %2214 = vmatpush1.bf16.xpose.msra.mxu0 0
      %2215 = vmatprep.subr.bf16.mxu0 0
      %2216 = vmatpush1.bf16.xpose.msra.mxu0 0
      %2217 = vmatprep.subr.bf16.mxu0 0
      %2218 = vmatpush1.bf16.xpose.msra.mxu0 %v2201
      %2219 = vmatprep.subr.bf16.mxu0 0
      %2220 = vmatpush2.bf16.xpose.msra.mxu0 0
      %2221 = vmatprep.subr.bf16.mxu0 0
      %2222 = vmatpush2.bf16.xpose.msra.mxu0 0
      %2223 = vmatprep.subr.bf16.mxu0 0
      %2224 = vmatpush2.bf16.xpose.msra.mxu0 0
      %2225 = vmatprep.subr.bf16.mxu0 0
      %2226 = vmatpush2.bf16.xpose.msra.mxu0 0
      %2227 = vmatprep.subr.bf16.mxu0 0
      %2228 = vmatpush2.bf16.xpose.msra.mxu0 0
      %2229 = vmatprep.subr.bf16.mxu0 0
      %2230 = vmatpush2.bf16.xpose.msra.mxu0 0
      %2231 = vmatprep.subr.bf16.mxu0 0
      %2232 = vmatpush2.bf16.xpose.msra.mxu0 0
      %2233 = vmatprep.subr.bf16.mxu0 0
      %2234 = vmatpush2.bf16.xpose.msra.mxu0 0
      %2235 = vmatprep.mubr.bf16.mxu0 0
      %2236 = vmatmul.mubr.bf16.gmra.mxu0 %v2198
      %v2237 = vpop.f32.mrf.mxu0
      %v2238 = vadd.f32 0.0, %v2237
      %v2239 = vpop.f32.mrf.mxu0
      %v2240 = vpop.f32.mrf.mxu0
      %v2241 = vpop.f32.mrf.mxu0
      %2242 = vdwg.mxu0
      %v2244 = vsel %vm1476, %v2147, 0
      %v2247 = vsel %vm1476, %v1723, 0
      %2249 = vmatprep.subr.bf16.mxu0 0
      %2250 = vmatpush1.bf16.xpose.msra.mxu0 0
      %2251 = vmatprep.subr.bf16.mxu0 0
      %2252 = vmatpush1.bf16.xpose.msra.mxu0 0
      %2253 = vmatprep.subr.bf16.mxu0 0
      %2254 = vmatpush1.bf16.xpose.msra.mxu0 0
      %2255 = vmatprep.subr.bf16.mxu0 0
      %2256 = vmatpush1.bf16.xpose.msra.mxu0 0
      %2257 = vmatprep.subr.bf16.mxu0 0
      %2258 = vmatpush1.bf16.xpose.msra.mxu0 0
      %2259 = vmatprep.subr.bf16.mxu0 0
      %2260 = vmatpush1.bf16.xpose.msra.mxu0 0
      %2261 = vmatprep.subr.bf16.mxu0 0
      %2262 = vmatpush1.bf16.xpose.msra.mxu0 0
      %2263 = vmatprep.subr.bf16.mxu0 0
      %2264 = vmatpush1.bf16.xpose.msra.mxu0 %v2247
      %2265 = vmatprep.subr.bf16.mxu0 0
      %2266 = vmatpush2.bf16.xpose.msra.mxu0 0
      %2267 = vmatprep.subr.bf16.mxu0 0
      %2268 = vmatpush2.bf16.xpose.msra.mxu0 0
      %2269 = vmatprep.subr.bf16.mxu0 0
      %2270 = vmatpush2.bf16.xpose.msra.mxu0 0
      %2271 = vmatprep.subr.bf16.mxu0 0
      %2272 = vmatpush2.bf16.xpose.msra.mxu0 0
      %2273 = vmatprep.subr.bf16.mxu0 0
      %2274 = vmatpush2.bf16.xpose.msra.mxu0 0
      %2275 = vmatprep.subr.bf16.mxu0 0
      %2276 = vmatpush2.bf16.xpose.msra.mxu0 0
      %2277 = vmatprep.subr.bf16.mxu0 0
      %2278 = vmatpush2.bf16.xpose.msra.mxu0 0
      %2279 = vmatprep.subr.bf16.mxu0 0
      %2280 = vmatpush2.bf16.xpose.msra.mxu0 0
      %2281 = vmatprep.mubr.bf16.mxu0 0
      %2282 = vmatmul.mubr.bf16.gmra.mxu0 %v2244
      %v2283 = vpop.f32.mrf.mxu0
      %v2284 = vadd.f32 0.0, %v2283
      %v2285 = vpop.f32.mrf.mxu0
      %v2286 = vpop.f32.mrf.mxu0
      %v2287 = vpop.f32.mrf.mxu0
      %2288 = vdwg.mxu0
      %v2290 = vsel %vm1476, %v2150, 0
      %v2293 = vsel %vm1476, %v1724, 0
      %2295 = vmatprep.subr.bf16.mxu0 0
      %2296 = vmatpush1.bf16.xpose.msra.mxu0 0
      %2297 = vmatprep.subr.bf16.mxu0 0
      %2298 = vmatpush1.bf16.xpose.msra.mxu0 0
      %2299 = vmatprep.subr.bf16.mxu0 0
      %2300 = vmatpush1.bf16.xpose.msra.mxu0 0
      %2301 = vmatprep.subr.bf16.mxu0 0
      %2302 = vmatpush1.bf16.xpose.msra.mxu0 0
      %2303 = vmatprep.subr.bf16.mxu0 0
      %2304 = vmatpush1.bf16.xpose.msra.mxu0 0
      %2305 = vmatprep.subr.bf16.mxu0 0
      %2306 = vmatpush1.bf16.xpose.msra.mxu0 0
      %2307 = vmatprep.subr.bf16.mxu0 0
      %2308 = vmatpush1.bf16.xpose.msra.mxu0 0
      %2309 = vmatprep.subr.bf16.mxu0 0
      %2310 = vmatpush1.bf16.xpose.msra.mxu0 %v2293
      %2311 = vmatprep.subr.bf16.mxu0 0
      %2312 = vmatpush2.bf16.xpose.msra.mxu0 0
      %2313 = vmatprep.subr.bf16.mxu0 0
      %2314 = vmatpush2.bf16.xpose.msra.mxu0 0
      %2315 = vmatprep.subr.bf16.mxu0 0
      %2316 = vmatpush2.bf16.xpose.msra.mxu0 0
      %2317 = vmatprep.subr.bf16.mxu0 0
      %2318 = vmatpush2.bf16.xpose.msra.mxu0 0
      %2319 = vmatprep.subr.bf16.mxu0 0
      %2320 = vmatpush2.bf16.xpose.msra.mxu0 0
      %2321 = vmatprep.subr.bf16.mxu0 0
      %2322 = vmatpush2.bf16.xpose.msra.mxu0 0
      %2323 = vmatprep.subr.bf16.mxu0 0
      %2324 = vmatpush2.bf16.xpose.msra.mxu0 0
      %2325 = vmatprep.subr.bf16.mxu0 0
      %2326 = vmatpush2.bf16.xpose.msra.mxu0 0
      %2327 = vmatprep.mubr.bf16.mxu0 0
      %2328 = vmatmul.mubr.bf16.gmra.mxu0 %v2290
      %v2329 = vpop.f32.mrf.mxu0
      %v2330 = vadd.f32 0.0, %v2329
      %v2331 = vpop.f32.mrf.mxu0
      %v2332 = vpop.f32.mrf.mxu0
      %v2333 = vpop.f32.mrf.mxu0
      %2334 = vdwg.mxu0
      %2335 = vxpose.xlu0.b32.start [1/16] %v2192, 128
      %2336 = vxpose.xlu0.b32.cont [2/16] 0.0, 128
      %2337 = vxpose.xlu0.b32.cont [3/16] 0.0, 128
      %2338 = vxpose.xlu0.b32.cont [4/16] 0.0, 128
      %2339 = vxpose.xlu0.b32.cont [5/16] 0.0, 128
      %2340 = vxpose.xlu0.b32.cont [6/16] 0.0, 128
      %2341 = vxpose.xlu0.b32.cont [7/16] 0.0, 128
      %2342 = vxpose.xlu0.b32.cont [8/16] 0.0, 128
      %2343 = vxpose.xlu0.b32.cont [9/16] 0.0, 128
      %2344 = vxpose.xlu0.b32.cont [10/16] 0.0, 128
      %2345 = vxpose.xlu0.b32.cont [11/16] 0.0, 128
      %2346 = vxpose.xlu0.b32.cont [12/16] 0.0, 128
      %2347 = vxpose.xlu0.b32.cont [13/16] 0.0, 128
      %2348 = vxpose.xlu0.b32.cont [14/16] 0.0, 128
      %2349 = vxpose.xlu0.b32.cont [15/16] 0.0, 128
      %2350 = vxpose.xlu0.b32.end [16/16] 0.0, 128
      %v2351 = vpop.trf.xlu0
      %v2352 = vpop.trf.xlu0
      %v2353 = vpop.trf.xlu0
      %v2354 = vpop.trf.xlu0
      %v2355 = vpop.trf.xlu0
      %v2356 = vpop.trf.xlu0
      %v2357 = vpop.trf.xlu0
      %v2358 = vpop.trf.xlu0
      %v2359 = vpop.trf.xlu0
      %v2360 = vpop.trf.xlu0
      %v2361 = vpop.trf.xlu0
      %v2362 = vpop.trf.xlu0
      %v2363 = vpop.trf.xlu0
      %v2364 = vpop.trf.xlu0
      %v2365 = vpop.trf.xlu0
      %v2366 = vpop.trf.xlu0
      %2367 = vxpose.xlu0.b32.start [1/16] %v2238, 128
      %2368 = vxpose.xlu0.b32.cont [2/16] 0.0, 128
      %2369 = vxpose.xlu0.b32.cont [3/16] 0.0, 128
      %2370 = vxpose.xlu0.b32.cont [4/16] 0.0, 128
      %2371 = vxpose.xlu0.b32.cont [5/16] 0.0, 128
      %2372 = vxpose.xlu0.b32.cont [6/16] 0.0, 128
      %2373 = vxpose.xlu0.b32.cont [7/16] 0.0, 128
      %2374 = vxpose.xlu0.b32.cont [8/16] 0.0, 128
      %2375 = vxpose.xlu0.b32.cont [9/16] 0.0, 128
      %2376 = vxpose.xlu0.b32.cont [10/16] 0.0, 128
      %2377 = vxpose.xlu0.b32.cont [11/16] 0.0, 128
      %2378 = vxpose.xlu0.b32.cont [12/16] 0.0, 128
      %2379 = vxpose.xlu0.b32.cont [13/16] 0.0, 128
      %2380 = vxpose.xlu0.b32.cont [14/16] 0.0, 128
      %2381 = vxpose.xlu0.b32.cont [15/16] 0.0, 128
      %2382 = vxpose.xlu0.b32.end [16/16] 0.0, 128
      %v2383 = vpop.trf.xlu0
      %v2384 = vpop.trf.xlu0
      %v2385 = vpop.trf.xlu0
      %v2386 = vpop.trf.xlu0
      %v2387 = vpop.trf.xlu0
      %v2388 = vpop.trf.xlu0
      %v2389 = vpop.trf.xlu0
      %v2390 = vpop.trf.xlu0
      %v2391 = vpop.trf.xlu0
      %v2392 = vpop.trf.xlu0
      %v2393 = vpop.trf.xlu0
      %v2394 = vpop.trf.xlu0
      %v2395 = vpop.trf.xlu0
      %v2396 = vpop.trf.xlu0
      %v2397 = vpop.trf.xlu0
      %v2398 = vpop.trf.xlu0
      %2399 = vxpose.xlu0.b32.start [1/16] %v2284, 128
      %2400 = vxpose.xlu0.b32.cont [2/16] 0.0, 128
      %2401 = vxpose.xlu0.b32.cont [3/16] 0.0, 128
      %2402 = vxpose.xlu0.b32.cont [4/16] 0.0, 128
      %2403 = vxpose.xlu0.b32.cont [5/16] 0.0, 128
      %2404 = vxpose.xlu0.b32.cont [6/16] 0.0, 128
      %2405 = vxpose.xlu0.b32.cont [7/16] 0.0, 128
      %2406 = vxpose.xlu0.b32.cont [8/16] 0.0, 128
      %2407 = vxpose.xlu0.b32.cont [9/16] 0.0, 128
      %2408 = vxpose.xlu0.b32.cont [10/16] 0.0, 128
      %2409 = vxpose.xlu0.b32.cont [11/16] 0.0, 128
      %2410 = vxpose.xlu0.b32.cont [12/16] 0.0, 128
      %2411 = vxpose.xlu0.b32.cont [13/16] 0.0, 128
      %2412 = vxpose.xlu0.b32.cont [14/16] 0.0, 128
      %2413 = vxpose.xlu0.b32.cont [15/16] 0.0, 128
      %2414 = vxpose.xlu0.b32.end [16/16] 0.0, 128
      %v2415 = vpop.trf.xlu0
      %v2416 = vpop.trf.xlu0
      %v2417 = vpop.trf.xlu0
      %v2418 = vpop.trf.xlu0
      %v2419 = vpop.trf.xlu0
      %v2420 = vpop.trf.xlu0
      %v2421 = vpop.trf.xlu0
      %v2422 = vpop.trf.xlu0
      %v2423 = vpop.trf.xlu0
      %v2424 = vpop.trf.xlu0
      %v2425 = vpop.trf.xlu0
      %v2426 = vpop.trf.xlu0
      %v2427 = vpop.trf.xlu0
      %v2428 = vpop.trf.xlu0
      %v2429 = vpop.trf.xlu0
      %v2430 = vpop.trf.xlu0
      %2431 = vxpose.xlu0.b32.start [1/16] %v2330, 128
      %2432 = vxpose.xlu0.b32.cont [2/16] 0.0, 128
      %2433 = vxpose.xlu0.b32.cont [3/16] 0.0, 128
      %2434 = vxpose.xlu0.b32.cont [4/16] 0.0, 128
      %2435 = vxpose.xlu0.b32.cont [5/16] 0.0, 128
      %2436 = vxpose.xlu0.b32.cont [6/16] 0.0, 128
      %2437 = vxpose.xlu0.b32.cont [7/16] 0.0, 128
      %2438 = vxpose.xlu0.b32.cont [8/16] 0.0, 128
      %2439 = vxpose.xlu0.b32.cont [9/16] 0.0, 128
      %2440 = vxpose.xlu0.b32.cont [10/16] 0.0, 128
      %2441 = vxpose.xlu0.b32.cont [11/16] 0.0, 128
      %2442 = vxpose.xlu0.b32.cont [12/16] 0.0, 128
      %2443 = vxpose.xlu0.b32.cont [13/16] 0.0, 128
      %2444 = vxpose.xlu0.b32.cont [14/16] 0.0, 128
      %2445 = vxpose.xlu0.b32.cont [15/16] 0.0, 128
      %2446 = vxpose.xlu0.b32.end [16/16] 0.0, 128
      %v2447 = vpop.trf.xlu0
      %v2448 = vpop.trf.xlu0
      %v2449 = vpop.trf.xlu0
      %v2450 = vpop.trf.xlu0
      %v2451 = vpop.trf.xlu0
      %v2452 = vpop.trf.xlu0
      %v2453 = vpop.trf.xlu0
      %v2454 = vpop.trf.xlu0
      %v2455 = vpop.trf.xlu0
      %v2456 = vpop.trf.xlu0
      %v2457 = vpop.trf.xlu0
      %v2458 = vpop.trf.xlu0
      %v2459 = vpop.trf.xlu0
      %v2460 = vpop.trf.xlu0
      %v2461 = vpop.trf.xlu0
      %v2462 = vpop.trf.xlu0
      %v2463 = vcombine.low %v2351, %v2415
      %v2464 = vcombine.high %v2351, %v2415
      %v2466 = vunpack.c.l.s4 1983009808
      %v2467 = vunpack.c.0.s8 %v2466
      %v2468 = vlaneseq
      %v2469 = vshrl.u32 %v2468, 7
      %v2470 = vsub.s32 %v2467, %v2469
      %v2471 = vrot.slane %v2463, %v2470
      %v2473 = vunpack.c.l.s4 1983009808
      %v2474 = vunpack.c.0.s8 %v2473
      %v2475 = vlaneseq
      %v2476 = vshrl.u32 %v2475, 7
      %v2477 = vsub.s32 %v2474, %v2476
      %v2478 = vrot.slane %v2464, %v2477
      %v2479 = vcombine.low %v2383, %v2447
      %v2480 = vcombine.high %v2383, %v2447
      %v2482 = vunpack.c.l.s4 1983009808
      %v2483 = vunpack.c.0.s8 %v2482
      %v2484 = vlaneseq
      %v2485 = vshrl.u32 %v2484, 7
      %v2486 = vsub.s32 %v2483, %v2485
      %v2487 = vrot.slane %v2479, %v2486
      %v2489 = vunpack.c.l.s4 1983009808
      %v2490 = vunpack.c.0.s8 %v2489
      %v2491 = vlaneseq
      %v2492 = vshrl.u32 %v2491, 7
      %v2493 = vsub.s32 %v2490, %v2492
      %v2494 = vrot.slane %v2480, %v2493
      %v2495 = vcombine.low %v2471, %v2487
      %v2496 = vcombine.high %v2471, %v2487
      %v2498 = vunpack.c.l.s4 1934713408
      %v2499 = vunpack.c.0.s8 %v2498
      %v2500 = vlaneseq
      %v2501 = vshrl.u32 %v2500, 7
      %v2502 = vsub.s32 %v2499, %v2501
      %v2503 = vrot.slane %v2495, %v2502
      %v2505 = vunpack.c.l.s4 1934713408
      %v2506 = vunpack.c.0.s8 %v2505
      %v2507 = vlaneseq
      %v2508 = vshrl.u32 %v2507, 7
      %v2509 = vsub.s32 %v2506, %v2508
      %v2510 = vrot.slane %v2496, %v2509
      %v2511 = vcombine.low %v2478, %v2494
      %v2512 = vcombine.high %v2478, %v2494
      %v2514 = vunpack.c.l.s4 1934713408
      %v2515 = vunpack.c.0.s8 %v2514
      %v2516 = vlaneseq
      %v2517 = vshrl.u32 %v2516, 7
      %v2518 = vsub.s32 %v2515, %v2517
      %v2519 = vrot.slane %v2511, %v2518
      %v2521 = vunpack.c.l.s4 1934713408
      %v2522 = vunpack.c.0.s8 %v2521
      %v2523 = vlaneseq
      %v2524 = vshrl.u32 %v2523, 7
      %v2525 = vsub.s32 %v2522, %v2524
      %v2526 = vrot.slane %v2512, %v2525
      %v2527 = vcombine.high %v2503, 0.0
      %v2528 = vcombine.high %v2510, 0.0
      %v2529 = vcombine.high %v2519, 0.0
      %v2530 = vcombine.high %v2526, 0.0
      %v2531 = vcombine.low %v2503, %v2510
      %v2533 = vunpack.c.l.s4 1983009808
      %v2534 = vunpack.c.0.s8 %v2533
      %v2535 = vlaneseq
      %v2536 = vshrl.u32 %v2535, 7
      %v2537 = vsub.s32 %v2534, %v2536
      %v2538 = vrot.slane %v2531, %v2537
      %v2539 = vcombine.low %v2527, %v2528
      %v2541 = vunpack.c.l.s4 1983009808
      %v2542 = vunpack.c.0.s8 %v2541
      %v2543 = vlaneseq
      %v2544 = vshrl.u32 %v2543, 7
      %v2545 = vsub.s32 %v2542, %v2544
      %v2546 = vrot.slane %v2539, %v2545
      %v2547 = vcombine.low %v2519, %v2526
      %v2549 = vunpack.c.l.s4 1983009808
      %v2550 = vunpack.c.0.s8 %v2549
      %v2551 = vlaneseq
      %v2552 = vshrl.u32 %v2551, 7
      %v2553 = vsub.s32 %v2550, %v2552
      %v2554 = vrot.slane %v2547, %v2553
      %v2555 = vcombine.low %v2529, %v2530
      %v2557 = vunpack.c.l.s4 1983009808
      %v2558 = vunpack.c.0.s8 %v2557
      %v2559 = vlaneseq
      %v2560 = vshrl.u32 %v2559, 7
      %v2561 = vsub.s32 %v2558, %v2560
      %v2562 = vrot.slane %v2555, %v2561
      %v2563 = vcombine.low %v2538, %v2546
      %v2564 = vcombine.high %v2538, %v2546
      %v2566 = vunpack.c.l.s4 1934713408
      %v2567 = vunpack.c.0.s8 %v2566
      %v2568 = vlaneseq
      %v2569 = vshrl.u32 %v2568, 7
      %v2570 = vsub.s32 %v2567, %v2569
      %v2571 = vrot.slane %v2563, %v2570
      %v2573 = vunpack.c.l.s4 1934713408
      %v2574 = vunpack.c.0.s8 %v2573
      %v2575 = vlaneseq
      %v2576 = vshrl.u32 %v2575, 7
      %v2577 = vsub.s32 %v2574, %v2576
      %v2578 = vrot.slane %v2564, %v2577
      %v2579 = vcombine.low %v2554, %v2562
      %v2580 = vcombine.high %v2554, %v2562
      %v2582 = vunpack.c.l.s4 1934713408
      %v2583 = vunpack.c.0.s8 %v2582
      %v2584 = vlaneseq
      %v2585 = vshrl.u32 %v2584, 7
      %v2586 = vsub.s32 %v2583, %v2585
      %v2587 = vrot.slane %v2579, %v2586
      %v2589 = vunpack.c.l.s4 1934713408
      %v2590 = vunpack.c.0.s8 %v2589
      %v2591 = vlaneseq
      %v2592 = vshrl.u32 %v2591, 7
      %v2593 = vsub.s32 %v2590, %v2592
      %v2594 = vrot.slane %v2580, %v2593
      %v2595 = vcombine.low %v2571, %v2587
      %v2596 = vcombine.high %v2571, %v2587
      %v2597 = vcombine.low %v2578, %v2594
      %v2598 = vcombine.high %v2578, %v2594
      %2600 = vrot.lane.b32.xlu0 %v2596, 8
      %v2601 = vpop.permute.xlu0 %2600
      %2604 = vrot.lane.b32.xlu0 %v2597, 16
      %v2605 = vpop.permute.xlu0 %2604
      %2608 = vrot.lane.b32.xlu0 %v2598, 24
      %v2609 = vpop.permute.xlu0 %2608
      %v2611 = vsel %vm1476, %v2595, %v2601
      %vm2612 = vcmask 130048
      %v2613 = vsel %vm2612, %v2611, %v2605
      %vm2614 = vcmask 195584
      %v2615 = vsel %vm2614, %v2613, %v2609
      %v2616 = vpack.c.bf16 %v2615, %v2615
      %v2617 = vld [vmem:[%s7] sm:$0xf]
      %v2618 = vld [vmem:[%s7 + $0x4] sm:$0xf]
      %v2619 = vld [vmem:[%s7 + $0x8] sm:$0xf]
      %v2620 = vld [vmem:[%s7 + $0xc] sm:$0xf]
      %v2621 = vld [vmem:[%s8] sm:$0x1]
      %v2623 = vlaneseq
      %v2624 = vshrl.u32 %v2623, 7
      %v2625 = vsub.s32 0, %v2624
      %v2626 = vrot.slane %v2621, %v2625
      %v2632 = vunpack.c.l.b16 %v2617
      %v2633 = vunpack.c.l.b16 %v2618
      %v2634 = vunpack.c.l.b16 %v2619
      %v2635 = vunpack.c.l.b16 %v2620
      %v2636 = vpack.c.b16 %v2633, %v2632
      %v2637 = vpack.c.b16 %v2635, %v2634
      %v2641 = vsel %vm633, %v2616, 0
      %2643 = vmatprep.subr.bf16.mxu0 0
      %2644 = vmatpush1.bf16.msra.mxu0 0
      %2645 = vmatprep.subr.bf16.mxu0 0
      %2646 = vmatpush1.bf16.msra.mxu0 0
      %2647 = vmatprep.subr.bf16.mxu0 0
      %2648 = vmatpush1.bf16.msra.mxu0 0
      %2649 = vmatprep.subr.bf16.mxu0 0
      %2650 = vmatpush1.bf16.msra.mxu0 0
      %2651 = vmatprep.subr.bf16.mxu0 0
      %2652 = vmatpush1.bf16.msra.mxu0 0
      %2653 = vmatprep.subr.bf16.mxu0 0
      %2654 = vmatpush1.bf16.msra.mxu0 0
      %2655 = vmatprep.subr.bf16.mxu0 0
      %2656 = vmatpush1.bf16.msra.mxu0 %v2637
      %2657 = vmatprep.subr.bf16.mxu0 0
      %2658 = vmatpush1.bf16.msra.mxu0 %v2636
      %2659 = vmatprep.subr.bf16.mxu0 0
      %2660 = vmatpush2.bf16.msra.mxu0 0
      %2661 = vmatprep.subr.bf16.mxu0 0
      %2662 = vmatpush2.bf16.msra.mxu0 0
      %2663 = vmatprep.subr.bf16.mxu0 0
      %2664 = vmatpush2.bf16.msra.mxu0 0
      %2665 = vmatprep.subr.bf16.mxu0 0
      %2666 = vmatpush2.bf16.msra.mxu0 0
      %2667 = vmatprep.subr.bf16.mxu0 0
      %2668 = vmatpush2.bf16.msra.mxu0 0
      %2669 = vmatprep.subr.bf16.mxu0 0
      %2670 = vmatpush2.bf16.msra.mxu0 0
      %2671 = vmatprep.subr.bf16.mxu0 0
      %2672 = vmatpush2.bf16.msra.mxu0 0
      %2673 = vmatprep.subr.bf16.mxu0 0
      %2674 = vmatpush2.bf16.msra.mxu0 0
      %2675 = vmatprep.mubr.bf16.mxu0 0
      %2676 = vmatmul.mubr.bf16.gmra.mxu0 %v2641
      %v2677 = vpop.f32.mrf.mxu0
      %v2678 = vadd.f32 %v2626, %v2677
      %v2679 = vpop.f32.mrf.mxu0
      %v2680 = vpop.f32.mrf.mxu0
      %v2681 = vpop.f32.mrf.mxu0
      %2682 = vdwg.mxu0
      %v2683 = vadd.f32 %v607, %v2678
      %v2684 = vld [vmem:[%s9] sm:$0x1]
      %v2685 = vld [vmem:[%s10] sm:$0x1]
      %v2686 = vsel %vm633, %v2683, 0.0
      %2687 = vadd.xlane.f32.xlu0 %v2686
      %v2688 = vpop.xlane.xlu0 %2687
      %v2689 = vrcp.pop 32.0
      %v2690 = vmul.f32 %v2688, %v2689
      %v2691 = vsub.f32 %v2683, %v2690
      %v2692 = vmul.f32 %v2691, %v2691
      %v2693 = vsel %vm633, %v2692, 0.0
      %2694 = vadd.xlane.f32.xlu0 %v2693
      %v2695 = vpop.xlane.xlu0 %2694
      %v2696 = vmul.f32 %v2695, %v2689
      %v2697 = vadd.f32 %v2696, 1e-05
      %v2698 = vrsqrt.pop %v2697
      %v2699 = vmul.f32 %v2691, %v2698
      %v2701 = vlaneseq
      %v2702 = vshrl.u32 %v2701, 7
      %v2703 = vsub.s32 0, %v2702
      %v2704 = vrot.slane %v2684, %v2703
      %v2706 = vmul.f32 %v2699, %v2704
      %v2708 = vlaneseq
      %v2709 = vshrl.u32 %v2708, 7
      %v2710 = vsub.s32 0, %v2709
      %v2711 = vrot.slane %v2685, %v2710
      %v2713 = vadd.f32 %v2706, %v2711
      %v2714 = vpack.c.bf16 %v2713, %v2713
      %v2715 = vld [vmem:[%s13] sm:$0xff]
      %v2716 = vld [vmem:[%s13 + $0x8] sm:$0xff]
      %v2717 = vld [vmem:[%s13 + $0x10] sm:$0xff]
      %v2718 = vld [vmem:[%s13 + $0x18] sm:$0xff]
      %v2719 = vld [vmem:[%s13 + $0x20] sm:$0xff]
      %v2720 = vld [vmem:[%s13 + $0x28] sm:$0xff]
      %v2721 = vld [vmem:[%s13 + $0x30] sm:$0xff]
      %v2722 = vld [vmem:[%s13 + $0x38] sm:$0xff]
      %v2723 = vld [vmem:[%s13 + $0x40] sm:$0xff]
      %v2724 = vld [vmem:[%s13 + $0x48] sm:$0xff]
      %v2725 = vld [vmem:[%s13 + $0x50] sm:$0xff]
      %v2726 = vld [vmem:[%s13 + $0x58] sm:$0xff]
      %v2727 = vld [vmem:[%s13 + $0x60] sm:$0xff]
      %v2728 = vld [vmem:[%s13 + $0x68] sm:$0xff]
      %v2729 = vld [vmem:[%s13 + $0x70] sm:$0xff]
      %v2730 = vld [vmem:[%s13 + $0x78] sm:$0xff]
      %v2731 = vld [vmem:[%s13 + $0x80] sm:$0xff]
      %v2732 = vld [vmem:[%s13 + $0x88] sm:$0xff]
      %v2733 = vld [vmem:[%s13 + $0x90] sm:$0xff]
      %v2734 = vld [vmem:[%s13 + $0x98] sm:$0xff]
      %v2735 = vld [vmem:[%s13 + $0xa0] sm:$0xff]
      %v2736 = vld [vmem:[%s13 + $0xa8] sm:$0xff]
      %v2737 = vld [vmem:[%s13 + $0xb0] sm:$0xff]
      %v2738 = vld [vmem:[%s13 + $0xb8] sm:$0xff]
      %v2739 = vld [vmem:[%s13 + $0xc0] sm:$0xff]
      %v2740 = vld [vmem:[%s13 + $0xc8] sm:$0xff]
      %v2741 = vld [vmem:[%s13 + $0xd0] sm:$0xff]
      %v2742 = vld [vmem:[%s13 + $0xd8] sm:$0xff]
      %v2743 = vld [vmem:[%s13 + $0xe0] sm:$0xff]
      %v2744 = vld [vmem:[%s13 + $0xe8] sm:$0xff]
      %v2745 = vld [vmem:[%s13 + $0xf0] sm:$0xff]
      %v2746 = vld [vmem:[%s13 + $0xf8] sm:$0xff]
      %v2747 = vld [vmem:[%s14] sm:$0xff]
      %v2748 = vld [vmem:[%s14 + $0x8] sm:$0xff]
      %v2751 = vlaneseq
      %v2752 = vshrl.u32 %v2751, 7
      %v2753 = vsub.s32 0, %v2752
      %v2754 = vrot.slane %v2747, %v2753
      %v2755 = vlaneseq
      %v2756 = vshrl.u32 %v2755, 7
      %v2757 = vsub.s32 1, %v2756
      %v2758 = vrot.slane %v2747, %v2757
      %v2759 = vlaneseq
      %v2760 = vshrl.u32 %v2759, 7
      %v2761 = vsub.s32 2, %v2760
      %v2762 = vrot.slane %v2747, %v2761
      %v2763 = vlaneseq
      %v2764 = vshrl.u32 %v2763, 7
      %v2765 = vsub.s32 3, %v2764
      %v2766 = vrot.slane %v2747, %v2765
      %v2767 = vlaneseq
      %v2768 = vshrl.u32 %v2767, 7
      %v2769 = vsub.s32 4, %v2768
      %v2770 = vrot.slane %v2747, %v2769
      %v2771 = vlaneseq
      %v2772 = vshrl.u32 %v2771, 7
      %v2773 = vsub.s32 5, %v2772
      %v2774 = vrot.slane %v2747, %v2773
      %v2775 = vlaneseq
      %v2776 = vshrl.u32 %v2775, 7
      %v2777 = vsub.s32 6, %v2776
      %v2778 = vrot.slane %v2747, %v2777
      %v2779 = vlaneseq
      %v2780 = vshrl.u32 %v2779, 7
      %v2781 = vsub.s32 7, %v2780
      %v2782 = vrot.slane %v2747, %v2781
      %v2783 = vlaneseq
      %v2784 = vshrl.u32 %v2783, 7
      %v2785 = vsub.s32 0, %v2784
      %v2786 = vrot.slane %v2748, %v2785
      %v2787 = vlaneseq
      %v2788 = vshrl.u32 %v2787, 7
      %v2789 = vsub.s32 1, %v2788
      %v2790 = vrot.slane %v2748, %v2789
      %v2791 = vlaneseq
      %v2792 = vshrl.u32 %v2791, 7
      %v2793 = vsub.s32 2, %v2792
      %v2794 = vrot.slane %v2748, %v2793
      %v2795 = vlaneseq
      %v2796 = vshrl.u32 %v2795, 7
      %v2797 = vsub.s32 3, %v2796
      %v2798 = vrot.slane %v2748, %v2797
      %v2799 = vlaneseq
      %v2800 = vshrl.u32 %v2799, 7
      %v2801 = vsub.s32 4, %v2800
      %v2802 = vrot.slane %v2748, %v2801
      %v2803 = vlaneseq
      %v2804 = vshrl.u32 %v2803, 7
      %v2805 = vsub.s32 5, %v2804
      %v2806 = vrot.slane %v2748, %v2805
      %v2807 = vlaneseq
      %v2808 = vshrl.u32 %v2807, 7
      %v2809 = vsub.s32 6, %v2808
      %v2810 = vrot.slane %v2748, %v2809
      %v2811 = vlaneseq
      %v2812 = vshrl.u32 %v2811, 7
      %v2813 = vsub.s32 7, %v2812
      %v2814 = vrot.slane %v2748, %v2813
      %v2863 = vunpack.c.l.b16 %v2715
      %v2864 = vunpack.c.h.b16 %v2715
      %v2865 = vunpack.c.l.b16 %v2716
      %v2866 = vunpack.c.h.b16 %v2716
      %v2867 = vunpack.c.l.b16 %v2717
      %v2868 = vunpack.c.h.b16 %v2717
      %v2869 = vunpack.c.l.b16 %v2718
      %v2870 = vunpack.c.h.b16 %v2718
      %v2871 = vunpack.c.l.b16 %v2719
      %v2872 = vunpack.c.h.b16 %v2719
      %v2873 = vunpack.c.l.b16 %v2720
      %v2874 = vunpack.c.h.b16 %v2720
      %v2875 = vunpack.c.l.b16 %v2721
      %v2876 = vunpack.c.h.b16 %v2721
      %v2877 = vunpack.c.l.b16 %v2722
      %v2878 = vunpack.c.h.b16 %v2722
      %v2879 = vunpack.c.l.b16 %v2723
      %v2880 = vunpack.c.h.b16 %v2723
      %v2881 = vunpack.c.l.b16 %v2724
      %v2882 = vunpack.c.h.b16 %v2724
      %v2883 = vunpack.c.l.b16 %v2725
      %v2884 = vunpack.c.h.b16 %v2725
      %v2885 = vunpack.c.l.b16 %v2726
      %v2886 = vunpack.c.h.b16 %v2726
      %v2887 = vunpack.c.l.b16 %v2727
      %v2888 = vunpack.c.h.b16 %v2727
      %v2889 = vunpack.c.l.b16 %v2728
      %v2890 = vunpack.c.h.b16 %v2728
      %v2891 = vunpack.c.l.b16 %v2729
      %v2892 = vunpack.c.h.b16 %v2729
      %v2893 = vunpack.c.l.b16 %v2730
      %v2894 = vunpack.c.h.b16 %v2730
      %v2895 = vunpack.c.l.b16 %v2731
      %v2896 = vunpack.c.h.b16 %v2731
      %v2897 = vunpack.c.l.b16 %v2732
      %v2898 = vunpack.c.h.b16 %v2732
      %v2899 = vunpack.c.l.b16 %v2733
      %v2900 = vunpack.c.h.b16 %v2733
      %v2901 = vunpack.c.l.b16 %v2734
      %v2902 = vunpack.c.h.b16 %v2734
      %v2903 = vunpack.c.l.b16 %v2735
      %v2904 = vunpack.c.h.b16 %v2735
      %v2905 = vunpack.c.l.b16 %v2736
      %v2906 = vunpack.c.h.b16 %v2736
      %v2907 = vunpack.c.l.b16 %v2737
      %v2908 = vunpack.c.h.b16 %v2737
      %v2909 = vunpack.c.l.b16 %v2738
      %v2910 = vunpack.c.h.b16 %v2738
      %v2911 = vunpack.c.l.b16 %v2739
      %v2912 = vunpack.c.h.b16 %v2739
      %v2913 = vunpack.c.l.b16 %v2740
      %v2914 = vunpack.c.h.b16 %v2740
      %v2915 = vunpack.c.l.b16 %v2741
      %v2916 = vunpack.c.h.b16 %v2741
      %v2917 = vunpack.c.l.b16 %v2742
      %v2918 = vunpack.c.h.b16 %v2742
      %v2919 = vunpack.c.l.b16 %v2743
      %v2920 = vunpack.c.h.b16 %v2743
      %v2921 = vunpack.c.l.b16 %v2744
      %v2922 = vunpack.c.h.b16 %v2744
      %v2923 = vunpack.c.l.b16 %v2745
      %v2924 = vunpack.c.h.b16 %v2745
      %v2925 = vunpack.c.l.b16 %v2746
      %v2926 = vunpack.c.h.b16 %v2746
      %v2927 = vpack.c.b16 %v2879, %v2863
      %v2928 = vpack.c.b16 %v2880, %v2864
      %v2929 = vpack.c.b16 %v2881, %v2865
      %v2930 = vpack.c.b16 %v2882, %v2866
      %v2931 = vpack.c.b16 %v2883, %v2867
      %v2932 = vpack.c.b16 %v2884, %v2868
      %v2933 = vpack.c.b16 %v2885, %v2869
      %v2934 = vpack.c.b16 %v2886, %v2870
      %v2935 = vpack.c.b16 %v2887, %v2871
      %v2936 = vpack.c.b16 %v2888, %v2872
      %v2937 = vpack.c.b16 %v2889, %v2873
      %v2938 = vpack.c.b16 %v2890, %v2874
      %v2939 = vpack.c.b16 %v2891, %v2875
      %v2940 = vpack.c.b16 %v2892, %v2876
      %v2941 = vpack.c.b16 %v2893, %v2877
      %v2942 = vpack.c.b16 %v2894, %v2878
      %v2943 = vpack.c.b16 %v2911, %v2895
      %v2944 = vpack.c.b16 %v2912, %v2896
      %v2945 = vpack.c.b16 %v2913, %v2897
      %v2946 = vpack.c.b16 %v2914, %v2898
      %v2947 = vpack.c.b16 %v2915, %v2899
      %v2948 = vpack.c.b16 %v2916, %v2900
      %v2949 = vpack.c.b16 %v2917, %v2901
      %v2950 = vpack.c.b16 %v2918, %v2902
      %v2951 = vpack.c.b16 %v2919, %v2903
      %v2952 = vpack.c.b16 %v2920, %v2904
      %v2953 = vpack.c.b16 %v2921, %v2905
      %v2954 = vpack.c.b16 %v2922, %v2906
      %v2955 = vpack.c.b16 %v2923, %v2907
      %v2956 = vpack.c.b16 %v2924, %v2908
      %v2957 = vpack.c.b16 %v2925, %v2909
      %v2958 = vpack.c.b16 %v2926, %v2910
      %v2992 = vsel %vm633, %v2714, 0
      %2994 = vmatprep.subr.bf16.mxu0 0
      %2995 = vmatpush1.bf16.msra.mxu0 0
      %2996 = vmatprep.subr.bf16.mxu0 0
      %2997 = vmatpush1.bf16.msra.mxu0 0
      %2998 = vmatprep.subr.bf16.mxu0 0
      %2999 = vmatpush1.bf16.msra.mxu0 0
      %3000 = vmatprep.subr.bf16.mxu0 0
      %3001 = vmatpush1.bf16.msra.mxu0 0
      %3002 = vmatprep.subr.bf16.mxu0 0
      %3003 = vmatpush1.bf16.msra.mxu0 0
      %3004 = vmatprep.subr.bf16.mxu0 0
      %3005 = vmatpush1.bf16.msra.mxu0 0
      %3006 = vmatprep.subr.bf16.mxu0 %v2944
      %3007 = vmatpush1.bf16.msra.mxu0 %v2943
      %3008 = vmatprep.subr.bf16.mxu0 %v2928
      %3009 = vmatpush1.bf16.msra.mxu0 %v2927
      %3010 = vmatprep.subr.bf16.mxu0 0
      %3011 = vmatpush2.bf16.msra.mxu0 0
      %3012 = vmatprep.subr.bf16.mxu0 0
      %3013 = vmatpush2.bf16.msra.mxu0 0
      %3014 = vmatprep.subr.bf16.mxu0 0
      %3015 = vmatpush2.bf16.msra.mxu0 0
      %3016 = vmatprep.subr.bf16.mxu0 0
      %3017 = vmatpush2.bf16.msra.mxu0 0
      %3018 = vmatprep.subr.bf16.mxu0 0
      %3019 = vmatpush2.bf16.msra.mxu0 0
      %3020 = vmatprep.subr.bf16.mxu0 0
      %3021 = vmatpush2.bf16.msra.mxu0 0
      %3022 = vmatprep.subr.bf16.mxu0 0
      %3023 = vmatpush2.bf16.msra.mxu0 0
      %3024 = vmatprep.subr.bf16.mxu0 0
      %3025 = vmatpush2.bf16.msra.mxu0 0
      %3026 = vmatprep.mubr.bf16.mxu0 0
      %3027 = vmatmul.mubr.bf16.gmra.mxu0 %v2992
      %v3028 = vpop.f32.mrf.mxu0
      %v3029 = vadd.f32 %v2754, %v3028
      %v3030 = vpop.f32.mrf.mxu0
      %v3031 = vadd.f32 %v2758, %v3030
      %v3032 = vpop.f32.mrf.mxu0
      %v3033 = vpop.f32.mrf.mxu0
      %3034 = vdwg.mxu0
      %3035 = vmatprep.subr.bf16.mxu0 0
      %3036 = vmatpush1.bf16.msra.mxu0 0
      %3037 = vmatprep.subr.bf16.mxu0 0
      %3038 = vmatpush1.bf16.msra.mxu0 0
      %3039 = vmatprep.subr.bf16.mxu0 0
      %3040 = vmatpush1.bf16.msra.mxu0 0
      %3041 = vmatprep.subr.bf16.mxu0 0
      %3042 = vmatpush1.bf16.msra.mxu0 0
      %3043 = vmatprep.subr.bf16.mxu0 0
      %3044 = vmatpush1.bf16.msra.mxu0 0
      %3045 = vmatprep.subr.bf16.mxu0 0
      %3046 = vmatpush1.bf16.msra.mxu0 0
      %3047 = vmatprep.subr.bf16.mxu0 %v2946
      %3048 = vmatpush1.bf16.msra.mxu0 %v2945
      %3049 = vmatprep.subr.bf16.mxu0 %v2930
      %3050 = vmatpush1.bf16.msra.mxu0 %v2929
      %3051 = vmatprep.subr.bf16.mxu0 0
      %3052 = vmatpush2.bf16.msra.mxu0 0
      %3053 = vmatprep.subr.bf16.mxu0 0
      %3054 = vmatpush2.bf16.msra.mxu0 0
      %3055 = vmatprep.subr.bf16.mxu0 0
      %3056 = vmatpush2.bf16.msra.mxu0 0
      %3057 = vmatprep.subr.bf16.mxu0 0
      %3058 = vmatpush2.bf16.msra.mxu0 0
      %3059 = vmatprep.subr.bf16.mxu0 0
      %3060 = vmatpush2.bf16.msra.mxu0 0
      %3061 = vmatprep.subr.bf16.mxu0 0
      %3062 = vmatpush2.bf16.msra.mxu0 0
      %3063 = vmatprep.subr.bf16.mxu0 0
      %3064 = vmatpush2.bf16.msra.mxu0 0
      %3065 = vmatprep.subr.bf16.mxu0 0
      %3066 = vmatpush2.bf16.msra.mxu0 0
      %3067 = vmatprep.mubr.bf16.mxu0 0
      %3068 = vmatmul.mubr.bf16.gmra.mxu0 %v2992
      %v3069 = vpop.f32.mrf.mxu0
      %v3070 = vadd.f32 %v2762, %v3069
      %v3071 = vpop.f32.mrf.mxu0
      %v3072 = vadd.f32 %v2766, %v3071
      %v3073 = vpop.f32.mrf.mxu0
      %v3074 = vpop.f32.mrf.mxu0
      %3075 = vdwg.mxu0
      %3076 = vmatprep.subr.bf16.mxu0 0
      %3077 = vmatpush1.bf16.msra.mxu0 0
      %3078 = vmatprep.subr.bf16.mxu0 0
      %3079 = vmatpush1.bf16.msra.mxu0 0
      %3080 = vmatprep.subr.bf16.mxu0 0
      %3081 = vmatpush1.bf16.msra.mxu0 0
      %3082 = vmatprep.subr.bf16.mxu0 0
      %3083 = vmatpush1.bf16.msra.mxu0 0
      %3084 = vmatprep.subr.bf16.mxu0 0
      %3085 = vmatpush1.bf16.msra.mxu0 0
      %3086 = vmatprep.subr.bf16.mxu0 0
      %3087 = vmatpush1.bf16.msra.mxu0 0
      %3088 = vmatprep.subr.bf16.mxu0 %v2948
      %3089 = vmatpush1.bf16.msra.mxu0 %v2947
      %3090 = vmatprep.subr.bf16.mxu0 %v2932
      %3091 = vmatpush1.bf16.msra.mxu0 %v2931
      %3092 = vmatprep.subr.bf16.mxu0 0
      %3093 = vmatpush2.bf16.msra.mxu0 0
      %3094 = vmatprep.subr.bf16.mxu0 0
      %3095 = vmatpush2.bf16.msra.mxu0 0
      %3096 = vmatprep.subr.bf16.mxu0 0
      %3097 = vmatpush2.bf16.msra.mxu0 0
      %3098 = vmatprep.subr.bf16.mxu0 0
      %3099 = vmatpush2.bf16.msra.mxu0 0
      %3100 = vmatprep.subr.bf16.mxu0 0
      %3101 = vmatpush2.bf16.msra.mxu0 0
      %3102 = vmatprep.subr.bf16.mxu0 0
      %3103 = vmatpush2.bf16.msra.mxu0 0
      %3104 = vmatprep.subr.bf16.mxu0 0
      %3105 = vmatpush2.bf16.msra.mxu0 0
      %3106 = vmatprep.subr.bf16.mxu0 0
      %3107 = vmatpush2.bf16.msra.mxu0 0
      %3108 = vmatprep.mubr.bf16.mxu0 0
      %3109 = vmatmul.mubr.bf16.gmra.mxu0 %v2992
      %v3110 = vpop.f32.mrf.mxu0
      %v3111 = vadd.f32 %v2770, %v3110
      %v3112 = vpop.f32.mrf.mxu0
      %v3113 = vadd.f32 %v2774, %v3112
      %v3114 = vpop.f32.mrf.mxu0
      %v3115 = vpop.f32.mrf.mxu0
      %3116 = vdwg.mxu0
      %3117 = vmatprep.subr.bf16.mxu0 0
      %3118 = vmatpush1.bf16.msra.mxu0 0
      %3119 = vmatprep.subr.bf16.mxu0 0
      %3120 = vmatpush1.bf16.msra.mxu0 0
      %3121 = vmatprep.subr.bf16.mxu0 0
      %3122 = vmatpush1.bf16.msra.mxu0 0
      %3123 = vmatprep.subr.bf16.mxu0 0
      %3124 = vmatpush1.bf16.msra.mxu0 0
      %3125 = vmatprep.subr.bf16.mxu0 0
      %3126 = vmatpush1.bf16.msra.mxu0 0
      %3127 = vmatprep.subr.bf16.mxu0 0
      %3128 = vmatpush1.bf16.msra.mxu0 0
      %3129 = vmatprep.subr.bf16.mxu0 %v2950
      %3130 = vmatpush1.bf16.msra.mxu0 %v2949
      %3131 = vmatprep.subr.bf16.mxu0 %v2934
      %3132 = vmatpush1.bf16.msra.mxu0 %v2933
      %3133 = vmatprep.subr.bf16.mxu0 0
      %3134 = vmatpush2.bf16.msra.mxu0 0
      %3135 = vmatprep.subr.bf16.mxu0 0
      %3136 = vmatpush2.bf16.msra.mxu0 0
      %3137 = vmatprep.subr.bf16.mxu0 0
      %3138 = vmatpush2.bf16.msra.mxu0 0
      %3139 = vmatprep.subr.bf16.mxu0 0
      %3140 = vmatpush2.bf16.msra.mxu0 0
      %3141 = vmatprep.subr.bf16.mxu0 0
      %3142 = vmatpush2.bf16.msra.mxu0 0
      %3143 = vmatprep.subr.bf16.mxu0 0
      %3144 = vmatpush2.bf16.msra.mxu0 0
      %3145 = vmatprep.subr.bf16.mxu0 0
      %3146 = vmatpush2.bf16.msra.mxu0 0
      %3147 = vmatprep.subr.bf16.mxu0 0
      %3148 = vmatpush2.bf16.msra.mxu0 0
      %3149 = vmatprep.mubr.bf16.mxu0 0
      %3150 = vmatmul.mubr.bf16.gmra.mxu0 %v2992
      %v3151 = vpop.f32.mrf.mxu0
      %v3152 = vadd.f32 %v2778, %v3151
      %v3153 = vpop.f32.mrf.mxu0
      %v3154 = vadd.f32 %v2782, %v3153
      %v3155 = vpop.f32.mrf.mxu0
      %v3156 = vpop.f32.mrf.mxu0
      %3157 = vdwg.mxu0
      %3158 = vmatprep.subr.bf16.mxu0 0
      %3159 = vmatpush1.bf16.msra.mxu0 0
      %3160 = vmatprep.subr.bf16.mxu0 0
      %3161 = vmatpush1.bf16.msra.mxu0 0
      %3162 = vmatprep.subr.bf16.mxu0 0
      %3163 = vmatpush1.bf16.msra.mxu0 0
      %3164 = vmatprep.subr.bf16.mxu0 0
      %3165 = vmatpush1.bf16.msra.mxu0 0
      %3166 = vmatprep.subr.bf16.mxu0 0
      %3167 = vmatpush1.bf16.msra.mxu0 0
      %3168 = vmatprep.subr.bf16.mxu0 0
      %3169 = vmatpush1.bf16.msra.mxu0 0
      %3170 = vmatprep.subr.bf16.mxu0 %v2952
      %3171 = vmatpush1.bf16.msra.mxu0 %v2951
      %3172 = vmatprep.subr.bf16.mxu0 %v2936
      %3173 = vmatpush1.bf16.msra.mxu0 %v2935
      %3174 = vmatprep.subr.bf16.mxu0 0
      %3175 = vmatpush2.bf16.msra.mxu0 0
      %3176 = vmatprep.subr.bf16.mxu0 0
      %3177 = vmatpush2.bf16.msra.mxu0 0
      %3178 = vmatprep.subr.bf16.mxu0 0
      %3179 = vmatpush2.bf16.msra.mxu0 0
      %3180 = vmatprep.subr.bf16.mxu0 0
      %3181 = vmatpush2.bf16.msra.mxu0 0
      %3182 = vmatprep.subr.bf16.mxu0 0
      %3183 = vmatpush2.bf16.msra.mxu0 0
      %3184 = vmatprep.subr.bf16.mxu0 0
      %3185 = vmatpush2.bf16.msra.mxu0 0
      %3186 = vmatprep.subr.bf16.mxu0 0
      %3187 = vmatpush2.bf16.msra.mxu0 0
      %3188 = vmatprep.subr.bf16.mxu0 0
      %3189 = vmatpush2.bf16.msra.mxu0 0
      %3190 = vmatprep.mubr.bf16.mxu0 0
      %3191 = vmatmul.mubr.bf16.gmra.mxu0 %v2992
      %v3192 = vpop.f32.mrf.mxu0
      %v3193 = vadd.f32 %v2786, %v3192
      %v3194 = vpop.f32.mrf.mxu0
      %v3195 = vadd.f32 %v2790, %v3194
      %v3196 = vpop.f32.mrf.mxu0
      %v3197 = vpop.f32.mrf.mxu0
      %3198 = vdwg.mxu0
      %3199 = vmatprep.subr.bf16.mxu0 0
      %3200 = vmatpush1.bf16.msra.mxu0 0
      %3201 = vmatprep.subr.bf16.mxu0 0
      %3202 = vmatpush1.bf16.msra.mxu0 0
      %3203 = vmatprep.subr.bf16.mxu0 0
      %3204 = vmatpush1.bf16.msra.mxu0 0
      %3205 = vmatprep.subr.bf16.mxu0 0
      %3206 = vmatpush1.bf16.msra.mxu0 0
      %3207 = vmatprep.subr.bf16.mxu0 0
      %3208 = vmatpush1.bf16.msra.mxu0 0
      %3209 = vmatprep.subr.bf16.mxu0 0
      %3210 = vmatpush1.bf16.msra.mxu0 0
      %3211 = vmatprep.subr.bf16.mxu0 %v2954
      %3212 = vmatpush1.bf16.msra.mxu0 %v2953
      %3213 = vmatprep.subr.bf16.mxu0 %v2938
      %3214 = vmatpush1.bf16.msra.mxu0 %v2937
      %3215 = vmatprep.subr.bf16.mxu0 0
      %3216 = vmatpush2.bf16.msra.mxu0 0
      %3217 = vmatprep.subr.bf16.mxu0 0
      %3218 = vmatpush2.bf16.msra.mxu0 0
      %3219 = vmatprep.subr.bf16.mxu0 0
      %3220 = vmatpush2.bf16.msra.mxu0 0
      %3221 = vmatprep.subr.bf16.mxu0 0
      %3222 = vmatpush2.bf16.msra.mxu0 0
      %3223 = vmatprep.subr.bf16.mxu0 0
      %3224 = vmatpush2.bf16.msra.mxu0 0
      %3225 = vmatprep.subr.bf16.mxu0 0
      %3226 = vmatpush2.bf16.msra.mxu0 0
      %3227 = vmatprep.subr.bf16.mxu0 0
      %3228 = vmatpush2.bf16.msra.mxu0 0
      %3229 = vmatprep.subr.bf16.mxu0 0
      %3230 = vmatpush2.bf16.msra.mxu0 0
      %3231 = vmatprep.mubr.bf16.mxu0 0
      %3232 = vmatmul.mubr.bf16.gmra.mxu0 %v2992
      %v3233 = vpop.f32.mrf.mxu0
      %v3234 = vadd.f32 %v2794, %v3233
      %v3235 = vpop.f32.mrf.mxu0
      %v3236 = vadd.f32 %v2798, %v3235
      %v3237 = vpop.f32.mrf.mxu0
      %v3238 = vpop.f32.mrf.mxu0
      %3239 = vdwg.mxu0
      %3240 = vmatprep.subr.bf16.mxu0 0
      %3241 = vmatpush1.bf16.msra.mxu0 0
      %3242 = vmatprep.subr.bf16.mxu0 0
      %3243 = vmatpush1.bf16.msra.mxu0 0
      %3244 = vmatprep.subr.bf16.mxu0 0
      %3245 = vmatpush1.bf16.msra.mxu0 0
      %3246 = vmatprep.subr.bf16.mxu0 0
      %3247 = vmatpush1.bf16.msra.mxu0 0
      %3248 = vmatprep.subr.bf16.mxu0 0
      %3249 = vmatpush1.bf16.msra.mxu0 0
      %3250 = vmatprep.subr.bf16.mxu0 0
      %3251 = vmatpush1.bf16.msra.mxu0 0
      %3252 = vmatprep.subr.bf16.mxu0 %v2956
      %3253 = vmatpush1.bf16.msra.mxu0 %v2955
      %3254 = vmatprep.subr.bf16.mxu0 %v2940
      %3255 = vmatpush1.bf16.msra.mxu0 %v2939
      %3256 = vmatprep.subr.bf16.mxu0 0
      %3257 = vmatpush2.bf16.msra.mxu0 0
      %3258 = vmatprep.subr.bf16.mxu0 0
      %3259 = vmatpush2.bf16.msra.mxu0 0
      %3260 = vmatprep.subr.bf16.mxu0 0
      %3261 = vmatpush2.bf16.msra.mxu0 0
      %3262 = vmatprep.subr.bf16.mxu0 0
      %3263 = vmatpush2.bf16.msra.mxu0 0
      %3264 = vmatprep.subr.bf16.mxu0 0
      %3265 = vmatpush2.bf16.msra.mxu0 0
      %3266 = vmatprep.subr.bf16.mxu0 0
      %3267 = vmatpush2.bf16.msra.mxu0 0
      %3268 = vmatprep.subr.bf16.mxu0 0
      %3269 = vmatpush2.bf16.msra.mxu0 0
      %3270 = vmatprep.subr.bf16.mxu0 0
      %3271 = vmatpush2.bf16.msra.mxu0 0
      %3272 = vmatprep.mubr.bf16.mxu0 0
      %3273 = vmatmul.mubr.bf16.gmra.mxu0 %v2992
      %v3274 = vpop.f32.mrf.mxu0
      %v3275 = vadd.f32 %v2802, %v3274
      %v3276 = vpop.f32.mrf.mxu0
      %v3277 = vadd.f32 %v2806, %v3276
      %v3278 = vpop.f32.mrf.mxu0
      %v3279 = vpop.f32.mrf.mxu0
      %3280 = vdwg.mxu0
      %3281 = vmatprep.subr.bf16.mxu0 0
      %3282 = vmatpush1.bf16.msra.mxu0 0
      %3283 = vmatprep.subr.bf16.mxu0 0
      %3284 = vmatpush1.bf16.msra.mxu0 0
      %3285 = vmatprep.subr.bf16.mxu0 0
      %3286 = vmatpush1.bf16.msra.mxu0 0
      %3287 = vmatprep.subr.bf16.mxu0 0
      %3288 = vmatpush1.bf16.msra.mxu0 0
      %3289 = vmatprep.subr.bf16.mxu0 0
      %3290 = vmatpush1.bf16.msra.mxu0 0
      %3291 = vmatprep.subr.bf16.mxu0 0
      %3292 = vmatpush1.bf16.msra.mxu0 0
      %3293 = vmatprep.subr.bf16.mxu0 %v2958
      %3294 = vmatpush1.bf16.msra.mxu0 %v2957
      %3295 = vmatprep.subr.bf16.mxu0 %v2942
      %3296 = vmatpush1.bf16.msra.mxu0 %v2941
      %3297 = vmatprep.subr.bf16.mxu0 0
      %3298 = vmatpush2.bf16.msra.mxu0 0
      %3299 = vmatprep.subr.bf16.mxu0 0
      %3300 = vmatpush2.bf16.msra.mxu0 0
      %3301 = vmatprep.subr.bf16.mxu0 0
      %3302 = vmatpush2.bf16.msra.mxu0 0
      %3303 = vmatprep.subr.bf16.mxu0 0
      %3304 = vmatpush2.bf16.msra.mxu0 0
      %3305 = vmatprep.subr.bf16.mxu0 0
      %3306 = vmatpush2.bf16.msra.mxu0 0
      %3307 = vmatprep.subr.bf16.mxu0 0
      %3308 = vmatpush2.bf16.msra.mxu0 0
      %3309 = vmatprep.subr.bf16.mxu0 0
      %3310 = vmatpush2.bf16.msra.mxu0 0
      %3311 = vmatprep.subr.bf16.mxu0 0
      %3312 = vmatpush2.bf16.msra.mxu0 0
      %3313 = vmatprep.mubr.bf16.mxu0 0
      %3314 = vmatmul.mubr.bf16.gmra.mxu0 %v2992
      %v3315 = vpop.f32.mrf.mxu0
      %v3316 = vadd.f32 %v2810, %v3315
      %v3317 = vpop.f32.mrf.mxu0
      %v3318 = vadd.f32 %v2814, %v3317
      %v3319 = vpop.f32.mrf.mxu0
      %v3320 = vpop.f32.mrf.mxu0
      %3321 = vdwg.mxu0
      %v3322 = vmax.f32 %v3029, 0.0
      %v3323 = vmax.f32 %v3031, 0.0
      %v3324 = vmax.f32 %v3070, 0.0
      %v3325 = vmax.f32 %v3072, 0.0
      %v3326 = vmax.f32 %v3111, 0.0
      %v3327 = vmax.f32 %v3113, 0.0
      %v3328 = vmax.f32 %v3152, 0.0
      %v3329 = vmax.f32 %v3154, 0.0
      %v3330 = vmax.f32 %v3193, 0.0
      %v3331 = vmax.f32 %v3195, 0.0
      %v3332 = vmax.f32 %v3234, 0.0
      %v3333 = vmax.f32 %v3236, 0.0
      %v3334 = vmax.f32 %v3275, 0.0
      %v3335 = vmax.f32 %v3277, 0.0
      %v3336 = vmax.f32 %v3316, 0.0
      %v3337 = vmax.f32 %v3318, 0.0
      %v3338 = vpack.c.bf16 %v3322, %v3322
      %v3339 = vpack.c.bf16 %v3323, %v3323
      %v3340 = vpack.c.bf16 %v3324, %v3324
      %v3341 = vpack.c.bf16 %v3325, %v3325
      %v3342 = vpack.c.bf16 %v3326, %v3326
      %v3343 = vpack.c.bf16 %v3327, %v3327
      %v3344 = vpack.c.bf16 %v3328, %v3328
      %v3345 = vpack.c.bf16 %v3329, %v3329
      %v3346 = vpack.c.bf16 %v3330, %v3330
      %v3347 = vpack.c.bf16 %v3331, %v3331
      %v3348 = vpack.c.bf16 %v3332, %v3332
      %v3349 = vpack.c.bf16 %v3333, %v3333
      %v3350 = vpack.c.bf16 %v3334, %v3334
      %v3351 = vpack.c.bf16 %v3335, %v3335
      %v3352 = vpack.c.bf16 %v3336, %v3336
      %v3353 = vpack.c.bf16 %v3337, %v3337
      %v3354 = vld [vmem:[%s15] sm:$0xf]
      %v3355 = vld [vmem:[%s15 + $0x4] sm:$0xf]
      %v3356 = vld [vmem:[%s15 + $0x8] sm:$0xf]
      %v3357 = vld [vmem:[%s15 + $0xc] sm:$0xf]
      %v3358 = vld [vmem:[%s15 + $0x10] sm:$0xf]
      %v3359 = vld [vmem:[%s15 + $0x14] sm:$0xf]
      %v3360 = vld [vmem:[%s15 + $0x18] sm:$0xf]
      %v3361 = vld [vmem:[%s15 + $0x1c] sm:$0xf]
      %v3362 = vld [vmem:[%s15 + $0x20] sm:$0xf]
      %v3363 = vld [vmem:[%s15 + $0x24] sm:$0xf]
      %v3364 = vld [vmem:[%s15 + $0x28] sm:$0xf]
      %v3365 = vld [vmem:[%s15 + $0x2c] sm:$0xf]
      %v3366 = vld [vmem:[%s15 + $0x30] sm:$0xf]
      %v3367 = vld [vmem:[%s15 + $0x34] sm:$0xf]
      %v3368 = vld [vmem:[%s15 + $0x38] sm:$0xf]
      %v3369 = vld [vmem:[%s15 + $0x3c] sm:$0xf]
      %v3370 = vld [vmem:[%s15 + $0x40] sm:$0xf]
      %v3371 = vld [vmem:[%s15 + $0x44] sm:$0xf]
      %v3372 = vld [vmem:[%s15 + $0x48] sm:$0xf]
      %v3373 = vld [vmem:[%s15 + $0x4c] sm:$0xf]
      %v3374 = vld [vmem:[%s15 + $0x50] sm:$0xf]
      %v3375 = vld [vmem:[%s15 + $0x54] sm:$0xf]
      %v3376 = vld [vmem:[%s15 + $0x58] sm:$0xf]
      %v3377 = vld [vmem:[%s15 + $0x5c] sm:$0xf]
      %v3378 = vld [vmem:[%s15 + $0x60] sm:$0xf]
      %v3379 = vld [vmem:[%s15 + $0x64] sm:$0xf]
      %v3380 = vld [vmem:[%s15 + $0x68] sm:$0xf]
      %v3381 = vld [vmem:[%s15 + $0x6c] sm:$0xf]
      %v3382 = vld [vmem:[%s15 + $0x70] sm:$0xf]
      %v3383 = vld [vmem:[%s15 + $0x74] sm:$0xf]
      %v3384 = vld [vmem:[%s15 + $0x78] sm:$0xf]
      %v3385 = vld [vmem:[%s15 + $0x7c] sm:$0xf]
      %v3386 = vld [vmem:[%s15 + $0x80] sm:$0xf]
      %v3387 = vld [vmem:[%s15 + $0x84] sm:$0xf]
      %v3388 = vld [vmem:[%s15 + $0x88] sm:$0xf]
      %v3389 = vld [vmem:[%s15 + $0x8c] sm:$0xf]
      %v3390 = vld [vmem:[%s15 + $0x90] sm:$0xf]
      %v3391 = vld [vmem:[%s15 + $0x94] sm:$0xf]
      %v3392 = vld [vmem:[%s15 + $0x98] sm:$0xf]
      %v3393 = vld [vmem:[%s15 + $0x9c] sm:$0xf]
      %v3394 = vld [vmem:[%s15 + $0xa0] sm:$0xf]
      %v3395 = vld [vmem:[%s15 + $0xa4] sm:$0xf]
      %v3396 = vld [vmem:[%s15 + $0xa8] sm:$0xf]
      %v3397 = vld [vmem:[%s15 + $0xac] sm:$0xf]
      %v3398 = vld [vmem:[%s15 + $0xb0] sm:$0xf]
      %v3399 = vld [vmem:[%s15 + $0xb4] sm:$0xf]
      %v3400 = vld [vmem:[%s15 + $0xb8] sm:$0xf]
      %v3401 = vld [vmem:[%s15 + $0xbc] sm:$0xf]
      %v3402 = vld [vmem:[%s15 + $0xc0] sm:$0xf]
      %v3403 = vld [vmem:[%s15 + $0xc4] sm:$0xf]
      %v3404 = vld [vmem:[%s15 + $0xc8] sm:$0xf]
      %v3405 = vld [vmem:[%s15 + $0xcc] sm:$0xf]
      %v3406 = vld [vmem:[%s15 + $0xd0] sm:$0xf]
      %v3407 = vld [vmem:[%s15 + $0xd4] sm:$0xf]
      %v3408 = vld [vmem:[%s15 + $0xd8] sm:$0xf]
      %v3409 = vld [vmem:[%s15 + $0xdc] sm:$0xf]
      %v3410 = vld [vmem:[%s15 + $0xe0] sm:$0xf]
      %v3411 = vld [vmem:[%s15 + $0xe4] sm:$0xf]
      %v3412 = vld [vmem:[%s15 + $0xe8] sm:$0xf]
      %v3413 = vld [vmem:[%s15 + $0xec] sm:$0xf]
      %v3414 = vld [vmem:[%s15 + $0xf0] sm:$0xf]
      %v3415 = vld [vmem:[%s15 + $0xf4] sm:$0xf]
      %v3416 = vld [vmem:[%s15 + $0xf8] sm:$0xf]
      %v3417 = vld [vmem:[%s15 + $0xfc] sm:$0xf]
      %v3418 = vld [vmem:[%s15 + $0x100] sm:$0xf]
      %v3419 = vld [vmem:[%s15 + $0x104] sm:$0xf]
      %v3420 = vld [vmem:[%s15 + $0x108] sm:$0xf]
      %v3421 = vld [vmem:[%s15 + $0x10c] sm:$0xf]
      %v3422 = vld [vmem:[%s15 + $0x110] sm:$0xf]
      %v3423 = vld [vmem:[%s15 + $0x114] sm:$0xf]
      %v3424 = vld [vmem:[%s15 + $0x118] sm:$0xf]
      %v3425 = vld [vmem:[%s15 + $0x11c] sm:$0xf]
      %v3426 = vld [vmem:[%s15 + $0x120] sm:$0xf]
      %v3427 = vld [vmem:[%s15 + $0x124] sm:$0xf]
      %v3428 = vld [vmem:[%s15 + $0x128] sm:$0xf]
      %v3429 = vld [vmem:[%s15 + $0x12c] sm:$0xf]
      %v3430 = vld [vmem:[%s15 + $0x130] sm:$0xf]
      %v3431 = vld [vmem:[%s15 + $0x134] sm:$0xf]
      %v3432 = vld [vmem:[%s15 + $0x138] sm:$0xf]
      %v3433 = vld [vmem:[%s15 + $0x13c] sm:$0xf]
      %v3434 = vld [vmem:[%s15 + $0x140] sm:$0xf]
      %v3435 = vld [vmem:[%s15 + $0x144] sm:$0xf]
      %v3436 = vld [vmem:[%s15 + $0x148] sm:$0xf]
      %v3437 = vld [vmem:[%s15 + $0x14c] sm:$0xf]
      %v3438 = vld [vmem:[%s15 + $0x150] sm:$0xf]
      %v3439 = vld [vmem:[%s15 + $0x154] sm:$0xf]
      %v3440 = vld [vmem:[%s15 + $0x158] sm:$0xf]
      %v3441 = vld [vmem:[%s15 + $0x15c] sm:$0xf]
      %v3442 = vld [vmem:[%s15 + $0x160] sm:$0xf]
      %v3443 = vld [vmem:[%s15 + $0x164] sm:$0xf]
      %v3444 = vld [vmem:[%s15 + $0x168] sm:$0xf]
      %v3445 = vld [vmem:[%s15 + $0x16c] sm:$0xf]
      %v3446 = vld [vmem:[%s15 + $0x170] sm:$0xf]
      %v3447 = vld [vmem:[%s15 + $0x174] sm:$0xf]
      %v3448 = vld [vmem:[%s15 + $0x178] sm:$0xf]
      %v3449 = vld [vmem:[%s15 + $0x17c] sm:$0xf]
      %v3450 = vld [vmem:[%s15 + $0x180] sm:$0xf]
      %v3451 = vld [vmem:[%s15 + $0x184] sm:$0xf]
      %v3452 = vld [vmem:[%s15 + $0x188] sm:$0xf]
      %v3453 = vld [vmem:[%s15 + $0x18c] sm:$0xf]
      %v3454 = vld [vmem:[%s15 + $0x190] sm:$0xf]
      %v3455 = vld [vmem:[%s15 + $0x194] sm:$0xf]
      %v3456 = vld [vmem:[%s15 + $0x198] sm:$0xf]
      %v3457 = vld [vmem:[%s15 + $0x19c] sm:$0xf]
      %v3458 = vld [vmem:[%s15 + $0x1a0] sm:$0xf]
      %v3459 = vld [vmem:[%s15 + $0x1a4] sm:$0xf]
      %v3460 = vld [vmem:[%s15 + $0x1a8] sm:$0xf]
      %v3461 = vld [vmem:[%s15 + $0x1ac] sm:$0xf]
      %v3462 = vld [vmem:[%s15 + $0x1b0] sm:$0xf]
      %v3463 = vld [vmem:[%s15 + $0x1b4] sm:$0xf]
      %v3464 = vld [vmem:[%s15 + $0x1b8] sm:$0xf]
      %v3465 = vld [vmem:[%s15 + $0x1bc] sm:$0xf]
      %v3466 = vld [vmem:[%s15 + $0x1c0] sm:$0xf]
      %v3467 = vld [vmem:[%s15 + $0x1c4] sm:$0xf]
      %v3468 = vld [vmem:[%s15 + $0x1c8] sm:$0xf]
      %v3469 = vld [vmem:[%s15 + $0x1cc] sm:$0xf]
      %v3470 = vld [vmem:[%s15 + $0x1d0] sm:$0xf]
      %v3471 = vld [vmem:[%s15 + $0x1d4] sm:$0xf]
      %v3472 = vld [vmem:[%s15 + $0x1d8] sm:$0xf]
      %v3473 = vld [vmem:[%s15 + $0x1dc] sm:$0xf]
      %v3474 = vld [vmem:[%s15 + $0x1e0] sm:$0xf]
      %v3475 = vld [vmem:[%s15 + $0x1e4] sm:$0xf]
      %v3476 = vld [vmem:[%s15 + $0x1e8] sm:$0xf]
      %v3477 = vld [vmem:[%s15 + $0x1ec] sm:$0xf]
      %v3478 = vld [vmem:[%s15 + $0x1f0] sm:$0xf]
      %v3479 = vld [vmem:[%s15 + $0x1f4] sm:$0xf]
      %v3480 = vld [vmem:[%s15 + $0x1f8] sm:$0xf]
      %v3481 = vld [vmem:[%s15 + $0x1fc] sm:$0xf]
      %v3482 = vld [vmem:[%s15 + $0x200] sm:$0xf]
      %v3483 = vld [vmem:[%s15 + $0x204] sm:$0xf]
      %v3484 = vld [vmem:[%s15 + $0x208] sm:$0xf]
      %v3485 = vld [vmem:[%s15 + $0x20c] sm:$0xf]
      %v3486 = vld [vmem:[%s15 + $0x210] sm:$0xf]
      %v3487 = vld [vmem:[%s15 + $0x214] sm:$0xf]
      %v3488 = vld [vmem:[%s15 + $0x218] sm:$0xf]
      %v3489 = vld [vmem:[%s15 + $0x21c] sm:$0xf]
      %v3490 = vld [vmem:[%s15 + $0x220] sm:$0xf]
      %v3491 = vld [vmem:[%s15 + $0x224] sm:$0xf]
      %v3492 = vld [vmem:[%s15 + $0x228] sm:$0xf]
      %v3493 = vld [vmem:[%s15 + $0x22c] sm:$0xf]
      %v3494 = vld [vmem:[%s15 + $0x230] sm:$0xf]
      %v3495 = vld [vmem:[%s15 + $0x234] sm:$0xf]
      %v3496 = vld [vmem:[%s15 + $0x238] sm:$0xf]
      %v3497 = vld [vmem:[%s15 + $0x23c] sm:$0xf]
      %v3498 = vld [vmem:[%s15 + $0x240] sm:$0xf]
      %v3499 = vld [vmem:[%s15 + $0x244] sm:$0xf]
      %v3500 = vld [vmem:[%s15 + $0x248] sm:$0xf]
      %v3501 = vld [vmem:[%s15 + $0x24c] sm:$0xf]
      %v3502 = vld [vmem:[%s15 + $0x250] sm:$0xf]
      %v3503 = vld [vmem:[%s15 + $0x254] sm:$0xf]
      %v3504 = vld [vmem:[%s15 + $0x258] sm:$0xf]
      %v3505 = vld [vmem:[%s15 + $0x25c] sm:$0xf]
      %v3506 = vld [vmem:[%s15 + $0x260] sm:$0xf]
      %v3507 = vld [vmem:[%s15 + $0x264] sm:$0xf]
      %v3508 = vld [vmem:[%s15 + $0x268] sm:$0xf]
      %v3509 = vld [vmem:[%s15 + $0x26c] sm:$0xf]
      %v3510 = vld [vmem:[%s15 + $0x270] sm:$0xf]
      %v3511 = vld [vmem:[%s15 + $0x274] sm:$0xf]
      %v3512 = vld [vmem:[%s15 + $0x278] sm:$0xf]
      %v3513 = vld [vmem:[%s15 + $0x27c] sm:$0xf]
      %v3514 = vld [vmem:[%s15 + $0x280] sm:$0xf]
      %v3515 = vld [vmem:[%s15 + $0x284] sm:$0xf]
      %v3516 = vld [vmem:[%s15 + $0x288] sm:$0xf]
      %v3517 = vld [vmem:[%s15 + $0x28c] sm:$0xf]
      %v3518 = vld [vmem:[%s15 + $0x290] sm:$0xf]
      %v3519 = vld [vmem:[%s15 + $0x294] sm:$0xf]
      %v3520 = vld [vmem:[%s15 + $0x298] sm:$0xf]
      %v3521 = vld [vmem:[%s15 + $0x29c] sm:$0xf]
      %v3522 = vld [vmem:[%s15 + $0x2a0] sm:$0xf]
      %v3523 = vld [vmem:[%s15 + $0x2a4] sm:$0xf]
      %v3524 = vld [vmem:[%s15 + $0x2a8] sm:$0xf]
      %v3525 = vld [vmem:[%s15 + $0x2ac] sm:$0xf]
      %v3526 = vld [vmem:[%s15 + $0x2b0] sm:$0xf]
      %v3527 = vld [vmem:[%s15 + $0x2b4] sm:$0xf]
      %v3528 = vld [vmem:[%s15 + $0x2b8] sm:$0xf]
      %v3529 = vld [vmem:[%s15 + $0x2bc] sm:$0xf]
      %v3530 = vld [vmem:[%s15 + $0x2c0] sm:$0xf]
      %v3531 = vld [vmem:[%s15 + $0x2c4] sm:$0xf]
      %v3532 = vld [vmem:[%s15 + $0x2c8] sm:$0xf]
      %v3533 = vld [vmem:[%s15 + $0x2cc] sm:$0xf]
      %v3534 = vld [vmem:[%s15 + $0x2d0] sm:$0xf]
      %v3535 = vld [vmem:[%s15 + $0x2d4] sm:$0xf]
      %v3536 = vld [vmem:[%s15 + $0x2d8] sm:$0xf]
      %v3537 = vld [vmem:[%s15 + $0x2dc] sm:$0xf]
      %v3538 = vld [vmem:[%s15 + $0x2e0] sm:$0xf]
      %v3539 = vld [vmem:[%s15 + $0x2e4] sm:$0xf]
      %v3540 = vld [vmem:[%s15 + $0x2e8] sm:$0xf]
      %v3541 = vld [vmem:[%s15 + $0x2ec] sm:$0xf]
      %v3542 = vld [vmem:[%s15 + $0x2f0] sm:$0xf]
      %v3543 = vld [vmem:[%s15 + $0x2f4] sm:$0xf]
      %v3544 = vld [vmem:[%s15 + $0x2f8] sm:$0xf]
      %v3545 = vld [vmem:[%s15 + $0x2fc] sm:$0xf]
      %v3546 = vld [vmem:[%s15 + $0x300] sm:$0xf]
      %v3547 = vld [vmem:[%s15 + $0x304] sm:$0xf]
      %v3548 = vld [vmem:[%s15 + $0x308] sm:$0xf]
      %v3549 = vld [vmem:[%s15 + $0x30c] sm:$0xf]
      %v3550 = vld [vmem:[%s15 + $0x310] sm:$0xf]
      %v3551 = vld [vmem:[%s15 + $0x314] sm:$0xf]
      %v3552 = vld [vmem:[%s15 + $0x318] sm:$0xf]
      %v3553 = vld [vmem:[%s15 + $0x31c] sm:$0xf]
      %v3554 = vld [vmem:[%s15 + $0x320] sm:$0xf]
      %v3555 = vld [vmem:[%s15 + $0x324] sm:$0xf]
      %v3556 = vld [vmem:[%s15 + $0x328] sm:$0xf]
      %v3557 = vld [vmem:[%s15 + $0x32c] sm:$0xf]
      %v3558 = vld [vmem:[%s15 + $0x330] sm:$0xf]
      %v3559 = vld [vmem:[%s15 + $0x334] sm:$0xf]
      %v3560 = vld [vmem:[%s15 + $0x338] sm:$0xf]
      %v3561 = vld [vmem:[%s15 + $0x33c] sm:$0xf]
      %v3562 = vld [vmem:[%s15 + $0x340] sm:$0xf]
      %v3563 = vld [vmem:[%s15 + $0x344] sm:$0xf]
      %v3564 = vld [vmem:[%s15 + $0x348] sm:$0xf]
      %v3565 = vld [vmem:[%s15 + $0x34c] sm:$0xf]
      %v3566 = vld [vmem:[%s15 + $0x350] sm:$0xf]
      %v3567 = vld [vmem:[%s15 + $0x354] sm:$0xf]
      %v3568 = vld [vmem:[%s15 + $0x358] sm:$0xf]
      %v3569 = vld [vmem:[%s15 + $0x35c] sm:$0xf]
      %v3570 = vld [vmem:[%s15 + $0x360] sm:$0xf]
      %v3571 = vld [vmem:[%s15 + $0x364] sm:$0xf]
      %v3572 = vld [vmem:[%s15 + $0x368] sm:$0xf]
      %v3573 = vld [vmem:[%s15 + $0x36c] sm:$0xf]
      %v3574 = vld [vmem:[%s15 + $0x370] sm:$0xf]
      %v3575 = vld [vmem:[%s15 + $0x374] sm:$0xf]
      %v3576 = vld [vmem:[%s15 + $0x378] sm:$0xf]
      %v3577 = vld [vmem:[%s15 + $0x37c] sm:$0xf]
      %v3578 = vld [vmem:[%s15 + $0x380] sm:$0xf]
      %v3579 = vld [vmem:[%s15 + $0x384] sm:$0xf]
      %v3580 = vld [vmem:[%s15 + $0x388] sm:$0xf]
      %v3581 = vld [vmem:[%s15 + $0x38c] sm:$0xf]
      %v3582 = vld [vmem:[%s15 + $0x390] sm:$0xf]
      %v3583 = vld [vmem:[%s15 + $0x394] sm:$0xf]
      %v3584 = vld [vmem:[%s15 + $0x398] sm:$0xf]
      %v3585 = vld [vmem:[%s15 + $0x39c] sm:$0xf]
      %v3586 = vld [vmem:[%s15 + $0x3a0] sm:$0xf]
      %v3587 = vld [vmem:[%s15 + $0x3a4] sm:$0xf]
      %v3588 = vld [vmem:[%s15 + $0x3a8] sm:$0xf]
      %v3589 = vld [vmem:[%s15 + $0x3ac] sm:$0xf]
      %v3590 = vld [vmem:[%s15 + $0x3b0] sm:$0xf]
      %v3591 = vld [vmem:[%s15 + $0x3b4] sm:$0xf]
      %v3592 = vld [vmem:[%s15 + $0x3b8] sm:$0xf]
      %v3593 = vld [vmem:[%s15 + $0x3bc] sm:$0xf]
      %v3594 = vld [vmem:[%s15 + $0x3c0] sm:$0xf]
      %v3595 = vld [vmem:[%s15 + $0x3c4] sm:$0xf]
      %v3596 = vld [vmem:[%s15 + $0x3c8] sm:$0xf]
      %v3597 = vld [vmem:[%s15 + $0x3cc] sm:$0xf]
      %v3598 = vld [vmem:[%s15 + $0x3d0] sm:$0xf]
      %v3599 = vld [vmem:[%s15 + $0x3d4] sm:$0xf]
      %v3600 = vld [vmem:[%s15 + $0x3d8] sm:$0xf]
      %v3601 = vld [vmem:[%s15 + $0x3dc] sm:$0xf]
      %v3602 = vld [vmem:[%s15 + $0x3e0] sm:$0xf]
      %v3603 = vld [vmem:[%s15 + $0x3e4] sm:$0xf]
      %v3604 = vld [vmem:[%s15 + $0x3e8] sm:$0xf]
      %v3605 = vld [vmem:[%s15 + $0x3ec] sm:$0xf]
      %v3606 = vld [vmem:[%s15 + $0x3f0] sm:$0xf]
      %v3607 = vld [vmem:[%s15 + $0x3f4] sm:$0xf]
      %v3608 = vld [vmem:[%s15 + $0x3f8] sm:$0xf]
      %v3609 = vld [vmem:[%s15 + $0x3fc] sm:$0xf]
      %v3610 = vld [vmem:[%s16] sm:$0x1]
      %v3612 = vlaneseq
      %v3613 = vshrl.u32 %v3612, 7
      %v3614 = vsub.s32 0, %v3613
      %v3615 = vrot.slane %v3610, %v3614
      %v3873 = vunpack.c.l.b16 %v3354
      %v3874 = vunpack.c.l.b16 %v3355
      %v3875 = vunpack.c.l.b16 %v3356
      %v3876 = vunpack.c.l.b16 %v3357
      %v3877 = vunpack.c.l.b16 %v3358
      %v3878 = vunpack.c.l.b16 %v3359
      %v3879 = vunpack.c.l.b16 %v3360
      %v3880 = vunpack.c.l.b16 %v3361
      %v3881 = vunpack.c.l.b16 %v3362
      %v3882 = vunpack.c.l.b16 %v3363
      %v3883 = vunpack.c.l.b16 %v3364
      %v3884 = vunpack.c.l.b16 %v3365
      %v3885 = vunpack.c.l.b16 %v3366
      %v3886 = vunpack.c.l.b16 %v3367
      %v3887 = vunpack.c.l.b16 %v3368
      %v3888 = vunpack.c.l.b16 %v3369
      %v3889 = vunpack.c.l.b16 %v3370
      %v3890 = vunpack.c.l.b16 %v3371
      %v3891 = vunpack.c.l.b16 %v3372
      %v3892 = vunpack.c.l.b16 %v3373
      %v3893 = vunpack.c.l.b16 %v3374
      %v3894 = vunpack.c.l.b16 %v3375
      %v3895 = vunpack.c.l.b16 %v3376
      %v3896 = vunpack.c.l.b16 %v3377
      %v3897 = vunpack.c.l.b16 %v3378
      %v3898 = vunpack.c.l.b16 %v3379
      %v3899 = vunpack.c.l.b16 %v3380
      %v3900 = vunpack.c.l.b16 %v3381
      %v3901 = vunpack.c.l.b16 %v3382
      %v3902 = vunpack.c.l.b16 %v3383
      %v3903 = vunpack.c.l.b16 %v3384
      %v3904 = vunpack.c.l.b16 %v3385
      %v3905 = vunpack.c.l.b16 %v3386
      %v3906 = vunpack.c.l.b16 %v3387
      %v3907 = vunpack.c.l.b16 %v3388
      %v3908 = vunpack.c.l.b16 %v3389
      %v3909 = vunpack.c.l.b16 %v3390
      %v3910 = vunpack.c.l.b16 %v3391
      %v3911 = vunpack.c.l.b16 %v3392
      %v3912 = vunpack.c.l.b16 %v3393
      %v3913 = vunpack.c.l.b16 %v3394
      %v3914 = vunpack.c.l.b16 %v3395
      %v3915 = vunpack.c.l.b16 %v3396
      %v3916 = vunpack.c.l.b16 %v3397
      %v3917 = vunpack.c.l.b16 %v3398
      %v3918 = vunpack.c.l.b16 %v3399
      %v3919 = vunpack.c.l.b16 %v3400
      %v3920 = vunpack.c.l.b16 %v3401
      %v3921 = vunpack.c.l.b16 %v3402
      %v3922 = vunpack.c.l.b16 %v3403
      %v3923 = vunpack.c.l.b16 %v3404
      %v3924 = vunpack.c.l.b16 %v3405
      %v3925 = vunpack.c.l.b16 %v3406
      %v3926 = vunpack.c.l.b16 %v3407
      %v3927 = vunpack.c.l.b16 %v3408
      %v3928 = vunpack.c.l.b16 %v3409
      %v3929 = vunpack.c.l.b16 %v3410
      %v3930 = vunpack.c.l.b16 %v3411
      %v3931 = vunpack.c.l.b16 %v3412
      %v3932 = vunpack.c.l.b16 %v3413
      %v3933 = vunpack.c.l.b16 %v3414
      %v3934 = vunpack.c.l.b16 %v3415
      %v3935 = vunpack.c.l.b16 %v3416
      %v3936 = vunpack.c.l.b16 %v3417
      %v3937 = vunpack.c.l.b16 %v3418
      %v3938 = vunpack.c.l.b16 %v3419
      %v3939 = vunpack.c.l.b16 %v3420
      %v3940 = vunpack.c.l.b16 %v3421
      %v3941 = vunpack.c.l.b16 %v3422
      %v3942 = vunpack.c.l.b16 %v3423
      %v3943 = vunpack.c.l.b16 %v3424
      %v3944 = vunpack.c.l.b16 %v3425
      %v3945 = vunpack.c.l.b16 %v3426
      %v3946 = vunpack.c.l.b16 %v3427
      %v3947 = vunpack.c.l.b16 %v3428
      %v3948 = vunpack.c.l.b16 %v3429
      %v3949 = vunpack.c.l.b16 %v3430
      %v3950 = vunpack.c.l.b16 %v3431
      %v3951 = vunpack.c.l.b16 %v3432
      %v3952 = vunpack.c.l.b16 %v3433
      %v3953 = vunpack.c.l.b16 %v3434
      %v3954 = vunpack.c.l.b16 %v3435
      %v3955 = vunpack.c.l.b16 %v3436
      %v3956 = vunpack.c.l.b16 %v3437
      %v3957 = vunpack.c.l.b16 %v3438
      %v3958 = vunpack.c.l.b16 %v3439
      %v3959 = vunpack.c.l.b16 %v3440
      %v3960 = vunpack.c.l.b16 %v3441
      %v3961 = vunpack.c.l.b16 %v3442
      %v3962 = vunpack.c.l.b16 %v3443
      %v3963 = vunpack.c.l.b16 %v3444
      %v3964 = vunpack.c.l.b16 %v3445
      %v3965 = vunpack.c.l.b16 %v3446
      %v3966 = vunpack.c.l.b16 %v3447
      %v3967 = vunpack.c.l.b16 %v3448
      %v3968 = vunpack.c.l.b16 %v3449
      %v3969 = vunpack.c.l.b16 %v3450
      %v3970 = vunpack.c.l.b16 %v3451
      %v3971 = vunpack.c.l.b16 %v3452
      %v3972 = vunpack.c.l.b16 %v3453
      %v3973 = vunpack.c.l.b16 %v3454
      %v3974 = vunpack.c.l.b16 %v3455
      %v3975 = vunpack.c.l.b16 %v3456
      %v3976 = vunpack.c.l.b16 %v3457
      %v3977 = vunpack.c.l.b16 %v3458
      %v3978 = vunpack.c.l.b16 %v3459
      %v3979 = vunpack.c.l.b16 %v3460
      %v3980 = vunpack.c.l.b16 %v3461
      %v3981 = vunpack.c.l.b16 %v3462
      %v3982 = vunpack.c.l.b16 %v3463
      %v3983 = vunpack.c.l.b16 %v3464
      %v3984 = vunpack.c.l.b16 %v3465
      %v3985 = vunpack.c.l.b16 %v3466
      %v3986 = vunpack.c.l.b16 %v3467
      %v3987 = vunpack.c.l.b16 %v3468
      %v3988 = vunpack.c.l.b16 %v3469
      %v3989 = vunpack.c.l.b16 %v3470
      %v3990 = vunpack.c.l.b16 %v3471
      %v3991 = vunpack.c.l.b16 %v3472
      %v3992 = vunpack.c.l.b16 %v3473
      %v3993 = vunpack.c.l.b16 %v3474
      %v3994 = vunpack.c.l.b16 %v3475
      %v3995 = vunpack.c.l.b16 %v3476
      %v3996 = vunpack.c.l.b16 %v3477
      %v3997 = vunpack.c.l.b16 %v3478
      %v3998 = vunpack.c.l.b16 %v3479
      %v3999 = vunpack.c.l.b16 %v3480
      %v4000 = vunpack.c.l.b16 %v3481
      %v4001 = vunpack.c.l.b16 %v3482
      %v4002 = vunpack.c.l.b16 %v3483
      %v4003 = vunpack.c.l.b16 %v3484
      %v4004 = vunpack.c.l.b16 %v3485
      %v4005 = vunpack.c.l.b16 %v3486
      %v4006 = vunpack.c.l.b16 %v3487
      %v4007 = vunpack.c.l.b16 %v3488
      %v4008 = vunpack.c.l.b16 %v3489
      %v4009 = vunpack.c.l.b16 %v3490
      %v4010 = vunpack.c.l.b16 %v3491
      %v4011 = vunpack.c.l.b16 %v3492
      %v4012 = vunpack.c.l.b16 %v3493
      %v4013 = vunpack.c.l.b16 %v3494
      %v4014 = vunpack.c.l.b16 %v3495
      %v4015 = vunpack.c.l.b16 %v3496
      %v4016 = vunpack.c.l.b16 %v3497
      %v4017 = vunpack.c.l.b16 %v3498
      %v4018 = vunpack.c.l.b16 %v3499
      %v4019 = vunpack.c.l.b16 %v3500
      %v4020 = vunpack.c.l.b16 %v3501
      %v4021 = vunpack.c.l.b16 %v3502
      %v4022 = vunpack.c.l.b16 %v3503
      %v4023 = vunpack.c.l.b16 %v3504
      %v4024 = vunpack.c.l.b16 %v3505
      %v4025 = vunpack.c.l.b16 %v3506
      %v4026 = vunpack.c.l.b16 %v3507
      %v4027 = vunpack.c.l.b16 %v3508
      %v4028 = vunpack.c.l.b16 %v3509
      %v4029 = vunpack.c.l.b16 %v3510
      %v4030 = vunpack.c.l.b16 %v3511
      %v4031 = vunpack.c.l.b16 %v3512
      %v4032 = vunpack.c.l.b16 %v3513
      %v4033 = vunpack.c.l.b16 %v3514
      %v4034 = vunpack.c.l.b16 %v3515
      %v4035 = vunpack.c.l.b16 %v3516
      %v4036 = vunpack.c.l.b16 %v3517
      %v4037 = vunpack.c.l.b16 %v3518
      %v4038 = vunpack.c.l.b16 %v3519
      %v4039 = vunpack.c.l.b16 %v3520
      %v4040 = vunpack.c.l.b16 %v3521
      %v4041 = vunpack.c.l.b16 %v3522
      %v4042 = vunpack.c.l.b16 %v3523
      %v4043 = vunpack.c.l.b16 %v3524
      %v4044 = vunpack.c.l.b16 %v3525
      %v4045 = vunpack.c.l.b16 %v3526
      %v4046 = vunpack.c.l.b16 %v3527
      %v4047 = vunpack.c.l.b16 %v3528
      %v4048 = vunpack.c.l.b16 %v3529
      %v4049 = vunpack.c.l.b16 %v3530
      %v4050 = vunpack.c.l.b16 %v3531
      %v4051 = vunpack.c.l.b16 %v3532
      %v4052 = vunpack.c.l.b16 %v3533
      %v4053 = vunpack.c.l.b16 %v3534
      %v4054 = vunpack.c.l.b16 %v3535
      %v4055 = vunpack.c.l.b16 %v3536
      %v4056 = vunpack.c.l.b16 %v3537
      %v4057 = vunpack.c.l.b16 %v3538
      %v4058 = vunpack.c.l.b16 %v3539
      %v4059 = vunpack.c.l.b16 %v3540
      %v4060 = vunpack.c.l.b16 %v3541
      %v4061 = vunpack.c.l.b16 %v3542
      %v4062 = vunpack.c.l.b16 %v3543
      %v4063 = vunpack.c.l.b16 %v3544
      %v4064 = vunpack.c.l.b16 %v3545
      %v4065 = vunpack.c.l.b16 %v3546
      %v4066 = vunpack.c.l.b16 %v3547
      %v4067 = vunpack.c.l.b16 %v3548
      %v4068 = vunpack.c.l.b16 %v3549
      %v4069 = vunpack.c.l.b16 %v3550
      %v4070 = vunpack.c.l.b16 %v3551
      %v4071 = vunpack.c.l.b16 %v3552
      %v4072 = vunpack.c.l.b16 %v3553
      %v4073 = vunpack.c.l.b16 %v3554
      %v4074 = vunpack.c.l.b16 %v3555
      %v4075 = vunpack.c.l.b16 %v3556
      %v4076 = vunpack.c.l.b16 %v3557
      %v4077 = vunpack.c.l.b16 %v3558
      %v4078 = vunpack.c.l.b16 %v3559
      %v4079 = vunpack.c.l.b16 %v3560
      %v4080 = vunpack.c.l.b16 %v3561
      %v4081 = vunpack.c.l.b16 %v3562
      %v4082 = vunpack.c.l.b16 %v3563
      %v4083 = vunpack.c.l.b16 %v3564
      %v4084 = vunpack.c.l.b16 %v3565
      %v4085 = vunpack.c.l.b16 %v3566
      %v4086 = vunpack.c.l.b16 %v3567
      %v4087 = vunpack.c.l.b16 %v3568
      %v4088 = vunpack.c.l.b16 %v3569
      %v4089 = vunpack.c.l.b16 %v3570
      %v4090 = vunpack.c.l.b16 %v3571
      %v4091 = vunpack.c.l.b16 %v3572
      %v4092 = vunpack.c.l.b16 %v3573
      %v4093 = vunpack.c.l.b16 %v3574
      %v4094 = vunpack.c.l.b16 %v3575
      %v4095 = vunpack.c.l.b16 %v3576
      %v4096 = vunpack.c.l.b16 %v3577
      %v4097 = vunpack.c.l.b16 %v3578
      %v4098 = vunpack.c.l.b16 %v3579
      %v4099 = vunpack.c.l.b16 %v3580
      %v4100 = vunpack.c.l.b16 %v3581
      %v4101 = vunpack.c.l.b16 %v3582
      %v4102 = vunpack.c.l.b16 %v3583
      %v4103 = vunpack.c.l.b16 %v3584
      %v4104 = vunpack.c.l.b16 %v3585
      %v4105 = vunpack.c.l.b16 %v3586
      %v4106 = vunpack.c.l.b16 %v3587
      %v4107 = vunpack.c.l.b16 %v3588
      %v4108 = vunpack.c.l.b16 %v3589
      %v4109 = vunpack.c.l.b16 %v3590
      %v4110 = vunpack.c.l.b16 %v3591
      %v4111 = vunpack.c.l.b16 %v3592
      %v4112 = vunpack.c.l.b16 %v3593
      %v4113 = vunpack.c.l.b16 %v3594
      %v4114 = vunpack.c.l.b16 %v3595
      %v4115 = vunpack.c.l.b16 %v3596
      %v4116 = vunpack.c.l.b16 %v3597
      %v4117 = vunpack.c.l.b16 %v3598
      %v4118 = vunpack.c.l.b16 %v3599
      %v4119 = vunpack.c.l.b16 %v3600
      %v4120 = vunpack.c.l.b16 %v3601
      %v4121 = vunpack.c.l.b16 %v3602
      %v4122 = vunpack.c.l.b16 %v3603
      %v4123 = vunpack.c.l.b16 %v3604
      %v4124 = vunpack.c.l.b16 %v3605
      %v4125 = vunpack.c.l.b16 %v3606
      %v4126 = vunpack.c.l.b16 %v3607
      %v4127 = vunpack.c.l.b16 %v3608
      %v4128 = vunpack.c.l.b16 %v3609
      %v4129 = vpack.c.b16 %v3874, %v3873
      %v4130 = vpack.c.b16 %v3876, %v3875
      %v4131 = vpack.c.b16 %v3878, %v3877
      %v4132 = vpack.c.b16 %v3880, %v3879
      %v4133 = vpack.c.b16 %v3882, %v3881
      %v4134 = vpack.c.b16 %v3884, %v3883
      %v4135 = vpack.c.b16 %v3886, %v3885
      %v4136 = vpack.c.b16 %v3888, %v3887
      %v4137 = vpack.c.b16 %v3890, %v3889
      %v4138 = vpack.c.b16 %v3892, %v3891
      %v4139 = vpack.c.b16 %v3894, %v3893
      %v4140 = vpack.c.b16 %v3896, %v3895
      %v4141 = vpack.c.b16 %v3898, %v3897
      %v4142 = vpack.c.b16 %v3900, %v3899
      %v4143 = vpack.c.b16 %v3902, %v3901
      %v4144 = vpack.c.b16 %v3904, %v3903
      %v4145 = vpack.c.b16 %v3906, %v3905
      %v4146 = vpack.c.b16 %v3908, %v3907
      %v4147 = vpack.c.b16 %v3910, %v3909
      %v4148 = vpack.c.b16 %v3912, %v3911
      %v4149 = vpack.c.b16 %v3914, %v3913
      %v4150 = vpack.c.b16 %v3916, %v3915
      %v4151 = vpack.c.b16 %v3918, %v3917
      %v4152 = vpack.c.b16 %v3920, %v3919
      %v4153 = vpack.c.b16 %v3922, %v3921
      %v4154 = vpack.c.b16 %v3924, %v3923
      %v4155 = vpack.c.b16 %v3926, %v3925
      %v4156 = vpack.c.b16 %v3928, %v3927
      %v4157 = vpack.c.b16 %v3930, %v3929
      %v4158 = vpack.c.b16 %v3932, %v3931
      %v4159 = vpack.c.b16 %v3934, %v3933
      %v4160 = vpack.c.b16 %v3936, %v3935
      %v4161 = vpack.c.b16 %v3938, %v3937
      %v4162 = vpack.c.b16 %v3940, %v3939
      %v4163 = vpack.c.b16 %v3942, %v3941
      %v4164 = vpack.c.b16 %v3944, %v3943
      %v4165 = vpack.c.b16 %v3946, %v3945
      %v4166 = vpack.c.b16 %v3948, %v3947
      %v4167 = vpack.c.b16 %v3950, %v3949
      %v4168 = vpack.c.b16 %v3952, %v3951
      %v4169 = vpack.c.b16 %v3954, %v3953
      %v4170 = vpack.c.b16 %v3956, %v3955
      %v4171 = vpack.c.b16 %v3958, %v3957
      %v4172 = vpack.c.b16 %v3960, %v3959
      %v4173 = vpack.c.b16 %v3962, %v3961
      %v4174 = vpack.c.b16 %v3964, %v3963
      %v4175 = vpack.c.b16 %v3966, %v3965
      %v4176 = vpack.c.b16 %v3968, %v3967
      %v4177 = vpack.c.b16 %v3970, %v3969
      %v4178 = vpack.c.b16 %v3972, %v3971
      %v4179 = vpack.c.b16 %v3974, %v3973
      %v4180 = vpack.c.b16 %v3976, %v3975
      %v4181 = vpack.c.b16 %v3978, %v3977
      %v4182 = vpack.c.b16 %v3980, %v3979
      %v4183 = vpack.c.b16 %v3982, %v3981
      %v4184 = vpack.c.b16 %v3984, %v3983
      %v4185 = vpack.c.b16 %v3986, %v3985
      %v4186 = vpack.c.b16 %v3988, %v3987
      %v4187 = vpack.c.b16 %v3990, %v3989
      %v4188 = vpack.c.b16 %v3992, %v3991
      %v4189 = vpack.c.b16 %v3994, %v3993
      %v4190 = vpack.c.b16 %v3996, %v3995
      %v4191 = vpack.c.b16 %v3998, %v3997
      %v4192 = vpack.c.b16 %v4000, %v3999
      %v4193 = vpack.c.b16 %v4002, %v4001
      %v4194 = vpack.c.b16 %v4004, %v4003
      %v4195 = vpack.c.b16 %v4006, %v4005
      %v4196 = vpack.c.b16 %v4008, %v4007
      %v4197 = vpack.c.b16 %v4010, %v4009
      %v4198 = vpack.c.b16 %v4012, %v4011
      %v4199 = vpack.c.b16 %v4014, %v4013
      %v4200 = vpack.c.b16 %v4016, %v4015
      %v4201 = vpack.c.b16 %v4018, %v4017
      %v4202 = vpack.c.b16 %v4020, %v4019
      %v4203 = vpack.c.b16 %v4022, %v4021
      %v4204 = vpack.c.b16 %v4024, %v4023
      %v4205 = vpack.c.b16 %v4026, %v4025
      %v4206 = vpack.c.b16 %v4028, %v4027
      %v4207 = vpack.c.b16 %v4030, %v4029
      %v4208 = vpack.c.b16 %v4032, %v4031
      %v4209 = vpack.c.b16 %v4034, %v4033
      %v4210 = vpack.c.b16 %v4036, %v4035
      %v4211 = vpack.c.b16 %v4038, %v4037
      %v4212 = vpack.c.b16 %v4040, %v4039
      %v4213 = vpack.c.b16 %v4042, %v4041
      %v4214 = vpack.c.b16 %v4044, %v4043
      %v4215 = vpack.c.b16 %v4046, %v4045
      %v4216 = vpack.c.b16 %v4048, %v4047
      %v4217 = vpack.c.b16 %v4050, %v4049
      %v4218 = vpack.c.b16 %v4052, %v4051
      %v4219 = vpack.c.b16 %v4054, %v4053
      %v4220 = vpack.c.b16 %v4056, %v4055
      %v4221 = vpack.c.b16 %v4058, %v4057
      %v4222 = vpack.c.b16 %v4060, %v4059
      %v4223 = vpack.c.b16 %v4062, %v4061
      %v4224 = vpack.c.b16 %v4064, %v4063
      %v4225 = vpack.c.b16 %v4066, %v4065
      %v4226 = vpack.c.b16 %v4068, %v4067
      %v4227 = vpack.c.b16 %v4070, %v4069
      %v4228 = vpack.c.b16 %v4072, %v4071
      %v4229 = vpack.c.b16 %v4074, %v4073
      %v4230 = vpack.c.b16 %v4076, %v4075
      %v4231 = vpack.c.b16 %v4078, %v4077
      %v4232 = vpack.c.b16 %v4080, %v4079
      %v4233 = vpack.c.b16 %v4082, %v4081
      %v4234 = vpack.c.b16 %v4084, %v4083
      %v4235 = vpack.c.b16 %v4086, %v4085
      %v4236 = vpack.c.b16 %v4088, %v4087
      %v4237 = vpack.c.b16 %v4090, %v4089
      %v4238 = vpack.c.b16 %v4092, %v4091
      %v4239 = vpack.c.b16 %v4094, %v4093
      %v4240 = vpack.c.b16 %v4096, %v4095
      %v4241 = vpack.c.b16 %v4098, %v4097
      %v4242 = vpack.c.b16 %v4100, %v4099
      %v4243 = vpack.c.b16 %v4102, %v4101
      %v4244 = vpack.c.b16 %v4104, %v4103
      %v4245 = vpack.c.b16 %v4106, %v4105
      %v4246 = vpack.c.b16 %v4108, %v4107
      %v4247 = vpack.c.b16 %v4110, %v4109
      %v4248 = vpack.c.b16 %v4112, %v4111
      %v4249 = vpack.c.b16 %v4114, %v4113
      %v4250 = vpack.c.b16 %v4116, %v4115
      %v4251 = vpack.c.b16 %v4118, %v4117
      %v4252 = vpack.c.b16 %v4120, %v4119
      %v4253 = vpack.c.b16 %v4122, %v4121
      %v4254 = vpack.c.b16 %v4124, %v4123
      %v4255 = vpack.c.b16 %v4126, %v4125
      %v4256 = vpack.c.b16 %v4128, %v4127
      %4385 = vmatprep.subr.bf16.mxu0 0
      %4386 = vmatpush1.bf16.msra.mxu0 %v4136
      %4387 = vmatprep.subr.bf16.mxu0 0
      %4388 = vmatpush1.bf16.msra.mxu0 %v4135
      %4389 = vmatprep.subr.bf16.mxu0 0
      %4390 = vmatpush1.bf16.msra.mxu0 %v4134
      %4391 = vmatprep.subr.bf16.mxu0 0
      %4392 = vmatpush1.bf16.msra.mxu0 %v4133
      %4393 = vmatprep.subr.bf16.mxu0 0
      %4394 = vmatpush1.bf16.msra.mxu0 %v4132
      %4395 = vmatprep.subr.bf16.mxu0 0
      %4396 = vmatpush1.bf16.msra.mxu0 %v4131
      %4397 = vmatprep.subr.bf16.mxu0 0
      %4398 = vmatpush1.bf16.msra.mxu0 %v4130
      %4399 = vmatprep.subr.bf16.mxu0 0
      %4400 = vmatpush1.bf16.msra.mxu0 %v4129
      %4401 = vmatprep.subr.bf16.mxu0 0
      %4402 = vmatpush2.bf16.msra.mxu0 %v4144
      %4403 = vmatprep.subr.bf16.mxu0 0
      %4404 = vmatpush2.bf16.msra.mxu0 %v4143
      %4405 = vmatprep.subr.bf16.mxu0 0
      %4406 = vmatpush2.bf16.msra.mxu0 %v4142
      %4407 = vmatprep.subr.bf16.mxu0 0
      %4408 = vmatpush2.bf16.msra.mxu0 %v4141
      %4409 = vmatprep.subr.bf16.mxu0 0
      %4410 = vmatpush2.bf16.msra.mxu0 %v4140
      %4411 = vmatprep.subr.bf16.mxu0 0
      %4412 = vmatpush2.bf16.msra.mxu0 %v4139
      %4413 = vmatprep.subr.bf16.mxu0 0
      %4414 = vmatpush2.bf16.msra.mxu0 %v4138
      %4415 = vmatprep.subr.bf16.mxu0 0
      %4416 = vmatpush2.bf16.msra.mxu0 %v4137
      %4417 = vmatprep.mubr.bf16.mxu0 %v3339
      %4418 = vmatmul.mubr.bf16.gmra.mxu0 %v3338
      %v4419 = vpop.f32.mrf.mxu0
      %v4420 = vadd.f32 %v3615, %v4419
      %v4421 = vpop.f32.mrf.mxu0
      %v4422 = vpop.f32.mrf.mxu0
      %v4423 = vpop.f32.mrf.mxu0
      %4424 = vdwg.mxu0
      %4425 = vmatprep.subr.bf16.mxu0 0
      %4426 = vmatpush1.bf16.msra.mxu0 %v4152
      %4427 = vmatprep.subr.bf16.mxu0 0
      %4428 = vmatpush1.bf16.msra.mxu0 %v4151
      %4429 = vmatprep.subr.bf16.mxu0 0
      %4430 = vmatpush1.bf16.msra.mxu0 %v4150
      %4431 = vmatprep.subr.bf16.mxu0 0
      %4432 = vmatpush1.bf16.msra.mxu0 %v4149
      %4433 = vmatprep.subr.bf16.mxu0 0
      %4434 = vmatpush1.bf16.msra.mxu0 %v4148
      %4435 = vmatprep.subr.bf16.mxu0 0
      %4436 = vmatpush1.bf16.msra.mxu0 %v4147
      %4437 = vmatprep.subr.bf16.mxu0 0
      %4438 = vmatpush1.bf16.msra.mxu0 %v4146
      %4439 = vmatprep.subr.bf16.mxu0 0
      %4440 = vmatpush1.bf16.msra.mxu0 %v4145
      %4441 = vmatprep.subr.bf16.mxu0 0
      %4442 = vmatpush2.bf16.msra.mxu0 %v4160
      %4443 = vmatprep.subr.bf16.mxu0 0
      %4444 = vmatpush2.bf16.msra.mxu0 %v4159
      %4445 = vmatprep.subr.bf16.mxu0 0
      %4446 = vmatpush2.bf16.msra.mxu0 %v4158
      %4447 = vmatprep.subr.bf16.mxu0 0
      %4448 = vmatpush2.bf16.msra.mxu0 %v4157
      %4449 = vmatprep.subr.bf16.mxu0 0
      %4450 = vmatpush2.bf16.msra.mxu0 %v4156
      %4451 = vmatprep.subr.bf16.mxu0 0
      %4452 = vmatpush2.bf16.msra.mxu0 %v4155
      %4453 = vmatprep.subr.bf16.mxu0 0
      %4454 = vmatpush2.bf16.msra.mxu0 %v4154
      %4455 = vmatprep.subr.bf16.mxu0 0
      %4456 = vmatpush2.bf16.msra.mxu0 %v4153
      %4457 = vmatprep.mubr.bf16.mxu0 %v3341
      %4458 = vmatmul.mubr.bf16.gmra.mxu0 %v3340
      %v4459 = vpop.f32.mrf.mxu0
      %v4460 = vadd.f32 %v4420, %v4459
      %v4461 = vpop.f32.mrf.mxu0
      %v4462 = vpop.f32.mrf.mxu0
      %v4463 = vpop.f32.mrf.mxu0
      %4464 = vdwg.mxu0
      %4465 = vmatprep.subr.bf16.mxu0 0
      %4466 = vmatpush1.bf16.msra.mxu0 %v4168
      %4467 = vmatprep.subr.bf16.mxu0 0
      %4468 = vmatpush1.bf16.msra.mxu0 %v4167
      %4469 = vmatprep.subr.bf16.mxu0 0
      %4470 = vmatpush1.bf16.msra.mxu0 %v4166
      %4471 = vmatprep.subr.bf16.mxu0 0
      %4472 = vmatpush1.bf16.msra.mxu0 %v4165
      %4473 = vmatprep.subr.bf16.mxu0 0
      %4474 = vmatpush1.bf16.msra.mxu0 %v4164
      %4475 = vmatprep.subr.bf16.mxu0 0
      %4476 = vmatpush1.bf16.msra.mxu0 %v4163
      %4477 = vmatprep.subr.bf16.mxu0 0
      %4478 = vmatpush1.bf16.msra.mxu0 %v4162
      %4479 = vmatprep.subr.bf16.mxu0 0
      %4480 = vmatpush1.bf16.msra.mxu0 %v4161
      %4481 = vmatprep.subr.bf16.mxu0 0
      %4482 = vmatpush2.bf16.msra.mxu0 %v4176
      %4483 = vmatprep.subr.bf16.mxu0 0
      %4484 = vmatpush2.bf16.msra.mxu0 %v4175
      %4485 = vmatprep.subr.bf16.mxu0 0
      %4486 = vmatpush2.bf16.msra.mxu0 %v4174
      %4487 = vmatprep.subr.bf16.mxu0 0
      %4488 = vmatpush2.bf16.msra.mxu0 %v4173
      %4489 = vmatprep.subr.bf16.mxu0 0
      %4490 = vmatpush2.bf16.msra.mxu0 %v4172
      %4491 = vmatprep.subr.bf16.mxu0 0
      %4492 = vmatpush2.bf16.msra.mxu0 %v4171
      %4493 = vmatprep.subr.bf16.mxu0 0
      %4494 = vmatpush2.bf16.msra.mxu0 %v4170
      %4495 = vmatprep.subr.bf16.mxu0 0
      %4496 = vmatpush2.bf16.msra.mxu0 %v4169
      %4497 = vmatprep.mubr.bf16.mxu0 %v3343
      %4498 = vmatmul.mubr.bf16.gmra.mxu0 %v3342
      %v4499 = vpop.f32.mrf.mxu0
      %v4500 = vadd.f32 %v4460, %v4499
      %v4501 = vpop.f32.mrf.mxu0
      %v4502 = vpop.f32.mrf.mxu0
      %v4503 = vpop.f32.mrf.mxu0
      %4504 = vdwg.mxu0
      %4505 = vmatprep.subr.bf16.mxu0 0
      %4506 = vmatpush1.bf16.msra.mxu0 %v4184
      %4507 = vmatprep.subr.bf16.mxu0 0
      %4508 = vmatpush1.bf16.msra.mxu0 %v4183
      %4509 = vmatprep.subr.bf16.mxu0 0
      %4510 = vmatpush1.bf16.msra.mxu0 %v4182
      %4511 = vmatprep.subr.bf16.mxu0 0
      %4512 = vmatpush1.bf16.msra.mxu0 %v4181
      %4513 = vmatprep.subr.bf16.mxu0 0
      %4514 = vmatpush1.bf16.msra.mxu0 %v4180
      %4515 = vmatprep.subr.bf16.mxu0 0
      %4516 = vmatpush1.bf16.msra.mxu0 %v4179
      %4517 = vmatprep.subr.bf16.mxu0 0
      %4518 = vmatpush1.bf16.msra.mxu0 %v4178
      %4519 = vmatprep.subr.bf16.mxu0 0
      %4520 = vmatpush1.bf16.msra.mxu0 %v4177
      %4521 = vmatprep.subr.bf16.mxu0 0
      %4522 = vmatpush2.bf16.msra.mxu0 %v4192
      %4523 = vmatprep.subr.bf16.mxu0 0
      %4524 = vmatpush2.bf16.msra.mxu0 %v4191
      %4525 = vmatprep.subr.bf16.mxu0 0
      %4526 = vmatpush2.bf16.msra.mxu0 %v4190
      %4527 = vmatprep.subr.bf16.mxu0 0
      %4528 = vmatpush2.bf16.msra.mxu0 %v4189
      %4529 = vmatprep.subr.bf16.mxu0 0
      %4530 = vmatpush2.bf16.msra.mxu0 %v4188
      %4531 = vmatprep.subr.bf16.mxu0 0
      %4532 = vmatpush2.bf16.msra.mxu0 %v4187
      %4533 = vmatprep.subr.bf16.mxu0 0
      %4534 = vmatpush2.bf16.msra.mxu0 %v4186
      %4535 = vmatprep.subr.bf16.mxu0 0
      %4536 = vmatpush2.bf16.msra.mxu0 %v4185
      %4537 = vmatprep.mubr.bf16.mxu0 %v3345
      %4538 = vmatmul.mubr.bf16.gmra.mxu0 %v3344
      %v4539 = vpop.f32.mrf.mxu0
      %v4540 = vadd.f32 %v4500, %v4539
      %v4541 = vpop.f32.mrf.mxu0
      %v4542 = vpop.f32.mrf.mxu0
      %v4543 = vpop.f32.mrf.mxu0
      %4544 = vdwg.mxu0
      %4545 = vmatprep.subr.bf16.mxu0 0
      %4546 = vmatpush1.bf16.msra.mxu0 %v4200
      %4547 = vmatprep.subr.bf16.mxu0 0
      %4548 = vmatpush1.bf16.msra.mxu0 %v4199
      %4549 = vmatprep.subr.bf16.mxu0 0
      %4550 = vmatpush1.bf16.msra.mxu0 %v4198
      %4551 = vmatprep.subr.bf16.mxu0 0
      %4552 = vmatpush1.bf16.msra.mxu0 %v4197
      %4553 = vmatprep.subr.bf16.mxu0 0
      %4554 = vmatpush1.bf16.msra.mxu0 %v4196
      %4555 = vmatprep.subr.bf16.mxu0 0
      %4556 = vmatpush1.bf16.msra.mxu0 %v4195
      %4557 = vmatprep.subr.bf16.mxu0 0
      %4558 = vmatpush1.bf16.msra.mxu0 %v4194
      %4559 = vmatprep.subr.bf16.mxu0 0
      %4560 = vmatpush1.bf16.msra.mxu0 %v4193
      %4561 = vmatprep.subr.bf16.mxu0 0
      %4562 = vmatpush2.bf16.msra.mxu0 %v4208
      %4563 = vmatprep.subr.bf16.mxu0 0
      %4564 = vmatpush2.bf16.msra.mxu0 %v4207
      %4565 = vmatprep.subr.bf16.mxu0 0
      %4566 = vmatpush2.bf16.msra.mxu0 %v4206
      %4567 = vmatprep.subr.bf16.mxu0 0
      %4568 = vmatpush2.bf16.msra.mxu0 %v4205
      %4569 = vmatprep.subr.bf16.mxu0 0
      %4570 = vmatpush2.bf16.msra.mxu0 %v4204
      %4571 = vmatprep.subr.bf16.mxu0 0
      %4572 = vmatpush2.bf16.msra.mxu0 %v4203
      %4573 = vmatprep.subr.bf16.mxu0 0
      %4574 = vmatpush2.bf16.msra.mxu0 %v4202
      %4575 = vmatprep.subr.bf16.mxu0 0
      %4576 = vmatpush2.bf16.msra.mxu0 %v4201
      %4577 = vmatprep.mubr.bf16.mxu0 %v3347
      %4578 = vmatmul.mubr.bf16.gmra.mxu0 %v3346
      %v4579 = vpop.f32.mrf.mxu0
      %v4580 = vadd.f32 %v4540, %v4579
      %v4581 = vpop.f32.mrf.mxu0
      %v4582 = vpop.f32.mrf.mxu0
      %v4583 = vpop.f32.mrf.mxu0
      %4584 = vdwg.mxu0
      %4585 = vmatprep.subr.bf16.mxu0 0
      %4586 = vmatpush1.bf16.msra.mxu0 %v4216
      %4587 = vmatprep.subr.bf16.mxu0 0
      %4588 = vmatpush1.bf16.msra.mxu0 %v4215
      %4589 = vmatprep.subr.bf16.mxu0 0
      %4590 = vmatpush1.bf16.msra.mxu0 %v4214
      %4591 = vmatprep.subr.bf16.mxu0 0
      %4592 = vmatpush1.bf16.msra.mxu0 %v4213
      %4593 = vmatprep.subr.bf16.mxu0 0
      %4594 = vmatpush1.bf16.msra.mxu0 %v4212
      %4595 = vmatprep.subr.bf16.mxu0 0
      %4596 = vmatpush1.bf16.msra.mxu0 %v4211
      %4597 = vmatprep.subr.bf16.mxu0 0
      %4598 = vmatpush1.bf16.msra.mxu0 %v4210
      %4599 = vmatprep.subr.bf16.mxu0 0
      %4600 = vmatpush1.bf16.msra.mxu0 %v4209
      %4601 = vmatprep.subr.bf16.mxu0 0
      %4602 = vmatpush2.bf16.msra.mxu0 %v4224
      %4603 = vmatprep.subr.bf16.mxu0 0
      %4604 = vmatpush2.bf16.msra.mxu0 %v4223
      %4605 = vmatprep.subr.bf16.mxu0 0
      %4606 = vmatpush2.bf16.msra.mxu0 %v4222
      %4607 = vmatprep.subr.bf16.mxu0 0
      %4608 = vmatpush2.bf16.msra.mxu0 %v4221
      %4609 = vmatprep.subr.bf16.mxu0 0
      %4610 = vmatpush2.bf16.msra.mxu0 %v4220
      %4611 = vmatprep.subr.bf16.mxu0 0
      %4612 = vmatpush2.bf16.msra.mxu0 %v4219
      %4613 = vmatprep.subr.bf16.mxu0 0
      %4614 = vmatpush2.bf16.msra.mxu0 %v4218
      %4615 = vmatprep.subr.bf16.mxu0 0
      %4616 = vmatpush2.bf16.msra.mxu0 %v4217
      %4617 = vmatprep.mubr.bf16.mxu0 %v3349
      %4618 = vmatmul.mubr.bf16.gmra.mxu0 %v3348
      %v4619 = vpop.f32.mrf.mxu0
      %v4620 = vadd.f32 %v4580, %v4619
      %v4621 = vpop.f32.mrf.mxu0
      %v4622 = vpop.f32.mrf.mxu0
      %v4623 = vpop.f32.mrf.mxu0
      %4624 = vdwg.mxu0
      %4625 = vmatprep.subr.bf16.mxu0 0
      %4626 = vmatpush1.bf16.msra.mxu0 %v4232
      %4627 = vmatprep.subr.bf16.mxu0 0
      %4628 = vmatpush1.bf16.msra.mxu0 %v4231
      %4629 = vmatprep.subr.bf16.mxu0 0
      %4630 = vmatpush1.bf16.msra.mxu0 %v4230
      %4631 = vmatprep.subr.bf16.mxu0 0
      %4632 = vmatpush1.bf16.msra.mxu0 %v4229
      %4633 = vmatprep.subr.bf16.mxu0 0
      %4634 = vmatpush1.bf16.msra.mxu0 %v4228
      %4635 = vmatprep.subr.bf16.mxu0 0
      %4636 = vmatpush1.bf16.msra.mxu0 %v4227
      %4637 = vmatprep.subr.bf16.mxu0 0
      %4638 = vmatpush1.bf16.msra.mxu0 %v4226
      %4639 = vmatprep.subr.bf16.mxu0 0
      %4640 = vmatpush1.bf16.msra.mxu0 %v4225
      %4641 = vmatprep.subr.bf16.mxu0 0
      %4642 = vmatpush2.bf16.msra.mxu0 %v4240
      %4643 = vmatprep.subr.bf16.mxu0 0
      %4644 = vmatpush2.bf16.msra.mxu0 %v4239
      %4645 = vmatprep.subr.bf16.mxu0 0
      %4646 = vmatpush2.bf16.msra.mxu0 %v4238
      %4647 = vmatprep.subr.bf16.mxu0 0
      %4648 = vmatpush2.bf16.msra.mxu0 %v4237
      %4649 = vmatprep.subr.bf16.mxu0 0
      %4650 = vmatpush2.bf16.msra.mxu0 %v4236
      %4651 = vmatprep.subr.bf16.mxu0 0
      %4652 = vmatpush2.bf16.msra.mxu0 %v4235
      %4653 = vmatprep.subr.bf16.mxu0 0
      %4654 = vmatpush2.bf16.msra.mxu0 %v4234
      %4655 = vmatprep.subr.bf16.mxu0 0
      %4656 = vmatpush2.bf16.msra.mxu0 %v4233
      %4657 = vmatprep.mubr.bf16.mxu0 %v3351
      %4658 = vmatmul.mubr.bf16.gmra.mxu0 %v3350
      %v4659 = vpop.f32.mrf.mxu0
      %v4660 = vadd.f32 %v4620, %v4659
      %v4661 = vpop.f32.mrf.mxu0
      %v4662 = vpop.f32.mrf.mxu0
      %v4663 = vpop.f32.mrf.mxu0
      %4664 = vdwg.mxu0
      %4665 = vmatprep.subr.bf16.mxu0 0
      %4666 = vmatpush1.bf16.msra.mxu0 %v4248
      %4667 = vmatprep.subr.bf16.mxu0 0
      %4668 = vmatpush1.bf16.msra.mxu0 %v4247
      %4669 = vmatprep.subr.bf16.mxu0 0
      %4670 = vmatpush1.bf16.msra.mxu0 %v4246
      %4671 = vmatprep.subr.bf16.mxu0 0
      %4672 = vmatpush1.bf16.msra.mxu0 %v4245
      %4673 = vmatprep.subr.bf16.mxu0 0
      %4674 = vmatpush1.bf16.msra.mxu0 %v4244
      %4675 = vmatprep.subr.bf16.mxu0 0
      %4676 = vmatpush1.bf16.msra.mxu0 %v4243
      %4677 = vmatprep.subr.bf16.mxu0 0
      %4678 = vmatpush1.bf16.msra.mxu0 %v4242
      %4679 = vmatprep.subr.bf16.mxu0 0
      %4680 = vmatpush1.bf16.msra.mxu0 %v4241
      %4681 = vmatprep.subr.bf16.mxu0 0
      %4682 = vmatpush2.bf16.msra.mxu0 %v4256
      %4683 = vmatprep.subr.bf16.mxu0 0
      %4684 = vmatpush2.bf16.msra.mxu0 %v4255
      %4685 = vmatprep.subr.bf16.mxu0 0
      %4686 = vmatpush2.bf16.msra.mxu0 %v4254
      %4687 = vmatprep.subr.bf16.mxu0 0
      %4688 = vmatpush2.bf16.msra.mxu0 %v4253
      %4689 = vmatprep.subr.bf16.mxu0 0
      %4690 = vmatpush2.bf16.msra.mxu0 %v4252
      %4691 = vmatprep.subr.bf16.mxu0 0
      %4692 = vmatpush2.bf16.msra.mxu0 %v4251
      %4693 = vmatprep.subr.bf16.mxu0 0
      %4694 = vmatpush2.bf16.msra.mxu0 %v4250
      %4695 = vmatprep.subr.bf16.mxu0 0
      %4696 = vmatpush2.bf16.msra.mxu0 %v4249
      %4697 = vmatprep.mubr.bf16.mxu0 %v3353
      %4698 = vmatmul.mubr.bf16.gmra.mxu0 %v3352
      %v4699 = vpop.f32.mrf.mxu0
      %v4700 = vadd.f32 %v4660, %v4699
      %v4701 = vpop.f32.mrf.mxu0
      %v4702 = vpop.f32.mrf.mxu0
      %v4703 = vpop.f32.mrf.mxu0
      %4704 = vdwg.mxu0
      %v4705 = vadd.f32 %v2713, %v4700
      %v4706 = vld [vmem:[%s11] sm:$0x1]
      %v4707 = vld [vmem:[%s12] sm:$0x1]
      %v4708 = vsel %vm633, %v4705, 0.0
      %4709 = vadd.xlane.f32.xlu0 %v4708
      %v4710 = vpop.xlane.xlu0 %4709
      %v4711 = vmul.f32 %v4710, %v2689
      %v4712 = vsub.f32 %v4705, %v4711
      %v4713 = vmul.f32 %v4712, %v4712
      %v4714 = vsel %vm633, %v4713, 0.0
      %4715 = vadd.xlane.f32.xlu0 %v4714
      %v4716 = vpop.xlane.xlu0 %4715
      %v4717 = vmul.f32 %v4716, %v2689
      %v4718 = vadd.f32 %v4717, 1e-05
      %v4719 = vrsqrt.pop %v4718
      %v4720 = vmul.f32 %v4712, %v4719
      %v4722 = vlaneseq
      %v4723 = vshrl.u32 %v4722, 7
      %v4724 = vsub.s32 0, %v4723
      %v4725 = vrot.slane %v4706, %v4724
      %v4727 = vmul.f32 %v4720, %v4725
      %v4729 = vlaneseq
      %v4730 = vshrl.u32 %v4729, 7
      %v4731 = vsub.s32 0, %v4730
      %v4732 = vrot.slane %v4707, %v4731
      %v4734 = vadd.f32 %v4727, %v4732
      %v4735 = vpack.c.bf16 %v4734, %v4734
      %vm4736 = vcmask 257024
      %4737 = vst.msk [vmem:[%s605] sm:$0xf] %vm4736, %v4735
      %p4738 = scmp.lt.s32.totalorder %s32, 1
      %s4739 = scalar_select %p4738, %s32, 1
      %p4740 = scmp.lt.s32.totalorder %s33, 0
      %s4741 = scalar_select %p4740, %s33, 0
      %s4742 = sadd.s32 %s4741, %s4739
      %s4743 = smul.addr %s4742, 4
      %s4744 = scalar_lea.vmem %s17, %s4743
      // Predicated region
      $region89: #{_global_former_impl.2} parent=87 // pred_check
        %p4745 = pneg %p434
      $region90: #{_global_former_impl.2} parent=87 // pred_check_branch
        %4747 = sbr.rel (%p4745) target = $region92
      $region91: #{_global_former_impl.2} parent=87 // pred_region
        _
      $region92: #{_global_former_impl.2} parent=87 // pred_fallthru
        _
    $region88: #{_global_former_impl.2} parent=5 // pred_fallthru
      _
    %p4748 = scmp.le.s32.totalorder 2, %s23
    // Predicated region
    $region93: #{_global_former_impl.2} parent=5 // pred_check
      %p4749 = pneg %p4748
    $region94: #{_global_former_impl.2} parent=5 // pred_check_branch
      %4751 = sbr.rel (%p4749) target = $region96
    $region95: #{_global_former_impl.2} parent=5 // pred_region
      %s4752 = ssub.s32 %s23, 2
      // Predicated region
      $region97: #{_global_former_impl.2} parent=95 // pred_check
        %p4753 = pneg %p440
      $region98: #{_global_former_impl.2} parent=95 // pred_check_branch
        %4755 = sbr.rel (%p4753) target = $region100
      $region99: #{_global_former_impl.2} parent=95 // pred_region
        %p4756 = scmp.lt.s32.totalorder %s34, 1
        %s4757 = scalar_select %p4756, %s34, 1
        %p4758 = scmp.lt.s32.totalorder %s35, 0
        %s4759 = scalar_select %p4758, %s35, 0
        %s4760 = sadd.s32 %s4759, %s4757
        %s4761 = smul.addr %s4760, 4
        %s4762 = scalar_lea.vmem %s17, %s4761
      $region100: #{_global_former_impl.2} parent=95 // pred_fallthru
        _
    $region96: #{_global_former_impl.2} parent=5 // pred_fallthru
      _
  $region6: #{_global_former_impl.2} parent=0 // loop_footer
    %s27 = sadd.s32 1, %s23
  $region7: #{_global_former_impl.2} parent=0 // loop_footer_branch
    %22 = sbr.rel target = $region3
  $region8: #{_global_former_impl.2} parent=0 // loop_exit
    _

</llo_original>
